<compile_context>
chip_gen: v7x
topology: tpu7x:2x2x1
jax: 0.10.0
libtpu: 0.0.40
codegen_flags: <defaults>
</compile_context>

<pallas_src>
import jax
import jax.numpy as jnp
import numpy as np
from jax import lax
from jax.experimental import pallas as pl
from jax.experimental.pallas import tpu as pltpu

F_IN = 40  # number of physiological variables (fixed by the module: nn.Linear(40, embedding))


def _gates_to_hc(g, c_prev, H):
    """LSTM gate math, PyTorch gate order i, f, g, o.

    Applies sigmoid/tanh over the full 4H lane width (2 EUP passes) and then takes
    static lane slices, instead of 4 narrow sliced transcendentals.
    """
    sig = jax.nn.sigmoid(g)
    tnh = jnp.tanh(g)
    i = sig[:, 0 * H:1 * H]
    f = sig[:, 1 * H:2 * H]
    gg = tnh[:, 2 * H:3 * H]
    o = sig[:, 3 * H:4 * H]
    c_new = f * c_prev + i * gg
    h_new = o * jnp.tanh(c_new)
    return h_new, c_new


def encoder_kernel(max_len_ref,                       # scalar prefetch (SMEM): [1] int32
                   len_ref, x_ref, h0_ref, c0_ref,
                   wx0_ref, whh0_ref, bf0_ref,        # fused layer 0 (embed folded in)
                   wl1_ref, b1_ref,                   # fused layer 1
                   out_ref, hn_ref, cn_ref,
                   h1_s, c1_s, h2_s, c2_s, gx_s):
    c = pl.program_id(0)
    B, TS, Fin = x_ref.shape
    H = whh0_ref.shape[0]
    G = 4 * H
    chunk_start = c * TS

    # Load initial hidden/cell state (the module's init_hidden()) at the first chunk.
    @pl.when(c == 0)
    def _init():
        h1_s[...] = h0_ref[0]
        c1_s[...] = c0_ref[0]
        h2_s[...] = h0_ref[1]
        c2_s[...] = c0_ref[1]

    # Fast path: if every sequence has already ended before this chunk, skip compute.
    active = chunk_start < max_len_ref[0]

    @pl.when(active)
    def _compute():
        # Hoisted input projection for the whole chunk (embedding Linear folded in):
        #   gx[b, s, :] = x[b, s, :] @ (w_in @ w_ih0) + (b_in @ w_ih0 + b0)
        x_chunk = x_ref[...].reshape(B * TS, Fin)
        gx = jnp.dot(x_chunk, wx0_ref[...], preferred_element_type=jnp.float32)
        gx = gx + bf0_ref[...]
        gx_s[...] = gx.reshape(B, TS, G)

        seq = len_ref[...]                              # (B, 1) int32

        def step(s, carry):
            h1, c1, h2, c2 = carry
            m = (chunk_start + s) < seq                 # (B, 1) valid-timestep mask

            # LSTM layer 0: only the recurrent matmul remains inside the loop.
            g0 = gx_s[:, pl.ds(s, 1), :].reshape(B, G)
            g0 = g0 + jnp.dot(h1, whh0_ref[...], preferred_element_type=jnp.float32)
            h1n, c1n = _gates_to_hc(g0, c1, H)
            h1 = jnp.where(m, h1n, h1)
            c1 = jnp.where(m, c1n, c1)

            # LSTM layer 1: i2h + h2h fused into a single matmul on concat(h1, h2).
            hcat = jnp.concatenate([h1, h2], axis=-1)   # (B, 2H)
            g1 = jnp.dot(hcat, wl1_ref[...], preferred_element_type=jnp.float32) + b1_ref[...]
            h2n, c2n = _gates_to_hc(g1, c2, H)
            h2 = jnp.where(m, h2n, h2)
            c2 = jnp.where(m, c2n, c2)

            # pad_packed_sequence(padding_value=-1): outputs beyond seq_len are -1.
            out_ref[:, pl.ds(s, 1), :] = jnp.where(m, h2, jnp.float32(-1.0))[:, None, :]
            return h1, c1, h2, c2

        carry0 = (h1_s[...], c1_s[...], h2_s[...], c2_s[...])
        unroll = True if TS <= 16 else 4
        h1, c1, h2, c2 = lax.fori_loop(0, TS, step, carry0, unroll=unroll)
        h1_s[...] = h1
        c1_s[...] = c1
        h2_s[...] = h2
        c2_s[...] = c2

    @pl.when(jnp.logical_not(active))
    def _skip():
        # All sequences already finished: state stays frozen, output is all -1.
        out_ref[...] = jnp.full(out_ref.shape, -1.0, dtype=out_ref.dtype)

    # Final (h_n, c_n): state at the last valid timestep of each sequence (frozen by mask).
    @pl.when(c == pl.num_programs(0) - 1)
    def _final():
        hn_ref[0] = h1_s[...]
        hn_ref[1] = h2_s[...]
        cn_ref[0] = c1_s[...]
        cn_ref[1] = c2_s[...]


def encoder_forward(x, seq_len, params, h0, c0, *, time_chunk=32):
    """x: [B, T, 40] batch_first (PyTorch convention). Returns (out.squeeze(), (h_n, c_n))."""
    B, T, Fin = x.shape
    H = params["w_hh0"].shape[0]
    G = 4 * H

    # --- algebraic fusions (exact linear refactors, done once in the wrapper) ---
    wx0 = jnp.dot(params["w_in"], params["w_ih0"])                    # (40, 4H)
    bf0 = jnp.dot(params["b_in"], params["w_ih0"]) + params["b0"]     # (1, 4H)
    whh0 = params["w_hh0"]                                            # (H, 4H)
    wl1 = jnp.concatenate([params["w_ih1"], params["w_hh1"]], axis=0)  # (2H, 4H)
    b1 = params["b1"]                                                 # (1, 4H)

    # --- time chunking (TS timesteps per grid step) ---
    if T <= time_chunk:
        TS = T
    else:
        TS = max(8, (time_chunk // 8) * 8)   # keep second-minor block dim 8-aligned
    Tp = ((T + TS - 1) // TS) * TS
    xp = x.astype(jnp.float32)
    if Tp != T:
        xp = jnp.pad(xp, ((0, 0), (0, Tp - T), (0, 0)))
    num_chunks = Tp // TS

    seq_len = seq_len.astype(jnp.int32)
    seq_len2 = seq_len.reshape(B, 1)
    max_len_s = jnp.max(seq_len).reshape(1)   # scalar-prefetched: enables whole-chunk skip

    def const(*shape):
        return pl.BlockSpec(shape, lambda c, ml, _n=len(shape): (0,) * _n)

    grid_spec = pltpu.PrefetchScalarGridSpec(
        num_scalar_prefetch=1,                 # max_len -> SMEM
        grid=(num_chunks,),
        in_specs=[
            const(B, 1),                                            # seq_len
            pl.BlockSpec((B, TS, Fin), lambda c, ml: (0, c, 0)),    # x chunk (batch-first)
            const(2, B, H),                                         # h0
            const(2, B, H),                                         # c0
            const(Fin, G), const(H, G), const(1, G),                # fused LSTM layer 0
            const(2 * H, G), const(1, G),                           # fused LSTM layer 1
        ],
        out_specs=[
            pl.BlockSpec((B, TS, H), lambda c, ml: (0, c, 0)),      # output chunk (batch-first)
            const(2, B, H),                                         # h_n (resident accumulator)
            const(2, B, H),                                         # c_n
        ],
        scratch_shapes=[pltpu.VMEM((B, H), jnp.float32)] * 4        # h1, c1, h2, c2 state
                       + [pltpu.VMEM((B, TS, G), jnp.float32)],     # hoisted gate projections
    )

    out, hn, cn = pl.pallas_call(
        encoder_kernel,
        grid_spec=grid_spec,
        out_shape=(
            jax.ShapeDtypeStruct((B, Tp, H), jnp.float32),
            jax.ShapeDtypeStruct((2, B, H), jnp.float32),
            jax.ShapeDtypeStruct((2, B, H), jnp.float32),
        ),
        compiler_params=pltpu.CompilerParams(
            dimension_semantics=("arbitrary",)),                    # sequential time recurrence
    )(max_len_s, seq_len2, xp, h0, c0, wx0, whh0, bf0, wl1, b1)

    if Tp != T:
        out = out[:, :T, :]
    # Mirrors the module's `X.squeeze()` (drops all size-1 dims, like torch.squeeze()).
    return jnp.squeeze(out), (hn, cn)


def init_params(key, E, H, F_in=F_IN):
    """Deterministic parameter init matching PyTorch default shapes (weights pre-transposed)."""
    ks = jax.random.split(key, 9)

    def unif(k, shape, bound):
        return jax.random.uniform(k, shape, jnp.float32, -bound, bound)

    lin_b = 1.0 / np.sqrt(F_in)
    lstm_b = 1.0 / np.sqrt(H)
    return dict(
        w_in=unif(ks[0], (F_in, E), lin_b),                   # nn.Linear(40, E).weight.T
        b_in=jnp.zeros((1, E), jnp.float32),                  # bias zeroed in __init__
        w_ih0=unif(ks[1], (E, 4 * H), lstm_b),                # weight_ih_l0.T
        w_hh0=unif(ks[2], (H, 4 * H), lstm_b),                # weight_hh_l0.T
        b0=unif(ks[3], (1, 4 * H), lstm_b) + unif(ks[4], (1, 4 * H), lstm_b),  # b_ih + b_hh
        w_ih1=unif(ks[5], (E, 4 * H), lstm_b) if E == H else unif(ks[5], (H, 4 * H), lstm_b),
        w_hh1=unif(ks[6], (H, 4 * H), lstm_b),
        b1=unif(ks[7], (1, 4 * H), lstm_b) + unif(ks[8], (1, 4 * H), lstm_b),
    )


def _lstm_cell_ref(inp, h, c, wih, whh, b):
    """PyTorch LSTMCell math (original unfused formulation); used by the pure-JAX reference."""
    g = jnp.dot(inp, wih) + jnp.dot(h, whh) + b
    H = h.shape[-1]
    i = jax.nn.sigmoid(g[:, 0 * H:1 * H])
    f = jax.nn.sigmoid(g[:, 1 * H:2 * H])
    gg = jnp.tanh(g[:, 2 * H:3 * H])
    o = jax.nn.sigmoid(g[:, 3 * H:4 * H])
    c_new = f * c + i * gg
    h_new = o * jnp.tanh(c_new)
    return h_new, c_new


def reference_forward(x, seq_len, params, h0, c0):
    """Pure-JAX reference of the masked packed-sequence LSTM (original module formulation)."""
    B, T, _ = x.shape
    h1, c1 = h0[0], c0[0]
    h2, c2 = h0[1], c0[1]
    outs = []
    for t in range(T):
        mask = (t < seq_len)[:, None]
        emb = x[:, t, :] @ params["w_in"] + params["b_in"]
        h1n, c1n = _lstm_cell_ref(emb, h1, c1, params["w_ih0"], params["w_hh0"], params["b0"])
        h1 = jnp.where(mask, h1n, h1)
        c1 = jnp.where(mask, c1n, c1)
        h2n, c2n = _lstm_cell_ref(h1, h2, c2, params["w_ih1"], params["w_hh1"], params["b1"])
        h2 = jnp.where(mask, h2n, h2)
        c2 = jnp.where(mask, c2n, c2)
        outs.append(jnp.where(mask, h2, -1.0))
    out = jnp.stack(outs, axis=1)
    return out, jnp.stack([h1, h2]), jnp.stack([c1, c2])


def _check(out, hn, cn, ref_out, ref_hn, ref_cn):
    np.testing.assert_allclose(np.asarray(out), np.asarray(ref_out), atol=2e-3, rtol=2e-3)
    np.testing.assert_allclose(np.asarray(hn), np.asarray(ref_hn), atol=2e-3, rtol=2e-3)
    np.testing.assert_allclose(np.asarray(cn), np.asarray(ref_cn), atol=2e-3, rtol=2e-3)


if __name__ == "__main__":
    B, T, E, H = 2, 8, 32, 32          # batch, max_len, embedding, hidden_size
    key = jax.random.PRNGKey(0)
    k1, k2, k3, k4, k5 = jax.random.split(key, 5)

    params = init_params(k4, E, H)
    h0 = jax.random.normal(k2, (2, B, H), jnp.float32)  # init_hidden() (num_layers, B, H)
    c0 = jax.random.normal(k3, (2, B, H), jnp.float32)

    # Test 1: single time chunk (T <= time_chunk).
    x = jax.random.normal(k1, (B, T, F_IN), jnp.float32)
    seq_len = jnp.array([8, 5], jnp.int32)               # variable-length sequences
    out, (hn, cn) = encoder_forward(x, seq_len, params, h0, c0)
    jax.block_until_ready((out, hn, cn))
    ref_out, ref_hn, ref_cn = reference_forward(x, seq_len, params, h0, c0)
    _check(out, hn, cn, ref_out, ref_hn, ref_cn)

    # Test 2: multiple time chunks, including fully-padded chunks (skip fast path).
    T2 = 40
    x2 = jax.random.normal(k5, (B, T2, F_IN), jnp.float32)
    seq_len2 = jnp.array([13, 5], jnp.int32)
    out2, (hn2, cn2) = encoder_forward(x2, seq_len2, params, h0, c0, time_chunk=8)
    jax.block_until_ready((out2, hn2, cn2))
    ref_out2, ref_hn2, ref_cn2 = reference_forward(x2, seq_len2, params, h0, c0)
    _check(out2, hn2, cn2, ref_out2, ref_hn2, ref_cn2)

    print("KERNEL_OK")
</pallas_src>

<mosaic_0001>
module attributes {stable_mosaic.version = 11 : i64} {
  func.func @encoder_kernel(%arg0: i32, %arg1: memref<1xi32, #tpu.memory_space<smem>>, %arg2: memref<2x1xi32, #tpu.memory_space<vmem>>, %arg3: memref<2x8x40xf32, #tpu.memory_space<vmem>>, %arg4: memref<2x2x32xf32, #tpu.memory_space<vmem>>, %arg5: memref<2x2x32xf32, #tpu.memory_space<vmem>>, %arg6: memref<40x128xf32, #tpu.memory_space<vmem>>, %arg7: memref<32x128xf32, #tpu.memory_space<vmem>>, %arg8: memref<1x128xf32, #tpu.memory_space<vmem>>, %arg9: memref<64x128xf32, #tpu.memory_space<vmem>>, %arg10: memref<1x128xf32, #tpu.memory_space<vmem>>, %arg11: memref<2x8x32xf32, #tpu.memory_space<vmem>>, %arg12: memref<2x2x32xf32, #tpu.memory_space<vmem>>, %arg13: memref<2x2x32xf32, #tpu.memory_space<vmem>>, %arg14: memref<2x32xf32, #tpu.memory_space<vmem>>, %arg15: memref<2x32xf32, #tpu.memory_space<vmem>>, %arg16: memref<2x32xf32, #tpu.memory_space<vmem>>, %arg17: memref<2x32xf32, #tpu.memory_space<vmem>>, %arg18: memref<2x8x128xf32, #tpu.memory_space<vmem>>) attributes {dimension_semantics = [#tpu.dimension_semantics<arbitrary>], iteration_bounds = array<i64: 1>, scalar_prefetch = 1 : i64, scratch_operands = 5 : i64, tpu.core_type = #tpu.core_type<tc>, window_params = [{pipeline_mode = #tpu.pipeline_mode<synchronous>, transform_indices = @transform_0, window_bounds = array<i64: 2, 1>}, {transform_indices = @transform_1, window_bounds = array<i64: 2, 8, 40>}, {pipeline_mode = #tpu.pipeline_mode<synchronous>, transform_indices = @transform_2, window_bounds = array<i64: 2, 2, 32>}, {pipeline_mode = #tpu.pipeline_mode<synchronous>, transform_indices = @transform_3, window_bounds = array<i64: 2, 2, 32>}, {pipeline_mode = #tpu.pipeline_mode<synchronous>, transform_indices = @transform_4, window_bounds = array<i64: 40, 128>}, {pipeline_mode = #tpu.pipeline_mode<synchronous>, transform_indices = @transform_5, window_bounds = array<i64: 32, 128>}, {pipeline_mode = #tpu.pipeline_mode<synchronous>, transform_indices = @transform_6, window_bounds = array<i64: 1, 128>}, {pipeline_mode = #tpu.pipeline_mode<synchronous>, transform_indices = @transform_7, window_bounds = array<i64: 64, 128>}, {pipeline_mode = #tpu.pipeline_mode<synchronous>, transform_indices = @transform_8, window_bounds = array<i64: 1, 128>}, {transform_indices = @transform_9, window_bounds = array<i64: 2, 8, 32>}, {pipeline_mode = #tpu.pipeline_mode<synchronous>, transform_indices = @transform_10, window_bounds = array<i64: 2, 2, 32>}, {pipeline_mode = #tpu.pipeline_mode<synchronous>, transform_indices = @transform_11, window_bounds = array<i64: 2, 2, 32>}]} {
    %c8_i32 = arith.constant 8 : i32
    %0 = arith.muli %arg0, %c8_i32 : i32
    %c0_i32 = arith.constant 0 : i32
    %1 = arith.cmpi eq, %arg0, %c0_i32 : i32
    %2 = arith.extui %1 : i1 to i32
    %c0_i32_0 = arith.constant 0 : i32
    %3 = arith.cmpi ne, %2, %c0_i32_0 : i32
    scf.if %3 {
      %c0_5 = arith.constant 0 : index
      %c0_6 = arith.constant 0 : index
      %c0_7 = arith.constant 0 : index
      %14 = vector.load %arg4[%c0_5, %c0_6, %c0_7] : memref<2x2x32xf32, #tpu.memory_space<vmem>>, vector<1x2x32xf32>
      %15 = vector.shape_cast %14 : vector<1x2x32xf32> to vector<2x32xf32>
      %c0_8 = arith.constant 0 : index
      %c0_9 = arith.constant 0 : index
      %16 = vector.load %arg14[%c0_8, %c0_9] : memref<2x32xf32, #tpu.memory_space<vmem>>, vector<2x32xf32>
      tpu.vector_store %arg14[%c0_8, %c0_9], %15 {strides = array<i32>} : memref<2x32xf32, #tpu.memory_space<vmem>>, vector<2x32xf32>,
      %c0_10 = arith.constant 0 : index
      %c0_11 = arith.constant 0 : index
      %c0_12 = arith.constant 0 : index
      %17 = vector.load %arg5[%c0_10, %c0_11, %c0_12] : memref<2x2x32xf32, #tpu.memory_space<vmem>>, vector<1x2x32xf32>
      %18 = vector.shape_cast %17 : vector<1x2x32xf32> to vector<2x32xf32>
      %c0_13 = arith.constant 0 : index
      %c0_14 = arith.constant 0 : index
      %19 = vector.load %arg15[%c0_13, %c0_14] : memref<2x32xf32, #tpu.memory_space<vmem>>, vector<2x32xf32>
      tpu.vector_store %arg15[%c0_13, %c0_14], %18 {strides = array<i32>} : memref<2x32xf32, #tpu.memory_space<vmem>>, vector<2x32xf32>,
      %c1 = arith.constant 1 : index
      %c0_15 = arith.constant 0 : index
      %c0_16 = arith.constant 0 : index
      %20 = vector.load %arg4[%c1, %c0_15, %c0_16] : memref<2x2x32xf32, #tpu.memory_space<vmem>>, vector<1x2x32xf32>
      %21 = vector.shape_cast %20 : vector<1x2x32xf32> to vector<2x32xf32>
      %c0_17 = arith.constant 0 : index
      %c0_18 = arith.constant 0 : index
      %22 = vector.load %arg16[%c0_17, %c0_18] : memref<2x32xf32, #tpu.memory_space<vmem>>, vector<2x32xf32>
      tpu.vector_store %arg16[%c0_17, %c0_18], %21 {strides = array<i32>} : memref<2x32xf32, #tpu.memory_space<vmem>>, vector<2x32xf32>,
      %c1_19 = arith.constant 1 : index
      %c0_20 = arith.constant 0 : index
      %c0_21 = arith.constant 0 : index
      %23 = vector.load %arg5[%c1_19, %c0_20, %c0_21] : memref<2x2x32xf32, #tpu.memory_space<vmem>>, vector<1x2x32xf32>
      %24 = vector.shape_cast %23 : vector<1x2x32xf32> to vector<2x32xf32>
      %c0_22 = arith.constant 0 : index
      %c0_23 = arith.constant 0 : index
      %25 = vector.load %arg17[%c0_22, %c0_23] : memref<2x32xf32, #tpu.memory_space<vmem>>, vector<2x32xf32>
      tpu.vector_store %arg17[%c0_22, %c0_23], %24 {strides = array<i32>} : memref<2x32xf32, #tpu.memory_space<vmem>>, vector<2x32xf32>,
    } else {
    }
    %c0 = arith.constant 0 : index
    %4 = memref.load %arg1[%c0] : memref<1xi32, #tpu.memory_space<smem>>
    %5 = arith.cmpi slt, %0, %4 : i32
    %6 = arith.extui %5 : i1 to i32
    %c0_i32_1 = arith.constant 0 : i32
    %7 = arith.cmpi ne, %6, %c0_i32_1 : i32
    scf.if %7 {
      %c0_5 = arith.constant 0 : index
      %c0_6 = arith.constant 0 : index
      %c0_7 = arith.constant 0 : index
      %14 = vector.load %arg3[%c0_5, %c0_6, %c0_7] : memref<2x8x40xf32, #tpu.memory_space<vmem>>, vector<2x8x40xf32>
      %15 = vector.shape_cast %14 : vector<2x8x40xf32> to vector<16x40xf32>
      %c0_8 = arith.constant 0 : index
      %c0_9 = arith.constant 0 : index
      %16 = vector.load %arg6[%c0_8, %c0_9] : memref<40x128xf32, #tpu.memory_space<vmem>>, vector<40x128xf32>
      %cst = arith.constant dense<0.000000e+00> : vector<16x128xf32>
      %17 = tpu.matmul %15, %16, %cst {dimension_numbers = #tpu.dot_dimension_numbers<[1], [0], [0], [1], [0, 0, 1, 1], [], []>} : vector<16x40xf32>, vector<40x128xf32>, vector<16x128xf32> -> vector<16x128xf32>
      %c0_10 = arith.constant 0 : index
      %c0_11 = arith.constant 0 : index
      %18 = vector.load %arg8[%c0_10, %c0_11] : memref<1x128xf32, #tpu.memory_space<vmem>>, vector<1x128xf32>
      %19 = vector.broadcast %18 : vector<1x128xf32> to vector<16x128xf32>
      %20 = arith.addf %17, %19 : vector<16x128xf32>
      %21 = vector.shape_cast %20 : vector<16x128xf32> to vector<2x8x128xf32>
      %c0_12 = arith.constant 0 : index
      %c0_13 = arith.constant 0 : index
      %c0_14 = arith.constant 0 : index
      %22 = vector.load %arg18[%c0_12, %c0_13, %c0_14] : memref<2x8x128xf32, #tpu.memory_space<vmem>>, vector<2x8x128xf32>
      tpu.vector_store %arg18[%c0_12, %c0_13, %c0_14], %21 {strides = array<i32>} : memref<2x8x128xf32, #tpu.memory_space<vmem>>, vector<2x8x128xf32>,
      %c0_15 = arith.constant 0 : index
      %c0_16 = arith.constant 0 : index
      %23 = vector.load %arg2[%c0_15, %c0_16] : memref<2x1xi32, #tpu.memory_space<vmem>>, vector<2x1xi32>
      %c0_17 = arith.constant 0 : index
      %c0_18 = arith.constant 0 : index
      %24 = vector.load %arg14[%c0_17, %c0_18] : memref<2x32xf32, #tpu.memory_space<vmem>>, vector<2x32xf32>
      %c0_19 = arith.constant 0 : index
      %c0_20 = arith.constant 0 : index
      %25 = vector.load %arg15[%c0_19, %c0_20] : memref<2x32xf32, #tpu.memory_space<vmem>>, vector<2x32xf32>
      %c0_21 = arith.constant 0 : index
      %c0_22 = arith.constant 0 : index
      %26 = vector.load %arg16[%c0_21, %c0_22] : memref<2x32xf32, #tpu.memory_space<vmem>>, vector<2x32xf32>
      %c0_23 = arith.constant 0 : index
      %c0_24 = arith.constant 0 : index
      %27 = vector.load %arg17[%c0_23, %c0_24] : memref<2x32xf32, #tpu.memory_space<vmem>>, vector<2x32xf32>
      %c0_i32_25 = arith.constant 0 : i32
      %28 = arith.addi %0, %c0_i32_25 : i32
      %29 = vector.broadcast %28 : i32 to vector<2x1xi32>
      %30 = arith.cmpi slt, %29, %23 : vector<2x1xi32>
      %c0_26 = arith.constant 0 : index
      %31 = arith.index_cast %c0_i32_25 : i32 to index
      %c0_27 = arith.constant 0 : index
      %32 = vector.load %arg18[%c0_26, %31, %c0_27] : memref<2x8x128xf32, #tpu.memory_space<vmem>>, vector<2x1x128xf32>
      %33 = vector.shape_cast %32 : vector<2x1x128xf32> to vector<2x128xf32>
      %c0_28 = arith.constant 0 : index
      %c0_29 = arith.constant 0 : index
      %34 = vector.load %arg7[%c0_28, %c0_29] : memref<32x128xf32, #tpu.memory_space<vmem>>, vector<32x128xf32>
      %cst_30 = arith.constant dense<0.000000e+00> : vector<2x128xf32>
      %35 = tpu.matmul %24, %34, %cst_30 {dimension_numbers = #tpu.dot_dimension_numbers<[1], [0], [0], [1], [0, 0, 1, 1], [], []>} : vector<2x32xf32>, vector<32x128xf32>, vector<2x128xf32> -> vector<2x128xf32>
      %36 = arith.addf %33, %35 : vector<2x128xf32>
      %37 = arith.negf %36 : vector<2x128xf32>
      %38 = math.exp %37 : vector<2x128xf32>
      %cst_31 = arith.constant 1.000000e+00 : f32
      %39 = vector.broadcast %cst_31 : f32 to vector<2x128xf32>
      %40 = arith.addf %39, %38 : vector<2x128xf32>
      %41 = arith.divf %39, %40 : vector<2x128xf32>
      %42 = math.tanh %36 : vector<2x128xf32>
      %43 = vector.extract_strided_slice %41 {offsets = [0, 0], sizes = [2, 32], strides = [1, 1]} : vector<2x128xf32> to vector<2x32xf32>
      %44 = vector.extract_strided_slice %41 {offsets = [0, 32], sizes = [2, 32], strides = [1, 1]} : vector<2x128xf32> to vector<2x32xf32>
      %45 = vector.extract_strided_slice %42 {offsets = [0, 64], sizes = [2, 32], strides = [1, 1]} : vector<2x128xf32> to vector<2x32xf32>
      %46 = vector.extract_strided_slice %41 {offsets = [0, 96], sizes = [2, 32], strides = [1, 1]} : vector<2x128xf32> to vector<2x32xf32>
      %47 = arith.mulf %44, %25 : vector<2x32xf32>
      %48 = arith.mulf %43, %45 : vector<2x32xf32>
      %49 = arith.addf %47, %48 : vector<2x32xf32>
      %50 = math.tanh %49 : vector<2x32xf32>
      %51 = arith.mulf %46, %50 : vector<2x32xf32>
      %52 = vector.shape_cast %30 : vector<2x1xi1> to vector<2x1xi1>
      %53 = vector.broadcast %52 : vector<2x1xi1> to vector<2x32xi1>
      %54 = arith.select %53, %51, %24 : vector<2x32xi1>, vector<2x32xf32>
      %55 = vector.shape_cast %30 : vector<2x1xi1> to vector<2x1xi1>
      %56 = vector.broadcast %55 : vector<2x1xi1> to vector<2x32xi1>
      %57 = arith.select %56, %49, %25 : vector<2x32xi1>, vector<2x32xf32>
      %58 = tpu.concatenate %54, %26 in 1 : vector<2x32xf32>, vector<2x32xf32> -> vector<2x64xf32>
      %c0_32 = arith.constant 0 : index
      %c0_33 = arith.constant 0 : index
      %59 = vector.load %arg9[%c0_32, %c0_33] : memref<64x128xf32, #tpu.memory_space<vmem>>, vector<64x128xf32>
      %cst_34 = arith.constant dense<0.000000e+00> : vector<2x128xf32>
      %60 = tpu.matmul %58, %59, %cst_34 {dimension_numbers = #tpu.dot_dimension_numbers<[1], [0], [0], [1], [0, 0, 1, 1], [], []>} : vector<2x64xf32>, vector<64x128xf32>, vector<2x128xf32> -> vector<2x128xf32>
      %c0_35 = arith.constant 0 : index
      %c0_36 = arith.constant 0 : index
      %61 = vector.load %arg10[%c0_35, %c0_36] : memref<1x128xf32, #tpu.memory_space<vmem>>, vector<1x128xf32>
      %62 = vector.broadcast %61 : vector<1x128xf32> to vector<2x128xf32>
      %63 = arith.addf %60, %62 : vector<2x128xf32>
      %64 = arith.negf %63 : vector<2x128xf32>
      %65 = math.exp %64 : vector<2x128xf32>
      %cst_37 = arith.constant 1.000000e+00 : f32
      %66 = vector.broadcast %cst_37 : f32 to vector<2x128xf32>
      %67 = arith.addf %66, %65 : vector<2x128xf32>
      %68 = arith.divf %66, %67 : vector<2x128xf32>
      %69 = math.tanh %63 : vector<2x128xf32>
      %70 = vector.extract_strided_slice %68 {offsets = [0, 0], sizes = [2, 32], strides = [1, 1]} : vector<2x128xf32> to vector<2x32xf32>
      %71 = vector.extract_strided_slice %68 {offsets = [0, 32], sizes = [2, 32], strides = [1, 1]} : vector<2x128xf32> to vector<2x32xf32>
      %72 = vector.extract_strided_slice %69 {offsets = [0, 64], sizes = [2, 32], strides = [1, 1]} : vector<2x128xf32> to vector<2x32xf32>
      %73 = vector.extract_strided_slice %68 {offsets = [0, 96], sizes = [2, 32], strides = [1, 1]} : vector<2x128xf32> to vector<2x32xf32>
      %74 = arith.mulf %71, %27 : vector<2x32xf32>
      %75 = arith.mulf %70, %72 : vector<2x32xf32>
      %76 = arith.addf %74, %75 : vector<2x32xf32>
      %77 = math.tanh %76 : vector<2x32xf32>
      %78 = arith.mulf %73, %77 : vector<2x32xf32>
      %79 = vector.shape_cast %30 : vector<2x1xi1> to vector<2x1xi1>
      %80 = vector.broadcast %79 : vector<2x1xi1> to vector<2x32xi1>
      %81 = arith.select %80, %78, %26 : vector<2x32xi1>, vector<2x32xf32>
      %82 = vector.shape_cast %30 : vector<2x1xi1> to vector<2x1xi1>
      %83 = vector.broadcast %82 : vector<2x1xi1> to vector<2x32xi1>
      %84 = arith.select %83, %76, %27 : vector<2x32xi1>, vector<2x32xf32>
      %cst_38 = arith.constant -1.000000e+00 : f32
      %85 = vector.shape_cast %30 : vector<2x1xi1> to vector<2x1xi1>
      %86 = vector.broadcast %85 : vector<2x1xi1> to vector<2x32xi1>
      %87 = vector.broadcast %cst_38 : f32 to vector<2x32xf32>
      %88 = arith.select %86, %81, %87 : vector<2x32xi1>, vector<2x32xf32>
      %89 = vector.shape_cast %88 : vector<2x32xf32> to vector<2x1x32xf32>
      %c0_39 = arith.constant 0 : index
      %90 = arith.index_cast %c0_i32_25 : i32 to index
      %c0_40 = arith.constant 0 : index
      %91 = vector.load %arg11[%c0_39, %90, %c0_40] : memref<2x8x32xf32, #tpu.memory_space<vmem>>, vector<2x1x32xf32>
      tpu.vector_store %arg11[%c0_39, %90, %c0_40], %89 {strides = array<i32>} : memref<2x8x32xf32, #tpu.memory_space<vmem>>, vector<2x1x32xf32>,
      %c1_i32 = arith.constant 1 : i32
      %92 = arith.addi %0, %c1_i32 : i32
      %93 = vector.broadcast %92 : i32 to vector<2x1xi32>
      %94 = arith.cmpi slt, %93, %23 : vector<2x1xi32>
      %c0_41 = arith.constant 0 : index
      %95 = arith.index_cast %c1_i32 : i32 to index
      %c0_42 = arith.constant 0 : index
      %96 = vector.load %arg18[%c0_41, %95, %c0_42] : memref<2x8x128xf32, #tpu.memory_space<vmem>>, vector<2x1x128xf32>
      %97 = vector.shape_cast %96 : vector<2x1x128xf32> to vector<2x128xf32>
      %c0_43 = arith.constant 0 : index
      %c0_44 = arith.constant 0 : index
      %98 = vector.load %arg7[%c0_43, %c0_44] : memref<32x128xf32, #tpu.memory_space<vmem>>, vector<32x128xf32>
      %cst_45 = arith.constant dense<0.000000e+00> : vector<2x128xf32>
      %99 = tpu.matmul %54, %98, %cst_45 {dimension_numbers = #tpu.dot_dimension_numbers<[1], [0], [0], [1], [0, 0, 1, 1], [], []>} : vector<2x32xf32>, vector<32x128xf32>, vector<2x128xf32> -> vector<2x128xf32>
      %100 = arith.addf %97, %99 : vector<2x128xf32>
      %101 = arith.negf %100 : vector<2x128xf32>
      %102 = math.exp %101 : vector<2x128xf32>
      %cst_46 = arith.constant 1.000000e+00 : f32
      %103 = vector.broadcast %cst_46 : f32 to vector<2x128xf32>
      %104 = arith.addf %103, %102 : vector<2x128xf32>
      %105 = arith.divf %103, %104 : vector<2x128xf32>
      %106 = math.tanh %100 : vector<2x128xf32>
      %107 = vector.extract_strided_slice %105 {offsets = [0, 0], sizes = [2, 32], strides = [1, 1]} : vector<2x128xf32> to vector<2x32xf32>
      %108 = vector.extract_strided_slice %105 {offsets = [0, 32], sizes = [2, 32], strides = [1, 1]} : vector<2x128xf32> to vector<2x32xf32>
      %109 = vector.extract_strided_slice %106 {offsets = [0, 64], sizes = [2, 32], strides = [1, 1]} : vector<2x128xf32> to vector<2x32xf32>
      %110 = vector.extract_strided_slice %105 {offsets = [0, 96], sizes = [2, 32], strides = [1, 1]} : vector<2x128xf32> to vector<2x32xf32>
      %111 = arith.mulf %108, %57 : vector<2x32xf32>
      %112 = arith.mulf %107, %109 : vector<2x32xf32>
      %113 = arith.addf %111, %112 : vector<2x32xf32>
      %114 = math.tanh %113 : vector<2x32xf32>
      %115 = arith.mulf %110, %114 : vector<2x32xf32>
      %116 = vector.shape_cast %94 : vector<2x1xi1> to vector<2x1xi1>
      %117 = vector.broadcast %116 : vector<2x1xi1> to vector<2x32xi1>
      %118 = arith.select %117, %115, %54 : vector<2x32xi1>, vector<2x32xf32>
      %119 = vector.shape_cast %94 : vector<2x1xi1> to vector<2x1xi1>
      %120 = vector.broadcast %119 : vector<2x1xi1> to vector<2x32xi1>
      %121 = arith.select %120, %113, %57 : vector<2x32xi1>, vector<2x32xf32>
      %122 = tpu.concatenate %118, %81 in 1 : vector<2x32xf32>, vector<2x32xf32> -> vector<2x64xf32>
      %c0_47 = arith.constant 0 : index
      %c0_48 = arith.constant 0 : index
      %123 = vector.load %arg9[%c0_47, %c0_48] : memref<64x128xf32, #tpu.memory_space<vmem>>, vector<64x128xf32>
      %cst_49 = arith.constant dense<0.000000e+00> : vector<2x128xf32>
      %124 = tpu.matmul %122, %123, %cst_49 {dimension_numbers = #tpu.dot_dimension_numbers<[1], [0], [0], [1], [0, 0, 1, 1], [], []>} : vector<2x64xf32>, vector<64x128xf32>, vector<2x128xf32> -> vector<2x128xf32>
      %c0_50 = arith.constant 0 : index
      %c0_51 = arith.constant 0 : index
      %125 = vector.load %arg10[%c0_50, %c0_51] : memref<1x128xf32, #tpu.memory_space<vmem>>, vector<1x128xf32>
      %126 = vector.broadcast %125 : vector<1x128xf32> to vector<2x128xf32>
      %127 = arith.addf %124, %126 : vector<2x128xf32>
      %128 = arith.negf %127 : vector<2x128xf32>
      %129 = math.exp %128 : vector<2x128xf32>
      %cst_52 = arith.constant 1.000000e+00 : f32
      %130 = vector.broadcast %cst_52 : f32 to vector<2x128xf32>
      %131 = arith.addf %130, %129 : vector<2x128xf32>
      %132 = arith.divf %130, %131 : vector<2x128xf32>
      %133 = math.tanh %127 : vector<2x128xf32>
      %134 = vector.extract_strided_slice %132 {offsets = [0, 0], sizes = [2, 32], strides = [1, 1]} : vector<2x128xf32> to vector<2x32xf32>
      %135 = vector.extract_strided_slice %132 {offsets = [0, 32], sizes = [2, 32], strides = [1, 1]} : vector<2x128xf32> to vector<2x32xf32>
      %136 = vector.extract_strided_slice %133 {offsets = [0, 64], sizes = [2, 32], strides = [1, 1]} : vector<2x128xf32> to vector<2x32xf32>
      %137 = vector.extract_strided_slice %132 {offsets = [0, 96], sizes = [2, 32], strides = [1, 1]} : vector<2x128xf32> to vector<2x32xf32>
      %138 = arith.mulf %135, %84 : vector<2x32xf32>
      %139 = arith.mulf %134, %136 : vector<2x32xf32>
      %140 = arith.addf %138, %139 : vector<2x32xf32>
      %141 = math.tanh %140 : vector<2x32xf32>
      %142 = arith.mulf %137, %141 : vector<2x32xf32>
      %143 = vector.shape_cast %94 : vector<2x1xi1> to vector<2x1xi1>
      %144 = vector.broadcast %143 : vector<2x1xi1> to vector<2x32xi1>
      %145 = arith.select %144, %142, %81 : vector<2x32xi1>, vector<2x32xf32>
      %146 = vector.shape_cast %94 : vector<2x1xi1> to vector<2x1xi1>
      %147 = vector.broadcast %146 : vector<2x1xi1> to vector<2x32xi1>
      %148 = arith.select %147, %140, %84 : vector<2x32xi1>, vector<2x32xf32>
      %cst_53 = arith.constant -1.000000e+00 : f32
      %149 = vector.shape_cast %94 : vector<2x1xi1> to vector<2x1xi1>
      %150 = vector.broadcast %149 : vector<2x1xi1> to vector<2x32xi1>
      %151 = vector.broadcast %cst_53 : f32 to vector<2x32xf32>
      %152 = arith.select %150, %145, %151 : vector<2x32xi1>, vector<2x32xf32>
      %153 = vector.shape_cast %152 : vector<2x32xf32> to vector<2x1x32xf32>
      %c0_54 = arith.constant 0 : index
      %154 = arith.index_cast %c1_i32 : i32 to index
      %c0_55 = arith.constant 0 : index
      %155 = vector.load %arg11[%c0_54, %154, %c0_55] : memref<2x8x32xf32, #tpu.memory_space<vmem>>, vector<2x1x32xf32>
      tpu.vector_store %arg11[%c0_54, %154, %c0_55], %153 {strides = array<i32>} : memref<2x8x32xf32, #tpu.memory_space<vmem>>, vector<2x1x32xf32>,
      %c2_i32 = arith.constant 2 : i32
      %156 = arith.addi %0, %c2_i32 : i32
      %157 = vector.broadcast %156 : i32 to vector<2x1xi32>
      %158 = arith.cmpi slt, %157, %23 : vector<2x1xi32>
      %c0_56 = arith.constant 0 : index
      %159 = arith.index_cast %c2_i32 : i32 to index
      %c0_57 = arith.constant 0 : index
      %160 = vector.load %arg18[%c0_56, %159, %c0_57] : memref<2x8x128xf32, #tpu.memory_space<vmem>>, vector<2x1x128xf32>
      %161 = vector.shape_cast %160 : vector<2x1x128xf32> to vector<2x128xf32>
      %c0_58 = arith.constant 0 : index
      %c0_59 = arith.constant 0 : index
      %162 = vector.load %arg7[%c0_58, %c0_59] : memref<32x128xf32, #tpu.memory_space<vmem>>, vector<32x128xf32>
      %cst_60 = arith.constant dense<0.000000e+00> : vector<2x128xf32>
      %163 = tpu.matmul %118, %162, %cst_60 {dimension_numbers = #tpu.dot_dimension_numbers<[1], [0], [0], [1], [0, 0, 1, 1], [], []>} : vector<2x32xf32>, vector<32x128xf32>, vector<2x128xf32> -> vector<2x128xf32>
      %164 = arith.addf %161, %163 : vector<2x128xf32>
      %165 = arith.negf %164 : vector<2x128xf32>
      %166 = math.exp %165 : vector<2x128xf32>
      %cst_61 = arith.constant 1.000000e+00 : f32
      %167 = vector.broadcast %cst_61 : f32 to vector<2x128xf32>
      %168 = arith.addf %167, %166 : vector<2x128xf32>
      %169 = arith.divf %167, %168 : vector<2x128xf32>
      %170 = math.tanh %164 : vector<2x128xf32>
      %171 = vector.extract_strided_slice %169 {offsets = [0, 0], sizes = [2, 32], strides = [1, 1]} : vector<2x128xf32> to vector<2x32xf32>
      %172 = vector.extract_strided_slice %169 {offsets = [0, 32], sizes = [2, 32], strides = [1, 1]} : vector<2x128xf32> to vector<2x32xf32>
      %173 = vector.extract_strided_slice %170 {offsets = [0, 64], sizes = [2, 32], strides = [1, 1]} : vector<2x128xf32> to vector<2x32xf32>
      %174 = vector.extract_strided_slice %169 {offsets = [0, 96], sizes = [2, 32], strides = [1, 1]} : vector<2x128xf32> to vector<2x32xf32>
      %175 = arith.mulf %172, %121 : vector<2x32xf32>
      %176 = arith.mulf %171, %173 : vector<2x32xf32>
      %177 = arith.addf %175, %176 : vector<2x32xf32>
      %178 = math.tanh %177 : vector<2x32xf32>
      %179 = arith.mulf %174, %178 : vector<2x32xf32>
      %180 = vector.shape_cast %158 : vector<2x1xi1> to vector<2x1xi1>
      %181 = vector.broadcast %180 : vector<2x1xi1> to vector<2x32xi1>
      %182 = arith.select %181, %179, %118 : vector<2x32xi1>, vector<2x32xf32>
      %183 = vector.shape_cast %158 : vector<2x1xi1> to vector<2x1xi1>
      %184 = vector.broadcast %183 : vector<2x1xi1> to vector<2x32xi1>
      %185 = arith.select %184, %177, %121 : vector<2x32xi1>, vector<2x32xf32>
      %186 = tpu.concatenate %182, %145 in 1 : vector<2x32xf32>, vector<2x32xf32> -> vector<2x64xf32>
      %c0_62 = arith.constant 0 : index
      %c0_63 = arith.constant 0 : index
      %187 = vector.load %arg9[%c0_62, %c0_63] : memref<64x128xf32, #tpu.memory_space<vmem>>, vector<64x128xf32>
      %cst_64 = arith.constant dense<0.000000e+00> : vector<2x128xf32>
      %188 = tpu.matmul %186, %187, %cst_64 {dimension_numbers = #tpu.dot_dimension_numbers<[1], [0], [0], [1], [0, 0, 1, 1], [], []>} : vector<2x64xf32>, vector<64x128xf32>, vector<2x128xf32> -> vector<2x128xf32>
      %c0_65 = arith.constant 0 : index
      %c0_66 = arith.constant 0 : index
      %189 = vector.load %arg10[%c0_65, %c0_66] : memref<1x128xf32, #tpu.memory_space<vmem>>, vector<1x128xf32>
      %190 = vector.broadcast %189 : vector<1x128xf32> to vector<2x128xf32>
      %191 = arith.addf %188, %190 : vector<2x128xf32>
      %192 = arith.negf %191 : vector<2x128xf32>
      %193 = math.exp %192 : vector<2x128xf32>
      %cst_67 = arith.constant 1.000000e+00 : f32
      %194 = vector.broadcast %cst_67 : f32 to vector<2x128xf32>
      %195 = arith.addf %194, %193 : vector<2x128xf32>
      %196 = arith.divf %194, %195 : vector<2x128xf32>
      %197 = math.tanh %191 : vector<2x128xf32>
      %198 = vector.extract_strided_slice %196 {offsets = [0, 0], sizes = [2, 32], strides = [1, 1]} : vector<2x128xf32> to vector<2x32xf32>
      %199 = vector.extract_strided_slice %196 {offsets = [0, 32], sizes = [2, 32], strides = [1, 1]} : vector<2x128xf32> to vector<2x32xf32>
      %200 = vector.extract_strided_slice %197 {offsets = [0, 64], sizes = [2, 32], strides = [1, 1]} : vector<2x128xf32> to vector<2x32xf32>
      %201 = vector.extract_strided_slice %196 {offsets = [0, 96], sizes = [2, 32], strides = [1, 1]} : vector<2x128xf32> to vector<2x32xf32>
      %202 = arith.mulf %199, %148 : vector<2x32xf32>
      %203 = arith.mulf %198, %200 : vector<2x32xf32>
      %204 = arith.addf %202, %203 : vector<2x32xf32>
      %205 = math.tanh %204 : vector<2x32xf32>
      %206 = arith.mulf %201, %205 : vector<2x32xf32>
      %207 = vector.shape_cast %158 : vector<2x1xi1> to vector<2x1xi1>
      %208 = vector.broadcast %207 : vector<2x1xi1> to vector<2x32xi1>
      %209 = arith.select %208, %206, %145 : vector<2x32xi1>, vector<2x32xf32>
      %210 = vector.shape_cast %158 : vector<2x1xi1> to vector<2x1xi1>
      %211 = vector.broadcast %210 : vector<2x1xi1> to vector<2x32xi1>
      %212 = arith.select %211, %204, %148 : vector<2x32xi1>, vector<2x32xf32>
      %cst_68 = arith.constant -1.000000e+00 : f32
      %213 = vector.shape_cast %158 : vector<2x1xi1> to vector<2x1xi1>
      %214 = vector.broadcast %213 : vector<2x1xi1> to vector<2x32xi1>
      %215 = vector.broadcast %cst_68 : f32 to vector<2x32xf32>
      %216 = arith.select %214, %209, %215 : vector<2x32xi1>, vector<2x32xf32>
      %217 = vector.shape_cast %216 : vector<2x32xf32> to vector<2x1x32xf32>
      %c0_69 = arith.constant 0 : index
      %218 = arith.index_cast %c2_i32 : i32 to index
      %c0_70 = arith.constant 0 : index
      %219 = vector.load %arg11[%c0_69, %218, %c0_70] : memref<2x8x32xf32, #tpu.memory_space<vmem>>, vector<2x1x32xf32>
      tpu.vector_store %arg11[%c0_69, %218, %c0_70], %217 {strides = array<i32>} : memref<2x8x32xf32, #tpu.memory_space<vmem>>, vector<2x1x32xf32>,
      %c3_i32 = arith.constant 3 : i32
      %220 = arith.addi %0, %c3_i32 : i32
      %221 = vector.broadcast %220 : i32 to vector<2x1xi32>
      %222 = arith.cmpi slt, %221, %23 : vector<2x1xi32>
      %c0_71 = arith.constant 0 : index
      %223 = arith.index_cast %c3_i32 : i32 to index
      %c0_72 = arith.constant 0 : index
      %224 = vector.load %arg18[%c0_71, %223, %c0_72] : memref<2x8x128xf32, #tpu.memory_space<vmem>>, vector<2x1x128xf32>
      %225 = vector.shape_cast %224 : vector<2x1x128xf32> to vector<2x128xf32>
      %c0_73 = arith.constant 0 : index
      %c0_74 = arith.constant 0 : index
      %226 = vector.load %arg7[%c0_73, %c0_74] : memref<32x128xf32, #tpu.memory_space<vmem>>, vector<32x128xf32>
      %cst_75 = arith.constant dense<0.000000e+00> : vector<2x128xf32>
      %227 = tpu.matmul %182, %226, %cst_75 {dimension_numbers = #tpu.dot_dimension_numbers<[1], [0], [0], [1], [0, 0, 1, 1], [], []>} : vector<2x32xf32>, vector<32x128xf32>, vector<2x128xf32> -> vector<2x128xf32>
      %228 = arith.addf %225, %227 : vector<2x128xf32>
      %229 = arith.negf %228 : vector<2x128xf32>
      %230 = math.exp %229 : vector<2x128xf32>
      %cst_76 = arith.constant 1.000000e+00 : f32
      %231 = vector.broadcast %cst_76 : f32 to vector<2x128xf32>
      %232 = arith.addf %231, %230 : vector<2x128xf32>
      %233 = arith.divf %231, %232 : vector<2x128xf32>
      %234 = math.tanh %228 : vector<2x128xf32>
      %235 = vector.extract_strided_slice %233 {offsets = [0, 0], sizes = [2, 32], strides = [1, 1]} : vector<2x128xf32> to vector<2x32xf32>
      %236 = vector.extract_strided_slice %233 {offsets = [0, 32], sizes = [2, 32], strides = [1, 1]} : vector<2x128xf32> to vector<2x32xf32>
      %237 = vector.extract_strided_slice %234 {offsets = [0, 64], sizes = [2, 32], strides = [1, 1]} : vector<2x128xf32> to vector<2x32xf32>
      %238 = vector.extract_strided_slice %233 {offsets = [0, 96], sizes = [2, 32], strides = [1, 1]} : vector<2x128xf32> to vector<2x32xf32>
      %239 = arith.mulf %236, %185 : vector<2x32xf32>
      %240 = arith.mulf %235, %237 : vector<2x32xf32>
      %241 = arith.addf %239, %240 : vector<2x32xf32>
      %242 = math.tanh %241 : vector<2x32xf32>
      %243 = arith.mulf %238, %242 : vector<2x32xf32>
      %244 = vector.shape_cast %222 : vector<2x1xi1> to vector<2x1xi1>
      %245 = vector.broadcast %244 : vector<2x1xi1> to vector<2x32xi1>
      %246 = arith.select %245, %243, %182 : vector<2x32xi1>, vector<2x32xf32>
      %247 = vector.shape_cast %222 : vector<2x1xi1> to vector<2x1xi1>
      %248 = vector.broadcast %247 : vector<2x1xi1> to vector<2x32xi1>
      %249 = arith.select %248, %241, %185 : vector<2x32xi1>, vector<2x32xf32>
      %250 = tpu.concatenate %246, %209 in 1 : vector<2x32xf32>, vector<2x32xf32> -> vector<2x64xf32>
      %c0_77 = arith.constant 0 : index
      %c0_78 = arith.constant 0 : index
      %251 = vector.load %arg9[%c0_77, %c0_78] : memref<64x128xf32, #tpu.memory_space<vmem>>, vector<64x128xf32>
      %cst_79 = arith.constant dense<0.000000e+00> : vector<2x128xf32>
      %252 = tpu.matmul %250, %251, %cst_79 {dimension_numbers = #tpu.dot_dimension_numbers<[1], [0], [0], [1], [0, 0, 1, 1], [], []>} : vector<2x64xf32>, vector<64x128xf32>, vector<2x128xf32> -> vector<2x128xf32>
      %c0_80 = arith.constant 0 : index
      %c0_81 = arith.constant 0 : index
      %253 = vector.load %arg10[%c0_80, %c0_81] : memref<1x128xf32, #tpu.memory_space<vmem>>, vector<1x128xf32>
      %254 = vector.broadcast %253 : vector<1x128xf32> to vector<2x128xf32>
      %255 = arith.addf %252, %254 : vector<2x128xf32>
      %256 = arith.negf %255 : vector<2x128xf32>
      %257 = math.exp %256 : vector<2x128xf32>
      %cst_82 = arith.constant 1.000000e+00 : f32
      %258 = vector.broadcast %cst_82 : f32 to vector<2x128xf32>
      %259 = arith.addf %258, %257 : vector<2x128xf32>
      %260 = arith.divf %258, %259 : vector<2x128xf32>
      %261 = math.tanh %255 : vector<2x128xf32>
      %262 = vector.extract_strided_slice %260 {offsets = [0, 0], sizes = [2, 32], strides = [1, 1]} : vector<2x128xf32> to vector<2x32xf32>
      %263 = vector.extract_strided_slice %260 {offsets = [0, 32], sizes = [2, 32], strides = [1, 1]} : vector<2x128xf32> to vector<2x32xf32>
      %264 = vector.extract_strided_slice %261 {offsets = [0, 64], sizes = [2, 32], strides = [1, 1]} : vector<2x128xf32> to vector<2x32xf32>
      %265 = vector.extract_strided_slice %260 {offsets = [0, 96], sizes = [2, 32], strides = [1, 1]} : vector<2x128xf32> to vector<2x32xf32>
      %266 = arith.mulf %263, %212 : vector<2x32xf32>
      %267 = arith.mulf %262, %264 : vector<2x32xf32>
      %268 = arith.addf %266, %267 : vector<2x32xf32>
      %269 = math.tanh %268 : vector<2x32xf32>
      %270 = arith.mulf %265, %269 : vector<2x32xf32>
      %271 = vector.shape_cast %222 : vector<2x1xi1> to vector<2x1xi1>
      %272 = vector.broadcast %271 : vector<2x1xi1> to vector<2x32xi1>
      %273 = arith.select %272, %270, %209 : vector<2x32xi1>, vector<2x32xf32>
      %274 = vector.shape_cast %222 : vector<2x1xi1> to vector<2x1xi1>
      %275 = vector.broadcast %274 : vector<2x1xi1> to vector<2x32xi1>
      %276 = arith.select %275, %268, %212 : vector<2x32xi1>, vector<2x32xf32>
      %cst_83 = arith.constant -1.000000e+00 : f32
      %277 = vector.shape_cast %222 : vector<2x1xi1> to vector<2x1xi1>
      %278 = vector.broadcast %277 : vector<2x1xi1> to vector<2x32xi1>
      %279 = vector.broadcast %cst_83 : f32 to vector<2x32xf32>
      %280 = arith.select %278, %273, %279 : vector<2x32xi1>, vector<2x32xf32>
      %281 = vector.shape_cast %280 : vector<2x32xf32> to vector<2x1x32xf32>
      %c0_84 = arith.constant 0 : index
      %282 = arith.index_cast %c3_i32 : i32 to index
      %c0_85 = arith.constant 0 : index
      %283 = vector.load %arg11[%c0_84, %282, %c0_85] : memref<2x8x32xf32, #tpu.memory_space<vmem>>, vector<2x1x32xf32>
      tpu.vector_store %arg11[%c0_84, %282, %c0_85], %281 {strides = array<i32>} : memref<2x8x32xf32, #tpu.memory_space<vmem>>, vector<2x1x32xf32>,
      %c4_i32 = arith.constant 4 : i32
      %284 = arith.addi %0, %c4_i32 : i32
      %285 = vector.broadcast %284 : i32 to vector<2x1xi32>
      %286 = arith.cmpi slt, %285, %23 : vector<2x1xi32>
      %c0_86 = arith.constant 0 : index
      %287 = arith.index_cast %c4_i32 : i32 to index
      %c0_87 = arith.constant 0 : index
      %288 = vector.load %arg18[%c0_86, %287, %c0_87] : memref<2x8x128xf32, #tpu.memory_space<vmem>>, vector<2x1x128xf32>
      %289 = vector.shape_cast %288 : vector<2x1x128xf32> to vector<2x128xf32>
      %c0_88 = arith.constant 0 : index
      %c0_89 = arith.constant 0 : index
      %290 = vector.load %arg7[%c0_88, %c0_89] : memref<32x128xf32, #tpu.memory_space<vmem>>, vector<32x128xf32>
      %cst_90 = arith.constant dense<0.000000e+00> : vector<2x128xf32>
      %291 = tpu.matmul %246, %290, %cst_90 {dimension_numbers = #tpu.dot_dimension_numbers<[1], [0], [0], [1], [0, 0, 1, 1], [], []>} : vector<2x32xf32>, vector<32x128xf32>, vector<2x128xf32> -> vector<2x128xf32>
      %292 = arith.addf %289, %291 : vector<2x128xf32>
      %293 = arith.negf %292 : vector<2x128xf32>
      %294 = math.exp %293 : vector<2x128xf32>
      %cst_91 = arith.constant 1.000000e+00 : f32
      %295 = vector.broadcast %cst_91 : f32 to vector<2x128xf32>
      %296 = arith.addf %295, %294 : vector<2x128xf32>
      %297 = arith.divf %295, %296 : vector<2x128xf32>
      %298 = math.tanh %292 : vector<2x128xf32>
      %299 = vector.extract_strided_slice %297 {offsets = [0, 0], sizes = [2, 32], strides = [1, 1]} : vector<2x128xf32> to vector<2x32xf32>
      %300 = vector.extract_strided_slice %297 {offsets = [0, 32], sizes = [2, 32], strides = [1, 1]} : vector<2x128xf32> to vector<2x32xf32>
      %301 = vector.extract_strided_slice %298 {offsets = [0, 64], sizes = [2, 32], strides = [1, 1]} : vector<2x128xf32> to vector<2x32xf32>
      %302 = vector.extract_strided_slice %297 {offsets = [0, 96], sizes = [2, 32], strides = [1, 1]} : vector<2x128xf32> to vector<2x32xf32>
      %303 = arith.mulf %300, %249 : vector<2x32xf32>
      %304 = arith.mulf %299, %301 : vector<2x32xf32>
      %305 = arith.addf %303, %304 : vector<2x32xf32>
      %306 = math.tanh %305 : vector<2x32xf32>
      %307 = arith.mulf %302, %306 : vector<2x32xf32>
      %308 = vector.shape_cast %286 : vector<2x1xi1> to vector<2x1xi1>
      %309 = vector.broadcast %308 : vector<2x1xi1> to vector<2x32xi1>
      %310 = arith.select %309, %307, %246 : vector<2x32xi1>, vector<2x32xf32>
      %311 = vector.shape_cast %286 : vector<2x1xi1> to vector<2x1xi1>
      %312 = vector.broadcast %311 : vector<2x1xi1> to vector<2x32xi1>
      %313 = arith.select %312, %305, %249 : vector<2x32xi1>, vector<2x32xf32>
      %314 = tpu.concatenate %310, %273 in 1 : vector<2x32xf32>, vector<2x32xf32> -> vector<2x64xf32>
      %c0_92 = arith.constant 0 : index
      %c0_93 = arith.constant 0 : index
      %315 = vector.load %arg9[%c0_92, %c0_93] : memref<64x128xf32, #tpu.memory_space<vmem>>, vector<64x128xf32>
      %cst_94 = arith.constant dense<0.000000e+00> : vector<2x128xf32>
      %316 = tpu.matmul %314, %315, %cst_94 {dimension_numbers = #tpu.dot_dimension_numbers<[1], [0], [0], [1], [0, 0, 1, 1], [], []>} : vector<2x64xf32>, vector<64x128xf32>, vector<2x128xf32> -> vector<2x128xf32>
      %c0_95 = arith.constant 0 : index
      %c0_96 = arith.constant 0 : index
      %317 = vector.load %arg10[%c0_95, %c0_96] : memref<1x128xf32, #tpu.memory_space<vmem>>, vector<1x128xf32>
      %318 = vector.broadcast %317 : vector<1x128xf32> to vector<2x128xf32>
      %319 = arith.addf %316, %318 : vector<2x128xf32>
      %320 = arith.negf %319 : vector<2x128xf32>
      %321 = math.exp %320 : vector<2x128xf32>
      %cst_97 = arith.constant 1.000000e+00 : f32
      %322 = vector.broadcast %cst_97 : f32 to vector<2x128xf32>
      %323 = arith.addf %322, %321 : vector<2x128xf32>
      %324 = arith.divf %322, %323 : vector<2x128xf32>
      %325 = math.tanh %319 : vector<2x128xf32>
      %326 = vector.extract_strided_slice %324 {offsets = [0, 0], sizes = [2, 32], strides = [1, 1]} : vector<2x128xf32> to vector<2x32xf32>
      %327 = vector.extract_strided_slice %324 {offsets = [0, 32], sizes = [2, 32], strides = [1, 1]} : vector<2x128xf32> to vector<2x32xf32>
      %328 = vector.extract_strided_slice %325 {offsets = [0, 64], sizes = [2, 32], strides = [1, 1]} : vector<2x128xf32> to vector<2x32xf32>
      %329 = vector.extract_strided_slice %324 {offsets = [0, 96], sizes = [2, 32], strides = [1, 1]} : vector<2x128xf32> to vector<2x32xf32>
      %330 = arith.mulf %327, %276 : vector<2x32xf32>
      %331 = arith.mulf %326, %328 : vector<2x32xf32>
      %332 = arith.addf %330, %331 : vector<2x32xf32>
      %333 = math.tanh %332 : vector<2x32xf32>
      %334 = arith.mulf %329, %333 : vector<2x32xf32>
      %335 = vector.shape_cast %286 : vector<2x1xi1> to vector<2x1xi1>
      %336 = vector.broadcast %335 : vector<2x1xi1> to vector<2x32xi1>
      %337 = arith.select %336, %334, %273 : vector<2x32xi1>, vector<2x32xf32>
      %338 = vector.shape_cast %286 : vector<2x1xi1> to vector<2x1xi1>
      %339 = vector.broadcast %338 : vector<2x1xi1> to vector<2x32xi1>
      %340 = arith.select %339, %332, %276 : vector<2x32xi1>, vector<2x32xf32>
      %cst_98 = arith.constant -1.000000e+00 : f32
      %341 = vector.shape_cast %286 : vector<2x1xi1> to vector<2x1xi1>
      %342 = vector.broadcast %341 : vector<2x1xi1> to vector<2x32xi1>
      %343 = vector.broadcast %cst_98 : f32 to vector<2x32xf32>
      %344 = arith.select %342, %337, %343 : vector<2x32xi1>, vector<2x32xf32>
      %345 = vector.shape_cast %344 : vector<2x32xf32> to vector<2x1x32xf32>
      %c0_99 = arith.constant 0 : index
      %346 = arith.index_cast %c4_i32 : i32 to index
      %c0_100 = arith.constant 0 : index
      %347 = vector.load %arg11[%c0_99, %346, %c0_100] : memref<2x8x32xf32, #tpu.memory_space<vmem>>, vector<2x1x32xf32>
      tpu.vector_store %arg11[%c0_99, %346, %c0_100], %345 {strides = array<i32>} : memref<2x8x32xf32, #tpu.memory_space<vmem>>, vector<2x1x32xf32>,
      %c5_i32 = arith.constant 5 : i32
      %348 = arith.addi %0, %c5_i32 : i32
      %349 = vector.broadcast %348 : i32 to vector<2x1xi32>
      %350 = arith.cmpi slt, %349, %23 : vector<2x1xi32>
      %c0_101 = arith.constant 0 : index
      %351 = arith.index_cast %c5_i32 : i32 to index
      %c0_102 = arith.constant 0 : index
      %352 = vector.load %arg18[%c0_101, %351, %c0_102] : memref<2x8x128xf32, #tpu.memory_space<vmem>>, vector<2x1x128xf32>
      %353 = vector.shape_cast %352 : vector<2x1x128xf32> to vector<2x128xf32>
      %c0_103 = arith.constant 0 : index
      %c0_104 = arith.constant 0 : index
      %354 = vector.load %arg7[%c0_103, %c0_104] : memref<32x128xf32, #tpu.memory_space<vmem>>, vector<32x128xf32>
      %cst_105 = arith.constant dense<0.000000e+00> : vector<2x128xf32>
      %355 = tpu.matmul %310, %354, %cst_105 {dimension_numbers = #tpu.dot_dimension_numbers<[1], [0], [0], [1], [0, 0, 1, 1], [], []>} : vector<2x32xf32>, vector<32x128xf32>, vector<2x128xf32> -> vector<2x128xf32>
      %356 = arith.addf %353, %355 : vector<2x128xf32>
      %357 = arith.negf %356 : vector<2x128xf32>
      %358 = math.exp %357 : vector<2x128xf32>
      %cst_106 = arith.constant 1.000000e+00 : f32
      %359 = vector.broadcast %cst_106 : f32 to vector<2x128xf32>
      %360 = arith.addf %359, %358 : vector<2x128xf32>
      %361 = arith.divf %359, %360 : vector<2x128xf32>
      %362 = math.tanh %356 : vector<2x128xf32>
      %363 = vector.extract_strided_slice %361 {offsets = [0, 0], sizes = [2, 32], strides = [1, 1]} : vector<2x128xf32> to vector<2x32xf32>
      %364 = vector.extract_strided_slice %361 {offsets = [0, 32], sizes = [2, 32], strides = [1, 1]} : vector<2x128xf32> to vector<2x32xf32>
      %365 = vector.extract_strided_slice %362 {offsets = [0, 64], sizes = [2, 32], strides = [1, 1]} : vector<2x128xf32> to vector<2x32xf32>
      %366 = vector.extract_strided_slice %361 {offsets = [0, 96], sizes = [2, 32], strides = [1, 1]} : vector<2x128xf32> to vector<2x32xf32>
      %367 = arith.mulf %364, %313 : vector<2x32xf32>
      %368 = arith.mulf %363, %365 : vector<2x32xf32>
      %369 = arith.addf %367, %368 : vector<2x32xf32>
      %370 = math.tanh %369 : vector<2x32xf32>
      %371 = arith.mulf %366, %370 : vector<2x32xf32>
      %372 = vector.shape_cast %350 : vector<2x1xi1> to vector<2x1xi1>
      %373 = vector.broadcast %372 : vector<2x1xi1> to vector<2x32xi1>
      %374 = arith.select %373, %371, %310 : vector<2x32xi1>, vector<2x32xf32>
      %375 = vector.shape_cast %350 : vector<2x1xi1> to vector<2x1xi1>
      %376 = vector.broadcast %375 : vector<2x1xi1> to vector<2x32xi1>
      %377 = arith.select %376, %369, %313 : vector<2x32xi1>, vector<2x32xf32>
      %378 = tpu.concatenate %374, %337 in 1 : vector<2x32xf32>, vector<2x32xf32> -> vector<2x64xf32>
      %c0_107 = arith.constant 0 : index
      %c0_108 = arith.constant 0 : index
      %379 = vector.load %arg9[%c0_107, %c0_108] : memref<64x128xf32, #tpu.memory_space<vmem>>, vector<64x128xf32>
      %cst_109 = arith.constant dense<0.000000e+00> : vector<2x128xf32>
      %380 = tpu.matmul %378, %379, %cst_109 {dimension_numbers = #tpu.dot_dimension_numbers<[1], [0], [0], [1], [0, 0, 1, 1], [], []>} : vector<2x64xf32>, vector<64x128xf32>, vector<2x128xf32> -> vector<2x128xf32>
      %c0_110 = arith.constant 0 : index
      %c0_111 = arith.constant 0 : index
      %381 = vector.load %arg10[%c0_110, %c0_111] : memref<1x128xf32, #tpu.memory_space<vmem>>, vector<1x128xf32>
      %382 = vector.broadcast %381 : vector<1x128xf32> to vector<2x128xf32>
      %383 = arith.addf %380, %382 : vector<2x128xf32>
      %384 = arith.negf %383 : vector<2x128xf32>
      %385 = math.exp %384 : vector<2x128xf32>
      %cst_112 = arith.constant 1.000000e+00 : f32
      %386 = vector.broadcast %cst_112 : f32 to vector<2x128xf32>
      %387 = arith.addf %386, %385 : vector<2x128xf32>
      %388 = arith.divf %386, %387 : vector<2x128xf32>
      %389 = math.tanh %383 : vector<2x128xf32>
      %390 = vector.extract_strided_slice %388 {offsets = [0, 0], sizes = [2, 32], strides = [1, 1]} : vector<2x128xf32> to vector<2x32xf32>
      %391 = vector.extract_strided_slice %388 {offsets = [0, 32], sizes = [2, 32], strides = [1, 1]} : vector<2x128xf32> to vector<2x32xf32>
      %392 = vector.extract_strided_slice %389 {offsets = [0, 64], sizes = [2, 32], strides = [1, 1]} : vector<2x128xf32> to vector<2x32xf32>
      %393 = vector.extract_strided_slice %388 {offsets = [0, 96], sizes = [2, 32], strides = [1, 1]} : vector<2x128xf32> to vector<2x32xf32>
      %394 = arith.mulf %391, %340 : vector<2x32xf32>
      %395 = arith.mulf %390, %392 : vector<2x32xf32>
      %396 = arith.addf %394, %395 : vector<2x32xf32>
      %397 = math.tanh %396 : vector<2x32xf32>
      %398 = arith.mulf %393, %397 : vector<2x32xf32>
      %399 = vector.shape_cast %350 : vector<2x1xi1> to vector<2x1xi1>
      %400 = vector.broadcast %399 : vector<2x1xi1> to vector<2x32xi1>
      %401 = arith.select %400, %398, %337 : vector<2x32xi1>, vector<2x32xf32>
      %402 = vector.shape_cast %350 : vector<2x1xi1> to vector<2x1xi1>
      %403 = vector.broadcast %402 : vector<2x1xi1> to vector<2x32xi1>
      %404 = arith.select %403, %396, %340 : vector<2x32xi1>, vector<2x32xf32>
      %cst_113 = arith.constant -1.000000e+00 : f32
      %405 = vector.shape_cast %350 : vector<2x1xi1> to vector<2x1xi1>
      %406 = vector.broadcast %405 : vector<2x1xi1> to vector<2x32xi1>
      %407 = vector.broadcast %cst_113 : f32 to vector<2x32xf32>
      %408 = arith.select %406, %401, %407 : vector<2x32xi1>, vector<2x32xf32>
      %409 = vector.shape_cast %408 : vector<2x32xf32> to vector<2x1x32xf32>
      %c0_114 = arith.constant 0 : index
      %410 = arith.index_cast %c5_i32 : i32 to index
      %c0_115 = arith.constant 0 : index
      %411 = vector.load %arg11[%c0_114, %410, %c0_115] : memref<2x8x32xf32, #tpu.memory_space<vmem>>, vector<2x1x32xf32>
      tpu.vector_store %arg11[%c0_114, %410, %c0_115], %409 {strides = array<i32>} : memref<2x8x32xf32, #tpu.memory_space<vmem>>, vector<2x1x32xf32>,
      %c6_i32 = arith.constant 6 : i32
      %412 = arith.addi %0, %c6_i32 : i32
      %413 = vector.broadcast %412 : i32 to vector<2x1xi32>
      %414 = arith.cmpi slt, %413, %23 : vector<2x1xi32>
      %c0_116 = arith.constant 0 : index
      %415 = arith.index_cast %c6_i32 : i32 to index
      %c0_117 = arith.constant 0 : index
      %416 = vector.load %arg18[%c0_116, %415, %c0_117] : memref<2x8x128xf32, #tpu.memory_space<vmem>>, vector<2x1x128xf32>
      %417 = vector.shape_cast %416 : vector<2x1x128xf32> to vector<2x128xf32>
      %c0_118 = arith.constant 0 : index
      %c0_119 = arith.constant 0 : index
      %418 = vector.load %arg7[%c0_118, %c0_119] : memref<32x128xf32, #tpu.memory_space<vmem>>, vector<32x128xf32>
      %cst_120 = arith.constant dense<0.000000e+00> : vector<2x128xf32>
      %419 = tpu.matmul %374, %418, %cst_120 {dimension_numbers = #tpu.dot_dimension_numbers<[1], [0], [0], [1], [0, 0, 1, 1], [], []>} : vector<2x32xf32>, vector<32x128xf32>, vector<2x128xf32> -> vector<2x128xf32>
      %420 = arith.addf %417, %419 : vector<2x128xf32>
      %421 = arith.negf %420 : vector<2x128xf32>
      %422 = math.exp %421 : vector<2x128xf32>
      %cst_121 = arith.constant 1.000000e+00 : f32
      %423 = vector.broadcast %cst_121 : f32 to vector<2x128xf32>
      %424 = arith.addf %423, %422 : vector<2x128xf32>
      %425 = arith.divf %423, %424 : vector<2x128xf32>
      %426 = math.tanh %420 : vector<2x128xf32>
      %427 = vector.extract_strided_slice %425 {offsets = [0, 0], sizes = [2, 32], strides = [1, 1]} : vector<2x128xf32> to vector<2x32xf32>
      %428 = vector.extract_strided_slice %425 {offsets = [0, 32], sizes = [2, 32], strides = [1, 1]} : vector<2x128xf32> to vector<2x32xf32>
      %429 = vector.extract_strided_slice %426 {offsets = [0, 64], sizes = [2, 32], strides = [1, 1]} : vector<2x128xf32> to vector<2x32xf32>
      %430 = vector.extract_strided_slice %425 {offsets = [0, 96], sizes = [2, 32], strides = [1, 1]} : vector<2x128xf32> to vector<2x32xf32>
      %431 = arith.mulf %428, %377 : vector<2x32xf32>
      %432 = arith.mulf %427, %429 : vector<2x32xf32>
      %433 = arith.addf %431, %432 : vector<2x32xf32>
      %434 = math.tanh %433 : vector<2x32xf32>
      %435 = arith.mulf %430, %434 : vector<2x32xf32>
      %436 = vector.shape_cast %414 : vector<2x1xi1> to vector<2x1xi1>
      %437 = vector.broadcast %436 : vector<2x1xi1> to vector<2x32xi1>
      %438 = arith.select %437, %435, %374 : vector<2x32xi1>, vector<2x32xf32>
      %439 = vector.shape_cast %414 : vector<2x1xi1> to vector<2x1xi1>
      %440 = vector.broadcast %439 : vector<2x1xi1> to vector<2x32xi1>
      %441 = arith.select %440, %433, %377 : vector<2x32xi1>, vector<2x32xf32>
      %442 = tpu.concatenate %438, %401 in 1 : vector<2x32xf32>, vector<2x32xf32> -> vector<2x64xf32>
      %c0_122 = arith.constant 0 : index
      %c0_123 = arith.constant 0 : index
      %443 = vector.load %arg9[%c0_122, %c0_123] : memref<64x128xf32, #tpu.memory_space<vmem>>, vector<64x128xf32>
      %cst_124 = arith.constant dense<0.000000e+00> : vector<2x128xf32>
      %444 = tpu.matmul %442, %443, %cst_124 {dimension_numbers = #tpu.dot_dimension_numbers<[1], [0], [0], [1], [0, 0, 1, 1], [], []>} : vector<2x64xf32>, vector<64x128xf32>, vector<2x128xf32> -> vector<2x128xf32>
      %c0_125 = arith.constant 0 : index
      %c0_126 = arith.constant 0 : index
      %445 = vector.load %arg10[%c0_125, %c0_126] : memref<1x128xf32, #tpu.memory_space<vmem>>, vector<1x128xf32>
      %446 = vector.broadcast %445 : vector<1x128xf32> to vector<2x128xf32>
      %447 = arith.addf %444, %446 : vector<2x128xf32>
      %448 = arith.negf %447 : vector<2x128xf32>
      %449 = math.exp %448 : vector<2x128xf32>
      %cst_127 = arith.constant 1.000000e+00 : f32
      %450 = vector.broadcast %cst_127 : f32 to vector<2x128xf32>
      %451 = arith.addf %450, %449 : vector<2x128xf32>
      %452 = arith.divf %450, %451 : vector<2x128xf32>
      %453 = math.tanh %447 : vector<2x128xf32>
      %454 = vector.extract_strided_slice %452 {offsets = [0, 0], sizes = [2, 32], strides = [1, 1]} : vector<2x128xf32> to vector<2x32xf32>
      %455 = vector.extract_strided_slice %452 {offsets = [0, 32], sizes = [2, 32], strides = [1, 1]} : vector<2x128xf32> to vector<2x32xf32>
      %456 = vector.extract_strided_slice %453 {offsets = [0, 64], sizes = [2, 32], strides = [1, 1]} : vector<2x128xf32> to vector<2x32xf32>
      %457 = vector.extract_strided_slice %452 {offsets = [0, 96], sizes = [2, 32], strides = [1, 1]} : vector<2x128xf32> to vector<2x32xf32>
      %458 = arith.mulf %455, %404 : vector<2x32xf32>
      %459 = arith.mulf %454, %456 : vector<2x32xf32>
      %460 = arith.addf %458, %459 : vector<2x32xf32>
      %461 = math.tanh %460 : vector<2x32xf32>
      %462 = arith.mulf %457, %461 : vector<2x32xf32>
      %463 = vector.shape_cast %414 : vector<2x1xi1> to vector<2x1xi1>
      %464 = vector.broadcast %463 : vector<2x1xi1> to vector<2x32xi1>
      %465 = arith.select %464, %462, %401 : vector<2x32xi1>, vector<2x32xf32>
      %466 = vector.shape_cast %414 : vector<2x1xi1> to vector<2x1xi1>
      %467 = vector.broadcast %466 : vector<2x1xi1> to vector<2x32xi1>
      %468 = arith.select %467, %460, %404 : vector<2x32xi1>, vector<2x32xf32>
      %cst_128 = arith.constant -1.000000e+00 : f32
      %469 = vector.shape_cast %414 : vector<2x1xi1> to vector<2x1xi1>
      %470 = vector.broadcast %469 : vector<2x1xi1> to vector<2x32xi1>
      %471 = vector.broadcast %cst_128 : f32 to vector<2x32xf32>
      %472 = arith.select %470, %465, %471 : vector<2x32xi1>, vector<2x32xf32>
      %473 = vector.shape_cast %472 : vector<2x32xf32> to vector<2x1x32xf32>
      %c0_129 = arith.constant 0 : index
      %474 = arith.index_cast %c6_i32 : i32 to index
      %c0_130 = arith.constant 0 : index
      %475 = vector.load %arg11[%c0_129, %474, %c0_130] : memref<2x8x32xf32, #tpu.memory_space<vmem>>, vector<2x1x32xf32>
      tpu.vector_store %arg11[%c0_129, %474, %c0_130], %473 {strides = array<i32>} : memref<2x8x32xf32, #tpu.memory_space<vmem>>, vector<2x1x32xf32>,
      %c7_i32 = arith.constant 7 : i32
      %476 = arith.addi %0, %c7_i32 : i32
      %477 = vector.broadcast %476 : i32 to vector<2x1xi32>
      %478 = arith.cmpi slt, %477, %23 : vector<2x1xi32>
      %c0_131 = arith.constant 0 : index
      %479 = arith.index_cast %c7_i32 : i32 to index
      %c0_132 = arith.constant 0 : index
      %480 = vector.load %arg18[%c0_131, %479, %c0_132] : memref<2x8x128xf32, #tpu.memory_space<vmem>>, vector<2x1x128xf32>
      %481 = vector.shape_cast %480 : vector<2x1x128xf32> to vector<2x128xf32>
      %c0_133 = arith.constant 0 : index
      %c0_134 = arith.constant 0 : index
      %482 = vector.load %arg7[%c0_133, %c0_134] : memref<32x128xf32, #tpu.memory_space<vmem>>, vector<32x128xf32>
      %cst_135 = arith.constant dense<0.000000e+00> : vector<2x128xf32>
      %483 = tpu.matmul %438, %482, %cst_135 {dimension_numbers = #tpu.dot_dimension_numbers<[1], [0], [0], [1], [0, 0, 1, 1], [], []>} : vector<2x32xf32>, vector<32x128xf32>, vector<2x128xf32> -> vector<2x128xf32>
      %484 = arith.addf %481, %483 : vector<2x128xf32>
      %485 = arith.negf %484 : vector<2x128xf32>
      %486 = math.exp %485 : vector<2x128xf32>
      %cst_136 = arith.constant 1.000000e+00 : f32
      %487 = vector.broadcast %cst_136 : f32 to vector<2x128xf32>
      %488 = arith.addf %487, %486 : vector<2x128xf32>
      %489 = arith.divf %487, %488 : vector<2x128xf32>
      %490 = math.tanh %484 : vector<2x128xf32>
      %491 = vector.extract_strided_slice %489 {offsets = [0, 0], sizes = [2, 32], strides = [1, 1]} : vector<2x128xf32> to vector<2x32xf32>
      %492 = vector.extract_strided_slice %489 {offsets = [0, 32], sizes = [2, 32], strides = [1, 1]} : vector<2x128xf32> to vector<2x32xf32>
      %493 = vector.extract_strided_slice %490 {offsets = [0, 64], sizes = [2, 32], strides = [1, 1]} : vector<2x128xf32> to vector<2x32xf32>
      %494 = vector.extract_strided_slice %489 {offsets = [0, 96], sizes = [2, 32], strides = [1, 1]} : vector<2x128xf32> to vector<2x32xf32>
      %495 = arith.mulf %492, %441 : vector<2x32xf32>
      %496 = arith.mulf %491, %493 : vector<2x32xf32>
      %497 = arith.addf %495, %496 : vector<2x32xf32>
      %498 = math.tanh %497 : vector<2x32xf32>
      %499 = arith.mulf %494, %498 : vector<2x32xf32>
      %500 = vector.shape_cast %478 : vector<2x1xi1> to vector<2x1xi1>
      %501 = vector.broadcast %500 : vector<2x1xi1> to vector<2x32xi1>
      %502 = arith.select %501, %499, %438 : vector<2x32xi1>, vector<2x32xf32>
      %503 = vector.shape_cast %478 : vector<2x1xi1> to vector<2x1xi1>
      %504 = vector.broadcast %503 : vector<2x1xi1> to vector<2x32xi1>
      %505 = arith.select %504, %497, %441 : vector<2x32xi1>, vector<2x32xf32>
      %506 = tpu.concatenate %502, %465 in 1 : vector<2x32xf32>, vector<2x32xf32> -> vector<2x64xf32>
      %c0_137 = arith.constant 0 : index
      %c0_138 = arith.constant 0 : index
      %507 = vector.load %arg9[%c0_137, %c0_138] : memref<64x128xf32, #tpu.memory_space<vmem>>, vector<64x128xf32>
      %cst_139 = arith.constant dense<0.000000e+00> : vector<2x128xf32>
      %508 = tpu.matmul %506, %507, %cst_139 {dimension_numbers = #tpu.dot_dimension_numbers<[1], [0], [0], [1], [0, 0, 1, 1], [], []>} : vector<2x64xf32>, vector<64x128xf32>, vector<2x128xf32> -> vector<2x128xf32>
      %c0_140 = arith.constant 0 : index
      %c0_141 = arith.constant 0 : index
      %509 = vector.load %arg10[%c0_140, %c0_141] : memref<1x128xf32, #tpu.memory_space<vmem>>, vector<1x128xf32>
      %510 = vector.broadcast %509 : vector<1x128xf32> to vector<2x128xf32>
      %511 = arith.addf %508, %510 : vector<2x128xf32>
      %512 = arith.negf %511 : vector<2x128xf32>
      %513 = math.exp %512 : vector<2x128xf32>
      %cst_142 = arith.constant 1.000000e+00 : f32
      %514 = vector.broadcast %cst_142 : f32 to vector<2x128xf32>
      %515 = arith.addf %514, %513 : vector<2x128xf32>
      %516 = arith.divf %514, %515 : vector<2x128xf32>
      %517 = math.tanh %511 : vector<2x128xf32>
      %518 = vector.extract_strided_slice %516 {offsets = [0, 0], sizes = [2, 32], strides = [1, 1]} : vector<2x128xf32> to vector<2x32xf32>
      %519 = vector.extract_strided_slice %516 {offsets = [0, 32], sizes = [2, 32], strides = [1, 1]} : vector<2x128xf32> to vector<2x32xf32>
      %520 = vector.extract_strided_slice %517 {offsets = [0, 64], sizes = [2, 32], strides = [1, 1]} : vector<2x128xf32> to vector<2x32xf32>
      %521 = vector.extract_strided_slice %516 {offsets = [0, 96], sizes = [2, 32], strides = [1, 1]} : vector<2x128xf32> to vector<2x32xf32>
      %522 = arith.mulf %519, %468 : vector<2x32xf32>
      %523 = arith.mulf %518, %520 : vector<2x32xf32>
      %524 = arith.addf %522, %523 : vector<2x32xf32>
      %525 = math.tanh %524 : vector<2x32xf32>
      %526 = arith.mulf %521, %525 : vector<2x32xf32>
      %527 = vector.shape_cast %478 : vector<2x1xi1> to vector<2x1xi1>
      %528 = vector.broadcast %527 : vector<2x1xi1> to vector<2x32xi1>
      %529 = arith.select %528, %526, %465 : vector<2x32xi1>, vector<2x32xf32>
      %530 = vector.shape_cast %478 : vector<2x1xi1> to vector<2x1xi1>
      %531 = vector.broadcast %530 : vector<2x1xi1> to vector<2x32xi1>
      %532 = arith.select %531, %524, %468 : vector<2x32xi1>, vector<2x32xf32>
      %cst_143 = arith.constant -1.000000e+00 : f32
      %533 = vector.shape_cast %478 : vector<2x1xi1> to vector<2x1xi1>
      %534 = vector.broadcast %533 : vector<2x1xi1> to vector<2x32xi1>
      %535 = vector.broadcast %cst_143 : f32 to vector<2x32xf32>
      %536 = arith.select %534, %529, %535 : vector<2x32xi1>, vector<2x32xf32>
      %537 = vector.shape_cast %536 : vector<2x32xf32> to vector<2x1x32xf32>
      %c0_144 = arith.constant 0 : index
      %538 = arith.index_cast %c7_i32 : i32 to index
      %c0_145 = arith.constant 0 : index
      %539 = vector.load %arg11[%c0_144, %538, %c0_145] : memref<2x8x32xf32, #tpu.memory_space<vmem>>, vector<2x1x32xf32>
      tpu.vector_store %arg11[%c0_144, %538, %c0_145], %537 {strides = array<i32>} : memref<2x8x32xf32, #tpu.memory_space<vmem>>, vector<2x1x32xf32>,
      %c8_i32_146 = arith.constant 8 : i32
      %c0_147 = arith.constant 0 : index
      %c0_148 = arith.constant 0 : index
      %540 = vector.load %arg14[%c0_147, %c0_148] : memref<2x32xf32, #tpu.memory_space<vmem>>, vector<2x32xf32>
      tpu.vector_store %arg14[%c0_147, %c0_148], %502 {strides = array<i32>} : memref<2x32xf32, #tpu.memory_space<vmem>>, vector<2x32xf32>,
      %c0_149 = arith.constant 0 : index
      %c0_150 = arith.constant 0 : index
      %541 = vector.load %arg15[%c0_149, %c0_150] : memref<2x32xf32, #tpu.memory_space<vmem>>, vector<2x32xf32>
      tpu.vector_store %arg15[%c0_149, %c0_150], %505 {strides = array<i32>} : memref<2x32xf32, #tpu.memory_space<vmem>>, vector<2x32xf32>,
      %c0_151 = arith.constant 0 : index
      %c0_152 = arith.constant 0 : index
      %542 = vector.load %arg16[%c0_151, %c0_152] : memref<2x32xf32, #tpu.memory_space<vmem>>, vector<2x32xf32>
      tpu.vector_store %arg16[%c0_151, %c0_152], %529 {strides = array<i32>} : memref<2x32xf32, #tpu.memory_space<vmem>>, vector<2x32xf32>,
      %c0_153 = arith.constant 0 : index
      %c0_154 = arith.constant 0 : index
      %543 = vector.load %arg17[%c0_153, %c0_154] : memref<2x32xf32, #tpu.memory_space<vmem>>, vector<2x32xf32>
      tpu.vector_store %arg17[%c0_153, %c0_154], %532 {strides = array<i32>} : memref<2x32xf32, #tpu.memory_space<vmem>>, vector<2x32xf32>,
    } else {
    }
    %true = arith.constant true
    %8 = arith.xori %5, %true : i1
    %9 = arith.extui %8 : i1 to i32
    %c0_i32_2 = arith.constant 0 : i32
    %10 = arith.cmpi ne, %9, %c0_i32_2 : i32
    scf.if %10 {
      %cst = arith.constant -1.000000e+00 : f32
      %14 = vector.broadcast %cst : f32 to vector<2x8x32xf32>
      %c0_5 = arith.constant 0 : index
      %c0_6 = arith.constant 0 : index
      %c0_7 = arith.constant 0 : index
      %15 = vector.load %arg11[%c0_5, %c0_6, %c0_7] : memref<2x8x32xf32, #tpu.memory_space<vmem>>, vector<2x8x32xf32>
      tpu.vector_store %arg11[%c0_5, %c0_6, %c0_7], %14 {strides = array<i32>} : memref<2x8x32xf32, #tpu.memory_space<vmem>>, vector<2x8x32xf32>,
    } else {
    }
    %c0_i32_3 = arith.constant 0 : i32
    %11 = arith.cmpi eq, %arg0, %c0_i32_3 : i32
    %12 = arith.extui %11 : i1 to i32
    %c0_i32_4 = arith.constant 0 : i32
    %13 = arith.cmpi ne, %12, %c0_i32_4 : i32
    scf.if %13 {
      %c0_5 = arith.constant 0 : index
      %c0_6 = arith.constant 0 : index
      %14 = vector.load %arg14[%c0_5, %c0_6] : memref<2x32xf32, #tpu.memory_space<vmem>>, vector<2x32xf32>
      %c0_7 = arith.constant 0 : index
      %c0_8 = arith.constant 0 : index
      %c0_9 = arith.constant 0 : index
      %15 = vector.load %arg12[%c0_7, %c0_8, %c0_9] : memref<2x2x32xf32, #tpu.memory_space<vmem>>, vector<1x2x32xf32>
      %16 = vector.shape_cast %15 : vector<1x2x32xf32> to vector<2x32xf32>
      %17 = vector.shape_cast %14 : vector<2x32xf32> to vector<1x2x32xf32>
      tpu.vector_store %arg12[%c0_7, %c0_8, %c0_9], %17 {strides = array<i32>} : memref<2x2x32xf32, #tpu.memory_space<vmem>>, vector<1x2x32xf32>,
      %c0_10 = arith.constant 0 : index
      %c0_11 = arith.constant 0 : index
      %18 = vector.load %arg16[%c0_10, %c0_11] : memref<2x32xf32, #tpu.memory_space<vmem>>, vector<2x32xf32>
      %c1 = arith.constant 1 : index
      %c0_12 = arith.constant 0 : index
      %c0_13 = arith.constant 0 : index
      %19 = vector.load %arg12[%c1, %c0_12, %c0_13] : memref<2x2x32xf32, #tpu.memory_space<vmem>>, vector<1x2x32xf32>
      %20 = vector.shape_cast %19 : vector<1x2x32xf32> to vector<2x32xf32>
      %21 = vector.shape_cast %18 : vector<2x32xf32> to vector<1x2x32xf32>
      tpu.vector_store %arg12[%c1, %c0_12, %c0_13], %21 {strides = array<i32>} : memref<2x2x32xf32, #tpu.memory_space<vmem>>, vector<1x2x32xf32>,
      %c0_14 = arith.constant 0 : index
      %c0_15 = arith.constant 0 : index
      %22 = vector.load %arg15[%c0_14, %c0_15] : memref<2x32xf32, #tpu.memory_space<vmem>>, vector<2x32xf32>
      %c0_16 = arith.constant 0 : index
      %c0_17 = arith.constant 0 : index
      %c0_18 = arith.constant 0 : index
      %23 = vector.load %arg13[%c0_16, %c0_17, %c0_18] : memref<2x2x32xf32, #tpu.memory_space<vmem>>, vector<1x2x32xf32>
      %24 = vector.shape_cast %23 : vector<1x2x32xf32> to vector<2x32xf32>
      %25 = vector.shape_cast %22 : vector<2x32xf32> to vector<1x2x32xf32>
      tpu.vector_store %arg13[%c0_16, %c0_17, %c0_18], %25 {strides = array<i32>} : memref<2x2x32xf32, #tpu.memory_space<vmem>>, vector<1x2x32xf32>,
      %c0_19 = arith.constant 0 : index
      %c0_20 = arith.constant 0 : index
      %26 = vector.load %arg17[%c0_19, %c0_20] : memref<2x32xf32, #tpu.memory_space<vmem>>, vector<2x32xf32>
      %c1_21 = arith.constant 1 : index
      %c0_22 = arith.constant 0 : index
      %c0_23 = arith.constant 0 : index
      %27 = vector.load %arg13[%c1_21, %c0_22, %c0_23] : memref<2x2x32xf32, #tpu.memory_space<vmem>>, vector<1x2x32xf32>
      %28 = vector.shape_cast %27 : vector<1x2x32xf32> to vector<2x32xf32>
      %29 = vector.shape_cast %26 : vector<2x32xf32> to vector<1x2x32xf32>
      tpu.vector_store %arg13[%c1_21, %c0_22, %c0_23], %29 {strides = array<i32>} : memref<2x2x32xf32, #tpu.memory_space<vmem>>, vector<1x2x32xf32>,
    } else {
    }
    return
  }
  func.func @transform_0(%arg0: i32, %arg1: memref<1xi32, #tpu.memory_space<smem>>) -> (i32, i32) {
    %c0_i32 = arith.constant 0 : i32
    %c0_i32_0 = arith.constant 0 : i32
    %c0_i32_1 = arith.constant 0 : i32
    return %c0_i32, %c0_i32_0 : i32, i32
  }
  func.func @transform_1(%arg0: i32, %arg1: memref<1xi32, #tpu.memory_space<smem>>) -> (i32, i32, i32) {
    %c0_i32 = arith.constant 0 : i32
    %c0_i32_0 = arith.constant 0 : i32
    %c0_i32_1 = arith.constant 0 : i32
    return %c0_i32, %arg0, %c0_i32_0 : i32, i32, i32
  }
  func.func @transform_2(%arg0: i32, %arg1: memref<1xi32, #tpu.memory_space<smem>>) -> (i32, i32, i32) {
    %c0_i32 = arith.constant 0 : i32
    %c0_i32_0 = arith.constant 0 : i32
    %c0_i32_1 = arith.constant 0 : i32
    %c0_i32_2 = arith.constant 0 : i32
    return %c0_i32, %c0_i32_0, %c0_i32_1 : i32, i32, i32
  }
  func.func @transform_3(%arg0: i32, %arg1: memref<1xi32, #tpu.memory_space<smem>>) -> (i32, i32, i32) {
    %c0_i32 = arith.constant 0 : i32
    %c0_i32_0 = arith.constant 0 : i32
    %c0_i32_1 = arith.constant 0 : i32
    %c0_i32_2 = arith.constant 0 : i32
    return %c0_i32, %c0_i32_0, %c0_i32_1 : i32, i32, i32
  }
  func.func @transform_4(%arg0: i32, %arg1: memref<1xi32, #tpu.memory_space<smem>>) -> (i32, i32) {
    %c0_i32 = arith.constant 0 : i32
    %c0_i32_0 = arith.constant 0 : i32
    %c0_i32_1 = arith.constant 0 : i32
    return %c0_i32, %c0_i32_0 : i32, i32
  }
  func.func @transform_5(%arg0: i32, %arg1: memref<1xi32, #tpu.memory_space<smem>>) -> (i32, i32) {
    %c0_i32 = arith.constant 0 : i32
    %c0_i32_0 = arith.constant 0 : i32
    %c0_i32_1 = arith.constant 0 : i32
    return %c0_i32, %c0_i32_0 : i32, i32
  }
  func.func @transform_6(%arg0: i32, %arg1: memref<1xi32, #tpu.memory_space<smem>>) -> (i32, i32) {
    %c0_i32 = arith.constant 0 : i32
    %c0_i32_0 = arith.constant 0 : i32
    %c0_i32_1 = arith.constant 0 : i32
    return %c0_i32, %c0_i32_0 : i32, i32
  }
  func.func @transform_7(%arg0: i32, %arg1: memref<1xi32, #tpu.memory_space<smem>>) -> (i32, i32) {
    %c0_i32 = arith.constant 0 : i32
    %c0_i32_0 = arith.constant 0 : i32
    %c0_i32_1 = arith.constant 0 : i32
    return %c0_i32, %c0_i32_0 : i32, i32
  }
  func.func @transform_8(%arg0: i32, %arg1: memref<1xi32, #tpu.memory_space<smem>>) -> (i32, i32) {
    %c0_i32 = arith.constant 0 : i32
    %c0_i32_0 = arith.constant 0 : i32
    %c0_i32_1 = arith.constant 0 : i32
    return %c0_i32, %c0_i32_0 : i32, i32
  }
  func.func @transform_9(%arg0: i32, %arg1: memref<1xi32, #tpu.memory_space<smem>>) -> (i32, i32, i32) {
    %c0_i32 = arith.constant 0 : i32
    %c0_i32_0 = arith.constant 0 : i32
    %c0_i32_1 = arith.constant 0 : i32
    return %c0_i32, %arg0, %c0_i32_0 : i32, i32, i32
  }
  func.func @transform_10(%arg0: i32, %arg1: memref<1xi32, #tpu.memory_space<smem>>) -> (i32, i32, i32) {
    %c0_i32 = arith.constant 0 : i32
    %c0_i32_0 = arith.constant 0 : i32
    %c0_i32_1 = arith.constant 0 : i32
    %c0_i32_2 = arith.constant 0 : i32
    return %c0_i32, %c0_i32_0, %c0_i32_1 : i32, i32, i32
  }
  func.func @transform_11(%arg0: i32, %arg1: memref<1xi32, #tpu.memory_space<smem>>) -> (i32, i32, i32) {
    %c0_i32 = arith.constant 0 : i32
    %c0_i32_0 = arith.constant 0 : i32
    %c0_i32_1 = arith.constant 0 : i32
    %c0_i32_2 = arith.constant 0 : i32
    return %c0_i32, %c0_i32_0, %c0_i32_1 : i32, i32, i32
  }
}

</mosaic_0001>

<llo_original>
// kernel: tpu_custom_call.1
$region0: #{tpu_custom_call.1}
  #allocation0 [shape = 'u32[]', space=smem, size = 0x4, offset = 0x4, fixed_abs, tag = 'smem constant byte address 0x4 - core index']
  #allocation1 [shape = 'u32[144,128]{1,0:T(1,128)}', space=vmem, size = 0x12000, scoped, tag = 'internal scratch']
  #allocation2 [shape = 'f32[2,32]{1,0:T(2,128)}', space=vmem, size = 0x400, scoped, tag = 'scratch operand']
  #allocation3 [shape = 'f32[2,32]{1,0:T(2,128)}', space=vmem, size = 0x400, scoped, tag = 'scratch operand']
  #allocation4 [shape = 'f32[2,32]{1,0:T(2,128)}', space=vmem, size = 0x400, scoped, tag = 'scratch operand']
  #allocation5 [shape = 'f32[2,32]{1,0:T(2,128)}', space=vmem, size = 0x400, scoped, tag = 'scratch operand']
  #allocation6 [shape = 'f32[2,8,128]{2,1,0:T(8,128)}', space=vmem, size = 0x2000, scoped, tag = 'scratch operand']
  #allocation7 [shape = 's32[1]{0}', space=sflag, size = 0x4, scoped, tag = 'scoped memory for tpu_custom_call.1']
  #allocation8 [shape = 's32[1]{0:T(128)S(6)}', space=smem, size = 0x200, scoped, tag = 'prefetched SMEM operand 0']
  %s0 = inlined_call_operand.<no memory space> [shape: s32[1], index: 0, kind: input, shape index: {}]
  %s1 = inlined_call_operand.vmem [shape: s32[2,1], index: 1, kind: input, shape index: {}]
  %s2 = inlined_call_operand.hbm [shape: f32[2,8,40], index: 2, kind: input, shape index: {}]
  %s3 = inlined_call_operand.vmem [shape: f32[2,2,32], index: 3, kind: input, shape index: {}]
  %s4 = inlined_call_operand.vmem [shape: f32[2,2,32], index: 4, kind: input, shape index: {}]
  %s5 = inlined_call_operand.hbm [shape: f32[40,128], index: 5, kind: input, shape index: {}]
  %s6 = inlined_call_operand.hbm [shape: f32[32,128], index: 6, kind: input, shape index: {}]
  %s7 = inlined_call_operand.vmem [shape: f32[1,128], index: 7, kind: input, shape index: {}]
  %s8 = inlined_call_operand.hbm [shape: f32[64,128], index: 8, kind: input, shape index: {}]
  %s9 = inlined_call_operand.vmem [shape: f32[1,128], index: 9, kind: input, shape index: {}]
  %s10 = inlined_call_operand.hbm [shape: f32[2,8,32], index: 10, kind: output, shape index: {0}]
  %s11 = inlined_call_operand.hbm [shape: f32[2,2,32], index: 11, kind: output, shape index: {1}]
  %s12 = inlined_call_operand.hbm [shape: f32[2,2,32], index: 12, kind: output, shape index: {2}]
  %13 = xla_tuple %s10, %s11, %s12
  %s14 = sld [smem:[#allocation0]]
  $region94: #{tpu_custom_call.1} parent=0
    _
  %s16 = ssub.s32 1, %s14
  %s17 = scalar_select 0, %s16, %s14
  %18 = sst [smem:[#allocation8]] %s0
  $region1: #{tpu_custom_call.1} parent=0
    #allocation9 [shape = 'u8[8192]{0}', space=vmem, size = 0x2000, scoped, tag = 'input window, operand 2, single buffered']
    #allocation10 [shape = 's32[1]{0}', space=sflag, size = 0x4, scoped, tag = 'scoped memory for tpu_custom_call.1']
    #allocation11 [shape = 's32[1]{0}', space=sflag, size = 0x4, scoped, tag = 'scoped memory for tpu_custom_call.1']
    #allocation12 [shape = 'u8[20480]{0}', space=vmem, size = 0x5000, scoped, tag = 'input window, operand 5, single buffered']
    #allocation13 [shape = 's32[1]{0}', space=sflag, size = 0x4, scoped, tag = 'scoped memory for tpu_custom_call.1']
    #allocation14 [shape = 'u8[16384]{0}', space=vmem, size = 0x4000, scoped, tag = 'input window, operand 6, single buffered']
    #allocation15 [shape = 'u8[32768]{0}', space=vmem, size = 0x8000, scoped, tag = 'input window, operand 8, single buffered']
    #allocation16 [shape = 's32[1]{0}', space=sflag, size = 0x4, scoped, tag = 'scoped memory for tpu_custom_call.1']
    #allocation17 [shape = 'u8[8192]{0}', space=vmem, size = 0x2000, scoped, tag = 'output window, operand 0, single buffered']
    #allocation18 [shape = 'u8[2048]{0}', space=vmem, size = 0x800, scoped, tag = 'output window, operand 1, single buffered']
    #allocation19 [shape = 's32[1]{0}', space=sflag, size = 0x4, scoped, tag = 'scoped memory for tpu_custom_call.1']
    #allocation20 [shape = 'u8[2048]{0}', space=vmem, size = 0x800, scoped, tag = 'output window, operand 2, single buffered']
    %19 = vsyncpa [#allocation10], 0
    %20 = vsyncpa [#allocation13], 0
    %21 = vsyncpa [#allocation16], 0
    %22 = vsyncpa [#allocation11], 0
    %23 = vsyncpa [#allocation19], 0
    // Predicated region
    $region2: #{tpu_custom_call.1} parent=1 // pred_check
      _
    $region3: #{tpu_custom_call.1} parent=1 // pred_check_branch
      %25 = sbr.rel (0) target = $region5
    $region4: #{tpu_custom_call.1} parent=1 // pred_region
      _
    $region5: #{tpu_custom_call.1} parent=1 // pred_fallthru
      _
    // Predicated region
    $region6: #{tpu_custom_call.1} parent=1 // pred_check
      _
    $region7: #{tpu_custom_call.1} parent=1 // pred_check_branch
      %27 = sbr.rel (0) target = $region9
    $region8: #{tpu_custom_call.1} parent=1 // pred_region
      %s29 = ssub.s32 256, 256
      %30 = vsyncadd [#allocation10], %s29
      %s31 = sshll.u32 [#allocation9], 4
      %s32 = int_to_ptr.vmem [resolvable:$true] %s31
      %37 = dma.hbm_to_vmem [thread:$0]  %s2, 256, %s32, [#allocation10], 128, 128, 8
    $region9: #{tpu_custom_call.1} parent=1 // pred_fallthru
      _
    // Predicated region
    $region10: #{tpu_custom_call.1} parent=1 // pred_check
      _
    $region11: #{tpu_custom_call.1} parent=1 // pred_check_branch
      %39 = sbr.rel (0) target = $region13
    $region12: #{tpu_custom_call.1} parent=1 // pred_region
      _
    $region13: #{tpu_custom_call.1} parent=1 // pred_fallthru
      _
    // Predicated region
    $region14: #{tpu_custom_call.1} parent=1 // pred_check
      _
    $region15: #{tpu_custom_call.1} parent=1 // pred_check_branch
      %41 = sbr.rel (0) target = $region17
    $region16: #{tpu_custom_call.1} parent=1 // pred_region
      _
    $region17: #{tpu_custom_call.1} parent=1 // pred_fallthru
      _
    // Predicated region
    $region18: #{tpu_custom_call.1} parent=1 // pred_check
      _
    $region19: #{tpu_custom_call.1} parent=1 // pred_check_branch
      %43 = sbr.rel (0) target = $region21
    $region20: #{tpu_custom_call.1} parent=1 // pred_region
      %s45 = ssub.s32 640, 640
      %46 = vsyncadd [#allocation13], %s45
      %s47 = sshll.u32 [#allocation12], 4
      %s48 = int_to_ptr.vmem [resolvable:$true] %s47
      %53 = dma.hbm_to_vmem [thread:$0]  %s5, 640, %s48, [#allocation13], 128, 128, 8
    $region21: #{tpu_custom_call.1} parent=1 // pred_fallthru
      _
    // Predicated region
    $region22: #{tpu_custom_call.1} parent=1 // pred_check
      _
    $region23: #{tpu_custom_call.1} parent=1 // pred_check_branch
      %55 = sbr.rel (0) target = $region25
    $region24: #{tpu_custom_call.1} parent=1 // pred_region
      %s57 = ssub.s32 512, 512
      %58 = vsyncadd [#allocation13], %s57
      %s59 = sshll.u32 [#allocation14], 4
      %s60 = int_to_ptr.vmem [resolvable:$true] %s59
      %65 = dma.hbm_to_vmem [thread:$0]  %s6, 512, %s60, [#allocation13], 128, 128, 8
    $region25: #{tpu_custom_call.1} parent=1 // pred_fallthru
      _
    // Predicated region
    $region26: #{tpu_custom_call.1} parent=1 // pred_check
      _
    $region27: #{tpu_custom_call.1} parent=1 // pred_check_branch
      %67 = sbr.rel (0) target = $region29
    $region28: #{tpu_custom_call.1} parent=1 // pred_region
      _
    $region29: #{tpu_custom_call.1} parent=1 // pred_fallthru
      _
    // Predicated region
    $region30: #{tpu_custom_call.1} parent=1 // pred_check
      _
    $region31: #{tpu_custom_call.1} parent=1 // pred_check_branch
      %69 = sbr.rel (0) target = $region33
    $region32: #{tpu_custom_call.1} parent=1 // pred_region
      %s71 = ssub.s32 1024, 1024
      %72 = vsyncadd [#allocation16], %s71
      %s73 = sshll.u32 [#allocation15], 4
      %s74 = int_to_ptr.vmem [resolvable:$true] %s73
      %79 = dma.hbm_to_vmem [thread:$0]  %s8, 1024, %s74, [#allocation16], 128, 128, 8
    $region33: #{tpu_custom_call.1} parent=1 // pred_fallthru
      _
    // Predicated region
    $region34: #{tpu_custom_call.1} parent=1 // pred_check
      _
    $region35: #{tpu_custom_call.1} parent=1 // pred_check_branch
      %81 = sbr.rel (0) target = $region37
    $region36: #{tpu_custom_call.1} parent=1 // pred_region
      _
    $region37: #{tpu_custom_call.1} parent=1 // pred_fallthru
      _
    // Predicated region
    $region38: #{tpu_custom_call.1} parent=1 // pred_check
      _
    $region39: #{tpu_custom_call.1} parent=1 // pred_check_branch
      %83 = sbr.rel (0) target = $region41
    $region40: #{tpu_custom_call.1} parent=1 // pred_region
      %84 = dma.done [#allocation10], 256
    $region41: #{tpu_custom_call.1} parent=1 // pred_fallthru
      _
    // Predicated region
    $region42: #{tpu_custom_call.1} parent=1 // pred_check
      _
    $region43: #{tpu_custom_call.1} parent=1 // pred_check_branch
      %86 = sbr.rel (0) target = $region45
    $region44: #{tpu_custom_call.1} parent=1 // pred_region
      %87 = dma.done [#allocation13], 640
    $region45: #{tpu_custom_call.1} parent=1 // pred_fallthru
      _
    // Predicated region
    $region46: #{tpu_custom_call.1} parent=1 // pred_check
      _
    $region47: #{tpu_custom_call.1} parent=1 // pred_check_branch
      %89 = sbr.rel (0) target = $region49
    $region48: #{tpu_custom_call.1} parent=1 // pred_region
      %90 = dma.done [#allocation13], 512
    $region49: #{tpu_custom_call.1} parent=1 // pred_fallthru
      _
    // Predicated region
    $region50: #{tpu_custom_call.1} parent=1 // pred_check
      _
    $region51: #{tpu_custom_call.1} parent=1 // pred_check_branch
      %92 = sbr.rel (0) target = $region53
    $region52: #{tpu_custom_call.1} parent=1 // pred_region
      %93 = dma.done [#allocation16], 1024
    $region53: #{tpu_custom_call.1} parent=1 // pred_fallthru
      _
    %s94 = smul.u32 0, 8
    %p95 = scmp.eq.s32.totalorder 0, 0
    // Predicated region
    $region54: #{tpu_custom_call.1} parent=1 // pred_check
      %p96 = pneg %p95
    $region55: #{tpu_custom_call.1} parent=1 // pred_check_branch
      %98 = sbr.rel (%p96) target = $region57
    $region56: #{tpu_custom_call.1} parent=1 // pred_region
      %v99 = vld [vmem:[%s3] sm:$0x3]
      %vm100 = vcmask 254976
      %101 = vst.msk [vmem:[#allocation2] sm:$0x3] %vm100, %v99
      %v102 = vld [vmem:[%s4] sm:$0x3]
      %103 = vst.msk [vmem:[#allocation3] sm:$0x3] %vm100, %v102
      %s104 = scalar_lea.vmem %s3, 2
      %v105 = vld [vmem:[%s104] sm:$0x3]
      %106 = vst.msk [vmem:[#allocation4] sm:$0x3] %vm100, %v105
      %s107 = scalar_lea.vmem %s4, 2
      %v108 = vld [vmem:[%s107] sm:$0x3]
      %109 = vst.msk [vmem:[#allocation5] sm:$0x3] %vm100, %v108
    $region57: #{tpu_custom_call.1} parent=1 // pred_fallthru
      _
    %s110 = sld [smem:[#allocation8]]
    %p111 = scmp.lt.s32.totalorder %s94, %s110
    // Predicated region
    $region58: #{tpu_custom_call.1} parent=1 // pred_check
      %p112 = pneg %p111
    $region59: #{tpu_custom_call.1} parent=1 // pred_check_branch
      %114 = sbr.rel (%p112) target = $region61
    $region60: #{tpu_custom_call.1} parent=1 // pred_region
      %v115 = vld [vmem:[#allocation9] sm:$0xff]
      %v116 = vld [vmem:[#allocation9 + $0x8] sm:$0xff]
      %v117 = vld [vmem:[#allocation12] sm:$0xff]
      %v118 = vld [vmem:[#allocation12 + $0x8] sm:$0xff]
      %v119 = vld [vmem:[#allocation12 + $0x10] sm:$0xff]
      %v120 = vld [vmem:[#allocation12 + $0x18] sm:$0xff]
      %v121 = vld [vmem:[#allocation12 + $0x20] sm:$0xff]
      %v122 = vld [vmem:[%s7] sm:$0x1]
      %v124 = vlaneseq
      %v125 = vshrl.u32 %v124, 7
      %v126 = vsub.s32 0, %v125
      %v127 = vrot.slane %v122, %v126
      %vm129 = vcmask 326656
      %v131 = vsel %vm129, %v115, 0
      %v134 = vsel %vm129, %v116, 0
      %136 = vmatprep.subr.mxu0 0.0
      %137 = vmatpush1.msra.mxu0 %v117
      %138 = vmatprep.subr.mxu0 0.0
      %139 = vmatpush1.msra.mxu0 %v118
      %140 = vmatprep.subr.mxu0 0.0
      %141 = vmatpush1.msra.mxu0 %v119
      %142 = vmatprep.subr.mxu0 0.0
      %143 = vmatpush1.msra.mxu0 %v120
      %144 = vmatprep.subr.mxu0 0.0
      %145 = vmatpush1.msra.mxu0 %v121
      %146 = vmatprep.subr.mxu0 0.0
      %147 = vmatpush1.msra.mxu0 0.0
      %148 = vmatprep.subr.mxu0 0.0
      %149 = vmatpush1.msra.mxu0 0.0
      %150 = vmatprep.subr.mxu0 0.0
      %151 = vmatpush1.msra.mxu0 0.0
      %152 = vmatprep.subr.mxu0 0.0
      %153 = vmatpush1.msra.mxu0 0.0
      %154 = vmatprep.subr.mxu0 0.0
      %155 = vmatpush1.msra.mxu0 0.0
      %156 = vmatprep.subr.mxu0 0.0
      %157 = vmatpush1.msra.mxu0 0.0
      %158 = vmatprep.subr.mxu0 0.0
      %159 = vmatpush1.msra.mxu0 0.0
      %160 = vmatprep.subr.mxu0 0.0
      %161 = vmatpush1.msra.mxu0 0.0
      %162 = vmatprep.subr.mxu0 0.0
      %163 = vmatpush1.msra.mxu0 0.0
      %164 = vmatprep.subr.mxu0 0.0
      %165 = vmatpush1.msra.mxu0 0.0
      %166 = vmatprep.subr.mxu0 0.0
      %167 = vmatpush1.msra.mxu0 0.0
      %168 = vmatprep.subr.mxu0 0.0
      %169 = vmatpush1.msra.mxu0 0.0
      %170 = vmatprep.subr.mxu0 0.0
      %171 = vmatpush1.msra.mxu0 0.0
      %172 = vmatprep.subr.mxu0 0.0
      %173 = vmatpush1.msra.mxu0 0.0
      %174 = vmatprep.subr.mxu0 0.0
      %175 = vmatpush1.msra.mxu0 0.0
      %176 = vmatprep.subr.mxu0 0.0
      %177 = vmatpush1.msra.mxu0 0.0
      %178 = vmatprep.subr.mxu0 0.0
      %179 = vmatpush1.msra.mxu0 0.0
      %180 = vmatprep.subr.mxu0 0.0
      %181 = vmatpush1.msra.mxu0 0.0
      %182 = vmatprep.subr.mxu0 0.0
      %183 = vmatpush1.msra.mxu0 0.0
      %184 = vmatprep.subr.mxu0 0.0
      %185 = vmatpush1.msra.mxu0 0.0
      %186 = vmatprep.subr.mxu0 0.0
      %187 = vmatpush1.msra.mxu0 0.0
      %188 = vmatprep.subr.mxu0 0.0
      %189 = vmatpush1.msra.mxu0 0.0
      %190 = vmatprep.subr.mxu0 0.0
      %191 = vmatpush1.msra.mxu0 0.0
      %192 = vmatprep.subr.mxu0 0.0
      %193 = vmatpush1.msra.mxu0 0.0
      %194 = vmatprep.subr.mxu0 0.0
      %195 = vmatpush1.msra.mxu0 0.0
      %196 = vmatprep.subr.mxu0 0.0
      %197 = vmatpush1.msra.mxu0 0.0
      %198 = vmatprep.subr.mxu0 0.0
      %199 = vmatpush1.msra.mxu0 0.0
      %200 = vmatprep.mubr.f32.mxu0 0.0
      %201 = vmatmul.mubr.f32.gmra.mrb[0].mxu0 %v131
      %v202 = vpop.f32.mrb[0].mxu0
      %v203 = vadd.f32 %v127, %v202
      %v204 = vpop.f32.mrb[0].mxu0
      %205 = vmatprep.mubr.f32.mxu0 0.0
      %206 = vmatmul.mubr.f32.gmra.mrb[0].mxu0 %v134
      %v207 = vpop.f32.mrb[0].mxu0
      %v208 = vadd.f32 %v127, %v207
      %v209 = vpop.f32.mrb[0].mxu0
      %210 = vdwg.mxu0
      %211 = vst [vmem:[#allocation6] sm:$0xff] %v203
      %212 = vst [vmem:[#allocation6 + $0x8] sm:$0xff] %v208
      %v213 = vld [vmem:[%s1] sm:$0x3]
      %v214 = vld [vmem:[#allocation2] sm:$0x3]
      %v215 = vld [vmem:[#allocation3] sm:$0x3]
      %v216 = vld [vmem:[#allocation4] sm:$0x3]
      %v217 = vld [vmem:[#allocation5] sm:$0x3]
      %v218 = vstv %s94
      %vm219 = vcmp.lt.s32.totalorder %v218, %v213
      %v220 = vld [vmem:[#allocation6] sm:$0x1]
      %v221 = vld [vmem:[#allocation6 + $0x8] sm:$0x1]
      %v222 = vld [vmem:[#allocation14] sm:$0xff]
      %v223 = vld [vmem:[#allocation14 + $0x8] sm:$0xff]
      %v224 = vld [vmem:[#allocation14 + $0x10] sm:$0xff]
      %v225 = vld [vmem:[#allocation14 + $0x18] sm:$0xff]
      %vm226 = vcmask 261120
      %v228 = vsel %vm226, %v214, 0
      %230 = vmatprep.subr.mxu0 0.0
      %231 = vmatpush1.msra.mxu0 %v222
      %232 = vmatprep.subr.mxu0 0.0
      %233 = vmatpush1.msra.mxu0 %v223
      %234 = vmatprep.subr.mxu0 0.0
      %235 = vmatpush1.msra.mxu0 %v224
      %236 = vmatprep.subr.mxu0 0.0
      %237 = vmatpush1.msra.mxu0 %v225
      %238 = vmatprep.subr.mxu0 0.0
      %239 = vmatpush1.msra.mxu0 0.0
      %240 = vmatprep.subr.mxu0 0.0
      %241 = vmatpush1.msra.mxu0 0.0
      %242 = vmatprep.subr.mxu0 0.0
      %243 = vmatpush1.msra.mxu0 0.0
      %244 = vmatprep.subr.mxu0 0.0
      %245 = vmatpush1.msra.mxu0 0.0
      %246 = vmatprep.subr.mxu0 0.0
      %247 = vmatpush1.msra.mxu0 0.0
      %248 = vmatprep.subr.mxu0 0.0
      %249 = vmatpush1.msra.mxu0 0.0
      %250 = vmatprep.subr.mxu0 0.0
      %251 = vmatpush1.msra.mxu0 0.0
      %252 = vmatprep.subr.mxu0 0.0
      %253 = vmatpush1.msra.mxu0 0.0
      %254 = vmatprep.subr.mxu0 0.0
      %255 = vmatpush1.msra.mxu0 0.0
      %256 = vmatprep.subr.mxu0 0.0
      %257 = vmatpush1.msra.mxu0 0.0
      %258 = vmatprep.subr.mxu0 0.0
      %259 = vmatpush1.msra.mxu0 0.0
      %260 = vmatprep.subr.mxu0 0.0
      %261 = vmatpush1.msra.mxu0 0.0
      %262 = vmatprep.subr.mxu0 0.0
      %263 = vmatpush1.msra.mxu0 0.0
      %264 = vmatprep.subr.mxu0 0.0
      %265 = vmatpush1.msra.mxu0 0.0
      %266 = vmatprep.subr.mxu0 0.0
      %267 = vmatpush1.msra.mxu0 0.0
      %268 = vmatprep.subr.mxu0 0.0
      %269 = vmatpush1.msra.mxu0 0.0
      %270 = vmatprep.subr.mxu0 0.0
      %271 = vmatpush1.msra.mxu0 0.0
      %272 = vmatprep.subr.mxu0 0.0
      %273 = vmatpush1.msra.mxu0 0.0
      %274 = vmatprep.subr.mxu0 0.0
      %275 = vmatpush1.msra.mxu0 0.0
      %276 = vmatprep.subr.mxu0 0.0
      %277 = vmatpush1.msra.mxu0 0.0
      %278 = vmatprep.subr.mxu0 0.0
      %279 = vmatpush1.msra.mxu0 0.0
      %280 = vmatprep.subr.mxu0 0.0
      %281 = vmatpush1.msra.mxu0 0.0
      %282 = vmatprep.subr.mxu0 0.0
      %283 = vmatpush1.msra.mxu0 0.0
      %284 = vmatprep.subr.mxu0 0.0
      %285 = vmatpush1.msra.mxu0 0.0
      %286 = vmatprep.subr.mxu0 0.0
      %287 = vmatpush1.msra.mxu0 0.0
      %288 = vmatprep.subr.mxu0 0.0
      %289 = vmatpush1.msra.mxu0 0.0
      %290 = vmatprep.subr.mxu0 0.0
      %291 = vmatpush1.msra.mxu0 0.0
      %292 = vmatprep.subr.mxu0 0.0
      %293 = vmatpush1.msra.mxu0 0.0
      %294 = vmatprep.mubr.f32.mxu0 0.0
      %295 = vmatmul.mubr.f32.gmra.mrb[0].mxu0 %v228
      %v296 = vpop.f32.mrb[0].mxu0
      %v297 = vadd.f32 0.0, %v296
      %v298 = vpop.f32.mrb[0].mxu0
      %299 = vdwg.mxu0
      %v301 = vrot.slane %v297, 1
      %v304 = vadd.f32 %v220, %v297
      %v305 = vadd.f32 %v221, %v301
      %v306 = vxor.u32 %v304, 2147483648
      %v307 = vxor.u32 %v305, 2147483648
      %v308 = vmul.f32 %v306, 1.442695
      %v309 = vpow.pop %v308
      %v310 = vmul.f32 %v307, 1.442695
      %v311 = vpow.pop %v310
      %v312 = vadd.f32 %v309, 1.0
      %v313 = vadd.f32 %v311, 1.0
      %v314 = vrcp.pop %v312
      %v315 = vmul.f32 1.0, %v314
      %v316 = vrcp.pop %v313
      %v317 = vmul.f32 1.0, %v316
      %v318 = vtanh.pop %v304
      %v319 = vtanh.pop %v305
      %v321 = vrot.slane %v215, 1
      %322 = vrot.lane.b32.xlu0 %v215, 32
      %v323 = vpop.permute.xlu0 %322
      %324 = vrot.lane.b32.xlu0 %v321, 32
      %v325 = vpop.permute.xlu0 %324
      %v328 = vmul.f32 %v315, %v323
      %v329 = vmul.f32 %v317, %v325
      %332 = vrot.lane.b32.xlu0 %v318, 64
      %v333 = vpop.permute.xlu0 %332
      %334 = vrot.lane.b32.xlu0 %v319, 64
      %v335 = vpop.permute.xlu0 %334
      %v338 = vmul.f32 %v315, %v333
      %v339 = vmul.f32 %v317, %v335
      %342 = vrot.lane.b32.xlu0 %v338, 32
      %v343 = vpop.permute.xlu0 %342
      %344 = vrot.lane.b32.xlu0 %v339, 32
      %v345 = vpop.permute.xlu0 %344
      %v348 = vadd.f32 %v328, %v343
      %v349 = vadd.f32 %v329, %v345
      %v350 = vtanh.pop %v348
      %v351 = vtanh.pop %v349
      %354 = vrot.lane.b32.xlu0 %v350, 64
      %v355 = vpop.permute.xlu0 %354
      %356 = vrot.lane.b32.xlu0 %v351, 64
      %v357 = vpop.permute.xlu0 %356
      %v360 = vmul.f32 %v315, %v355
      %v361 = vmul.f32 %v317, %v357
      %v362 = vsel %vm219, 1, 0
      %363 = vset.pattern.permute.xlu0 0
      %364 = vperm.xlu0 %363, %v362
      %v365 = vpop.permute.xlu0 %364
      %vm366 = vcmp.eq.s32.totalorder %v365, 1
      %v369 = vrot.slane %v361, 7
      %vm370 = vcmask 1041409
      %v371 = vsel %vm370, %v369, %v360
      %372 = vrot.lane.b32.xlu0 %v371, 32
      %v373 = vpop.permute.xlu0 %372
      %v375 = vsel %vm366, %v373, %v214
      %v378 = vrot.slane %v349, 7
      %v379 = vsel %vm370, %v378, %v348
      %380 = vrot.lane.b32.xlu0 %v379, 96
      %v381 = vpop.permute.xlu0 %380
      %v383 = vsel %vm366, %v381, %v215
      %385 = vrot.lane.b32.xlu0 %v216, 32
      %v386 = vpop.permute.xlu0 %385
      %v388 = vsel %vm226, %v375, %v386
      %v389 = vld [vmem:[#allocation15] sm:$0xff]
      %v390 = vld [vmem:[#allocation15 + $0x8] sm:$0xff]
      %v391 = vld [vmem:[#allocation15 + $0x10] sm:$0xff]
      %v392 = vld [vmem:[#allocation15 + $0x18] sm:$0xff]
      %v393 = vld [vmem:[#allocation15 + $0x20] sm:$0xff]
      %v394 = vld [vmem:[#allocation15 + $0x28] sm:$0xff]
      %v395 = vld [vmem:[#allocation15 + $0x30] sm:$0xff]
      %v396 = vld [vmem:[#allocation15 + $0x38] sm:$0xff]
      %v397 = vld [vmem:[%s9] sm:$0x1]
      %v399 = vlaneseq
      %v400 = vshrl.u32 %v399, 7
      %v401 = vsub.s32 0, %v400
      %v402 = vrot.slane %v397, %v401
      %vm404 = vcmask 523264
      %v406 = vsel %vm404, %v388, 0
      %408 = vmatprep.subr.mxu0 0.0
      %409 = vmatpush1.msra.mxu0 %v389
      %410 = vmatprep.subr.mxu0 0.0
      %411 = vmatpush1.msra.mxu0 %v390
      %412 = vmatprep.subr.mxu0 0.0
      %413 = vmatpush1.msra.mxu0 %v391
      %414 = vmatprep.subr.mxu0 0.0
      %415 = vmatpush1.msra.mxu0 %v392
      %416 = vmatprep.subr.mxu0 0.0
      %417 = vmatpush1.msra.mxu0 %v393
      %418 = vmatprep.subr.mxu0 0.0
      %419 = vmatpush1.msra.mxu0 %v394
      %420 = vmatprep.subr.mxu0 0.0
      %421 = vmatpush1.msra.mxu0 %v395
      %422 = vmatprep.subr.mxu0 0.0
      %423 = vmatpush1.msra.mxu0 %v396
      %424 = vmatprep.subr.mxu0 0.0
      %425 = vmatpush1.msra.mxu0 0.0
      %426 = vmatprep.subr.mxu0 0.0
      %427 = vmatpush1.msra.mxu0 0.0
      %428 = vmatprep.subr.mxu0 0.0
      %429 = vmatpush1.msra.mxu0 0.0
      %430 = vmatprep.subr.mxu0 0.0
      %431 = vmatpush1.msra.mxu0 0.0
      %432 = vmatprep.subr.mxu0 0.0
      %433 = vmatpush1.msra.mxu0 0.0
      %434 = vmatprep.subr.mxu0 0.0
      %435 = vmatpush1.msra.mxu0 0.0
      %436 = vmatprep.subr.mxu0 0.0
      %437 = vmatpush1.msra.mxu0 0.0
      %438 = vmatprep.subr.mxu0 0.0
      %439 = vmatpush1.msra.mxu0 0.0
      %440 = vmatprep.subr.mxu0 0.0
      %441 = vmatpush1.msra.mxu0 0.0
      %442 = vmatprep.subr.mxu0 0.0
      %443 = vmatpush1.msra.mxu0 0.0
      %444 = vmatprep.subr.mxu0 0.0
      %445 = vmatpush1.msra.mxu0 0.0
      %446 = vmatprep.subr.mxu0 0.0
      %447 = vmatpush1.msra.mxu0 0.0
      %448 = vmatprep.subr.mxu0 0.0
      %449 = vmatpush1.msra.mxu0 0.0
      %450 = vmatprep.subr.mxu0 0.0
      %451 = vmatpush1.msra.mxu0 0.0
      %452 = vmatprep.subr.mxu0 0.0
      %453 = vmatpush1.msra.mxu0 0.0
      %454 = vmatprep.subr.mxu0 0.0
      %455 = vmatpush1.msra.mxu0 0.0
      %456 = vmatprep.subr.mxu0 0.0
      %457 = vmatpush1.msra.mxu0 0.0
      %458 = vmatprep.subr.mxu0 0.0
      %459 = vmatpush1.msra.mxu0 0.0
      %460 = vmatprep.subr.mxu0 0.0
      %461 = vmatpush1.msra.mxu0 0.0
      %462 = vmatprep.subr.mxu0 0.0
      %463 = vmatpush1.msra.mxu0 0.0
      %464 = vmatprep.subr.mxu0 0.0
      %465 = vmatpush1.msra.mxu0 0.0
      %466 = vmatprep.subr.mxu0 0.0
      %467 = vmatpush1.msra.mxu0 0.0
      %468 = vmatprep.subr.mxu0 0.0
      %469 = vmatpush1.msra.mxu0 0.0
      %470 = vmatprep.subr.mxu0 0.0
      %471 = vmatpush1.msra.mxu0 0.0
      %472 = vmatprep.mubr.f32.mxu0 0.0
      %473 = vmatmul.mubr.f32.gmra.mrb[0].mxu0 %v406
      %v474 = vpop.f32.mrb[0].mxu0
      %v475 = vadd.f32 %v402, %v474
      %v476 = vpop.f32.mrb[0].mxu0
      %477 = vdwg.mxu0
      %v478 = vxor.u32 %v475, 2147483648
      %v479 = vmul.f32 %v478, 1.442695
      %v480 = vpow.pop %v479
      %v481 = vadd.f32 %v480, 1.0
      %v482 = vrcp.pop %v481
      %v483 = vmul.f32 1.0, %v482
      %v484 = vtanh.pop %v475
      %486 = vrot.lane.b32.xlu0 %v217, 32
      %v487 = vpop.permute.xlu0 %486
      %v489 = vmul.f32 %v483, %v487
      %491 = vrot.lane.b32.xlu0 %v484, 64
      %v492 = vpop.permute.xlu0 %491
      %v494 = vmul.f32 %v483, %v492
      %496 = vrot.lane.b32.xlu0 %v494, 32
      %v497 = vpop.permute.xlu0 %496
      %v499 = vadd.f32 %v489, %v497
      %v500 = vtanh.pop %v499
      %502 = vrot.lane.b32.xlu0 %v500, 64
      %v503 = vpop.permute.xlu0 %502
      %v505 = vmul.f32 %v483, %v503
      %506 = vrot.lane.b32.xlu0 %v216, 96
      %v507 = vpop.permute.xlu0 %506
      %v509 = vsel %vm366, %v505, %v507
      %v510 = vsel %vm366, %v499, %v487
      %v511 = vsel %vm366, %v505, -1.0
      %v514 = vunpack.c.l.s4 1966171168
      %v515 = vunpack.c.0.s8 %v514
      %v516 = vlaneseq
      %v517 = vshrl.u32 %v516, 7
      %v518 = vsub.s32 %v515, %v517
      %v519 = vrot.slane %v511, %v518
      %v520 = vcombine.high %v519, %v519
      %v522 = vunpack.c.l.s4 1966171168
      %v523 = vunpack.c.0.s8 %v522
      %v524 = vlaneseq
      %v525 = vshrl.u32 %v524, 7
      %v526 = vsub.s32 %v523, %v525
      %v527 = vrot.slane %v519, %v526
      %v529 = vunpack.c.l.s4 1966171168
      %v530 = vunpack.c.0.s8 %v529
      %v531 = vlaneseq
      %v532 = vshrl.u32 %v531, 7
      %v533 = vsub.s32 %v530, %v532
      %v534 = vrot.slane %v520, %v533
      %v535 = vlaneseq
      %v536 = vshrl.u32 %v535, 7
      %v537 = vsub.s32 0, %v536
      %v538 = vrot.slane %v527, %v537
      %v539 = vlaneseq
      %v540 = vshrl.u32 %v539, 7
      %v541 = vsub.s32 0, %v540
      %v542 = vrot.slane %v534, %v541
      %543 = vrot.lane.b32.xlu0 %v538, 32
      %v544 = vpop.permute.xlu0 %543
      %545 = vrot.lane.b32.xlu0 %v542, 32
      %v546 = vpop.permute.xlu0 %545
      %vm549 = vcmask 253952
      %550 = vst.msk [vmem:[#allocation17] sm:$0x1] %vm549, %v544
      %551 = vst.msk [vmem:[#allocation17 + $0x8] sm:$0x1] %vm549, %v546
      %s552 = sadd.s32 %s94, 1
      %v553 = vstv %s552
      %vm554 = vcmp.lt.s32.totalorder %v553, %v213
      %v555 = vld [vmem:[#allocation6 + $0x1] sm:$0x1]
      %v556 = vld [vmem:[#allocation6 + $0x9] sm:$0x1]
      %v557 = vld [vmem:[#allocation14] sm:$0xff]
      %v558 = vld [vmem:[#allocation14 + $0x8] sm:$0xff]
      %v559 = vld [vmem:[#allocation14 + $0x10] sm:$0xff]
      %v560 = vld [vmem:[#allocation14 + $0x18] sm:$0xff]
      %v562 = vsel %vm226, %v375, 0
      %564 = vmatprep.subr.mxu0 0.0
      %565 = vmatpush1.msra.mxu0 %v557
      %566 = vmatprep.subr.mxu0 0.0
      %567 = vmatpush1.msra.mxu0 %v558
      %568 = vmatprep.subr.mxu0 0.0
      %569 = vmatpush1.msra.mxu0 %v559
      %570 = vmatprep.subr.mxu0 0.0
      %571 = vmatpush1.msra.mxu0 %v560
      %572 = vmatprep.subr.mxu0 0.0
      %573 = vmatpush1.msra.mxu0 0.0
      %574 = vmatprep.subr.mxu0 0.0
      %575 = vmatpush1.msra.mxu0 0.0
      %576 = vmatprep.subr.mxu0 0.0
      %577 = vmatpush1.msra.mxu0 0.0
      %578 = vmatprep.subr.mxu0 0.0
      %579 = vmatpush1.msra.mxu0 0.0
      %580 = vmatprep.subr.mxu0 0.0
      %581 = vmatpush1.msra.mxu0 0.0
      %582 = vmatprep.subr.mxu0 0.0
      %583 = vmatpush1.msra.mxu0 0.0
      %584 = vmatprep.subr.mxu0 0.0
      %585 = vmatpush1.msra.mxu0 0.0
      %586 = vmatprep.subr.mxu0 0.0
      %587 = vmatpush1.msra.mxu0 0.0
      %588 = vmatprep.subr.mxu0 0.0
      %589 = vmatpush1.msra.mxu0 0.0
      %590 = vmatprep.subr.mxu0 0.0
      %591 = vmatpush1.msra.mxu0 0.0
      %592 = vmatprep.subr.mxu0 0.0
      %593 = vmatpush1.msra.mxu0 0.0
      %594 = vmatprep.subr.mxu0 0.0
      %595 = vmatpush1.msra.mxu0 0.0
      %596 = vmatprep.subr.mxu0 0.0
      %597 = vmatpush1.msra.mxu0 0.0
      %598 = vmatprep.subr.mxu0 0.0
      %599 = vmatpush1.msra.mxu0 0.0
      %600 = vmatprep.subr.mxu0 0.0
      %601 = vmatpush1.msra.mxu0 0.0
      %602 = vmatprep.subr.mxu0 0.0
      %603 = vmatpush1.msra.mxu0 0.0
      %604 = vmatprep.subr.mxu0 0.0
      %605 = vmatpush1.msra.mxu0 0.0
      %606 = vmatprep.subr.mxu0 0.0
      %607 = vmatpush1.msra.mxu0 0.0
      %608 = vmatprep.subr.mxu0 0.0
      %609 = vmatpush1.msra.mxu0 0.0
      %610 = vmatprep.subr.mxu0 0.0
      %611 = vmatpush1.msra.mxu0 0.0
      %612 = vmatprep.subr.mxu0 0.0
      %613 = vmatpush1.msra.mxu0 0.0
      %614 = vmatprep.subr.mxu0 0.0
      %615 = vmatpush1.msra.mxu0 0.0
      %616 = vmatprep.subr.mxu0 0.0
      %617 = vmatpush1.msra.mxu0 0.0
      %618 = vmatprep.subr.mxu0 0.0
      %619 = vmatpush1.msra.mxu0 0.0
      %620 = vmatprep.subr.mxu0 0.0
      %621 = vmatpush1.msra.mxu0 0.0
      %622 = vmatprep.subr.mxu0 0.0
      %623 = vmatpush1.msra.mxu0 0.0
      %624 = vmatprep.subr.mxu0 0.0
      %625 = vmatpush1.msra.mxu0 0.0
      %626 = vmatprep.subr.mxu0 0.0
      %627 = vmatpush1.msra.mxu0 0.0
      %628 = vmatprep.mubr.f32.mxu0 0.0
      %629 = vmatmul.mubr.f32.gmra.mrb[0].mxu0 %v562
      %v630 = vpop.f32.mrb[0].mxu0
      %v631 = vadd.f32 0.0, %v630
      %v632 = vpop.f32.mrb[0].mxu0
      %633 = vdwg.mxu0
      %v635 = vrot.slane %v631, 1
      %v638 = vadd.f32 %v555, %v631
      %v639 = vadd.f32 %v556, %v635
      %v640 = vxor.u32 %v638, 2147483648
      %v641 = vxor.u32 %v639, 2147483648
      %v642 = vmul.f32 %v640, 1.442695
      %v643 = vpow.pop %v642
      %v644 = vmul.f32 %v641, 1.442695
      %v645 = vpow.pop %v644
      %v646 = vadd.f32 %v643, 1.0
      %v647 = vadd.f32 %v645, 1.0
      %v648 = vrcp.pop %v646
      %v649 = vmul.f32 1.0, %v648
      %v650 = vrcp.pop %v647
      %v651 = vmul.f32 1.0, %v650
      %v652 = vtanh.pop %v638
      %v653 = vtanh.pop %v639
      %v655 = vrot.slane %v383, 1
      %656 = vrot.lane.b32.xlu0 %v383, 32
      %v657 = vpop.permute.xlu0 %656
      %658 = vrot.lane.b32.xlu0 %v655, 32
      %v659 = vpop.permute.xlu0 %658
      %v662 = vmul.f32 %v649, %v657
      %v663 = vmul.f32 %v651, %v659
      %666 = vrot.lane.b32.xlu0 %v652, 64
      %v667 = vpop.permute.xlu0 %666
      %668 = vrot.lane.b32.xlu0 %v653, 64
      %v669 = vpop.permute.xlu0 %668
      %v672 = vmul.f32 %v649, %v667
      %v673 = vmul.f32 %v651, %v669
      %676 = vrot.lane.b32.xlu0 %v672, 32
      %v677 = vpop.permute.xlu0 %676
      %678 = vrot.lane.b32.xlu0 %v673, 32
      %v679 = vpop.permute.xlu0 %678
      %v682 = vadd.f32 %v662, %v677
      %v683 = vadd.f32 %v663, %v679
      %v684 = vtanh.pop %v682
      %v685 = vtanh.pop %v683
      %688 = vrot.lane.b32.xlu0 %v684, 64
      %v689 = vpop.permute.xlu0 %688
      %690 = vrot.lane.b32.xlu0 %v685, 64
      %v691 = vpop.permute.xlu0 %690
      %v694 = vmul.f32 %v649, %v689
      %v695 = vmul.f32 %v651, %v691
      %v696 = vsel %vm554, 1, 0
      %697 = vset.pattern.permute.xlu0 0
      %698 = vperm.xlu0 %697, %v696
      %v699 = vpop.permute.xlu0 %698
      %vm700 = vcmp.eq.s32.totalorder %v699, 1
      %v703 = vrot.slane %v695, 7
      %v704 = vsel %vm370, %v703, %v694
      %705 = vrot.lane.b32.xlu0 %v704, 32
      %v706 = vpop.permute.xlu0 %705
      %v708 = vsel %vm700, %v706, %v375
      %v711 = vrot.slane %v683, 7
      %v712 = vsel %vm370, %v711, %v682
      %713 = vrot.lane.b32.xlu0 %v712, 96
      %v714 = vpop.permute.xlu0 %713
      %v716 = vsel %vm700, %v714, %v383
      %718 = vrot.lane.b32.xlu0 %v509, 64
      %v719 = vpop.permute.xlu0 %718
      %v721 = vsel %vm226, %v708, %v719
      %v722 = vld [vmem:[#allocation15] sm:$0xff]
      %v723 = vld [vmem:[#allocation15 + $0x8] sm:$0xff]
      %v724 = vld [vmem:[#allocation15 + $0x10] sm:$0xff]
      %v725 = vld [vmem:[#allocation15 + $0x18] sm:$0xff]
      %v726 = vld [vmem:[#allocation15 + $0x20] sm:$0xff]
      %v727 = vld [vmem:[#allocation15 + $0x28] sm:$0xff]
      %v728 = vld [vmem:[#allocation15 + $0x30] sm:$0xff]
      %v729 = vld [vmem:[#allocation15 + $0x38] sm:$0xff]
      %v730 = vld [vmem:[%s9] sm:$0x1]
      %v732 = vlaneseq
      %v733 = vshrl.u32 %v732, 7
      %v734 = vsub.s32 0, %v733
      %v735 = vrot.slane %v730, %v734
      %v738 = vsel %vm404, %v721, 0
      %740 = vmatprep.subr.mxu0 0.0
      %741 = vmatpush1.msra.mxu0 %v722
      %742 = vmatprep.subr.mxu0 0.0
      %743 = vmatpush1.msra.mxu0 %v723
      %744 = vmatprep.subr.mxu0 0.0
      %745 = vmatpush1.msra.mxu0 %v724
      %746 = vmatprep.subr.mxu0 0.0
      %747 = vmatpush1.msra.mxu0 %v725
      %748 = vmatprep.subr.mxu0 0.0
      %749 = vmatpush1.msra.mxu0 %v726
      %750 = vmatprep.subr.mxu0 0.0
      %751 = vmatpush1.msra.mxu0 %v727
      %752 = vmatprep.subr.mxu0 0.0
      %753 = vmatpush1.msra.mxu0 %v728
      %754 = vmatprep.subr.mxu0 0.0
      %755 = vmatpush1.msra.mxu0 %v729
      %756 = vmatprep.subr.mxu0 0.0
      %757 = vmatpush1.msra.mxu0 0.0
      %758 = vmatprep.subr.mxu0 0.0
      %759 = vmatpush1.msra.mxu0 0.0
      %760 = vmatprep.subr.mxu0 0.0
      %761 = vmatpush1.msra.mxu0 0.0
      %762 = vmatprep.subr.mxu0 0.0
      %763 = vmatpush1.msra.mxu0 0.0
      %764 = vmatprep.subr.mxu0 0.0
      %765 = vmatpush1.msra.mxu0 0.0
      %766 = vmatprep.subr.mxu0 0.0
      %767 = vmatpush1.msra.mxu0 0.0
      %768 = vmatprep.subr.mxu0 0.0
      %769 = vmatpush1.msra.mxu0 0.0
      %770 = vmatprep.subr.mxu0 0.0
      %771 = vmatpush1.msra.mxu0 0.0
      %772 = vmatprep.subr.mxu0 0.0
      %773 = vmatpush1.msra.mxu0 0.0
      %774 = vmatprep.subr.mxu0 0.0
      %775 = vmatpush1.msra.mxu0 0.0
      %776 = vmatprep.subr.mxu0 0.0
      %777 = vmatpush1.msra.mxu0 0.0
      %778 = vmatprep.subr.mxu0 0.0
      %779 = vmatpush1.msra.mxu0 0.0
      %780 = vmatprep.subr.mxu0 0.0
      %781 = vmatpush1.msra.mxu0 0.0
      %782 = vmatprep.subr.mxu0 0.0
      %783 = vmatpush1.msra.mxu0 0.0
      %784 = vmatprep.subr.mxu0 0.0
      %785 = vmatpush1.msra.mxu0 0.0
      %786 = vmatprep.subr.mxu0 0.0
      %787 = vmatpush1.msra.mxu0 0.0
      %788 = vmatprep.subr.mxu0 0.0
      %789 = vmatpush1.msra.mxu0 0.0
      %790 = vmatprep.subr.mxu0 0.0
      %791 = vmatpush1.msra.mxu0 0.0
      %792 = vmatprep.subr.mxu0 0.0
      %793 = vmatpush1.msra.mxu0 0.0
      %794 = vmatprep.subr.mxu0 0.0
      %795 = vmatpush1.msra.mxu0 0.0
      %796 = vmatprep.subr.mxu0 0.0
      %797 = vmatpush1.msra.mxu0 0.0
      %798 = vmatprep.subr.mxu0 0.0
      %799 = vmatpush1.msra.mxu0 0.0
      %800 = vmatprep.subr.mxu0 0.0
      %801 = vmatpush1.msra.mxu0 0.0
      %802 = vmatprep.subr.mxu0 0.0
      %803 = vmatpush1.msra.mxu0 0.0
      %804 = vmatprep.mubr.f32.mxu0 0.0
      %805 = vmatmul.mubr.f32.gmra.mrb[0].mxu0 %v738
      %v806 = vpop.f32.mrb[0].mxu0
      %v807 = vadd.f32 %v735, %v806
      %v808 = vpop.f32.mrb[0].mxu0
      %809 = vdwg.mxu0
      %v810 = vxor.u32 %v807, 2147483648
      %v811 = vmul.f32 %v810, 1.442695
      %v812 = vpow.pop %v811
      %v813 = vadd.f32 %v812, 1.0
      %v814 = vrcp.pop %v813
      %v815 = vmul.f32 1.0, %v814
      %v816 = vtanh.pop %v807
      %v817 = vmul.f32 %v815, %v510
      %819 = vrot.lane.b32.xlu0 %v816, 64
      %v820 = vpop.permute.xlu0 %819
      %v822 = vmul.f32 %v815, %v820
      %824 = vrot.lane.b32.xlu0 %v822, 32
      %v825 = vpop.permute.xlu0 %824
      %v827 = vadd.f32 %v817, %v825
      %v828 = vtanh.pop %v827
      %830 = vrot.lane.b32.xlu0 %v828, 64
      %v831 = vpop.permute.xlu0 %830
      %v833 = vmul.f32 %v815, %v831
      %v834 = vsel %vm700, %v833, %v509
      %v835 = vsel %vm700, %v827, %v510
      %v836 = vsel %vm700, %v833, -1.0
      %v839 = vunpack.c.l.s4 1966171168
      %v840 = vunpack.c.0.s8 %v839
      %v841 = vlaneseq
      %v842 = vshrl.u32 %v841, 7
      %v843 = vsub.s32 %v840, %v842
      %v844 = vrot.slane %v836, %v843
      %v845 = vcombine.high %v844, %v844
      %v847 = vunpack.c.l.s4 1966171168
      %v848 = vunpack.c.0.s8 %v847
      %v849 = vlaneseq
      %v850 = vshrl.u32 %v849, 7
      %v851 = vsub.s32 %v848, %v850
      %v852 = vrot.slane %v844, %v851
      %v854 = vunpack.c.l.s4 1966171168
      %v855 = vunpack.c.0.s8 %v854
      %v856 = vlaneseq
      %v857 = vshrl.u32 %v856, 7
      %v858 = vsub.s32 %v855, %v857
      %v859 = vrot.slane %v845, %v858
      %v860 = vlaneseq
      %v861 = vshrl.u32 %v860, 7
      %v862 = vsub.s32 0, %v861
      %v863 = vrot.slane %v852, %v862
      %v864 = vlaneseq
      %v865 = vshrl.u32 %v864, 7
      %v866 = vsub.s32 0, %v865
      %v867 = vrot.slane %v859, %v866
      %868 = vrot.lane.b32.xlu0 %v863, 32
      %v869 = vpop.permute.xlu0 %868
      %870 = vrot.lane.b32.xlu0 %v867, 32
      %v871 = vpop.permute.xlu0 %870
      %874 = vst.msk [vmem:[#allocation17 + $0x1] sm:$0x1] %vm549, %v869
      %875 = vst.msk [vmem:[#allocation17 + $0x9] sm:$0x1] %vm549, %v871
      %s876 = sadd.s32 %s94, 2
      %v877 = vstv %s876
      %vm878 = vcmp.lt.s32.totalorder %v877, %v213
      %v879 = vld [vmem:[#allocation6 + $0x2] sm:$0x1]
      %v880 = vld [vmem:[#allocation6 + $0xa] sm:$0x1]
      %v881 = vld [vmem:[#allocation14] sm:$0xff]
      %v882 = vld [vmem:[#allocation14 + $0x8] sm:$0xff]
      %v883 = vld [vmem:[#allocation14 + $0x10] sm:$0xff]
      %v884 = vld [vmem:[#allocation14 + $0x18] sm:$0xff]
      %v886 = vsel %vm226, %v708, 0
      %888 = vmatprep.subr.mxu0 0.0
      %889 = vmatpush1.msra.mxu0 %v881
      %890 = vmatprep.subr.mxu0 0.0
      %891 = vmatpush1.msra.mxu0 %v882
      %892 = vmatprep.subr.mxu0 0.0
      %893 = vmatpush1.msra.mxu0 %v883
      %894 = vmatprep.subr.mxu0 0.0
      %895 = vmatpush1.msra.mxu0 %v884
      %896 = vmatprep.subr.mxu0 0.0
      %897 = vmatpush1.msra.mxu0 0.0
      %898 = vmatprep.subr.mxu0 0.0
      %899 = vmatpush1.msra.mxu0 0.0
      %900 = vmatprep.subr.mxu0 0.0
      %901 = vmatpush1.msra.mxu0 0.0
      %902 = vmatprep.subr.mxu0 0.0
      %903 = vmatpush1.msra.mxu0 0.0
      %904 = vmatprep.subr.mxu0 0.0
      %905 = vmatpush1.msra.mxu0 0.0
      %906 = vmatprep.subr.mxu0 0.0
      %907 = vmatpush1.msra.mxu0 0.0
      %908 = vmatprep.subr.mxu0 0.0
      %909 = vmatpush1.msra.mxu0 0.0
      %910 = vmatprep.subr.mxu0 0.0
      %911 = vmatpush1.msra.mxu0 0.0
      %912 = vmatprep.subr.mxu0 0.0
      %913 = vmatpush1.msra.mxu0 0.0
      %914 = vmatprep.subr.mxu0 0.0
      %915 = vmatpush1.msra.mxu0 0.0
      %916 = vmatprep.subr.mxu0 0.0
      %917 = vmatpush1.msra.mxu0 0.0
      %918 = vmatprep.subr.mxu0 0.0
      %919 = vmatpush1.msra.mxu0 0.0
      %920 = vmatprep.subr.mxu0 0.0
      %921 = vmatpush1.msra.mxu0 0.0
      %922 = vmatprep.subr.mxu0 0.0
      %923 = vmatpush1.msra.mxu0 0.0
      %924 = vmatprep.subr.mxu0 0.0
      %925 = vmatpush1.msra.mxu0 0.0
      %926 = vmatprep.subr.mxu0 0.0
      %927 = vmatpush1.msra.mxu0 0.0
      %928 = vmatprep.subr.mxu0 0.0
      %929 = vmatpush1.msra.mxu0 0.0
      %930 = vmatprep.subr.mxu0 0.0
      %931 = vmatpush1.msra.mxu0 0.0
      %932 = vmatprep.subr.mxu0 0.0
      %933 = vmatpush1.msra.mxu0 0.0
      %934 = vmatprep.subr.mxu0 0.0
      %935 = vmatpush1.msra.mxu0 0.0
      %936 = vmatprep.subr.mxu0 0.0
      %937 = vmatpush1.msra.mxu0 0.0
      %938 = vmatprep.subr.mxu0 0.0
      %939 = vmatpush1.msra.mxu0 0.0
      %940 = vmatprep.subr.mxu0 0.0
      %941 = vmatpush1.msra.mxu0 0.0
      %942 = vmatprep.subr.mxu0 0.0
      %943 = vmatpush1.msra.mxu0 0.0
      %944 = vmatprep.subr.mxu0 0.0
      %945 = vmatpush1.msra.mxu0 0.0
      %946 = vmatprep.subr.mxu0 0.0
      %947 = vmatpush1.msra.mxu0 0.0
      %948 = vmatprep.subr.mxu0 0.0
      %949 = vmatpush1.msra.mxu0 0.0
      %950 = vmatprep.subr.mxu0 0.0
      %951 = vmatpush1.msra.mxu0 0.0
      %952 = vmatprep.mubr.f32.mxu0 0.0
      %953 = vmatmul.mubr.f32.gmra.mrb[0].mxu0 %v886
      %v954 = vpop.f32.mrb[0].mxu0
      %v955 = vadd.f32 0.0, %v954
      %v956 = vpop.f32.mrb[0].mxu0
      %957 = vdwg.mxu0
      %v959 = vrot.slane %v955, 1
      %v962 = vadd.f32 %v879, %v955
      %v963 = vadd.f32 %v880, %v959
      %v964 = vxor.u32 %v962, 2147483648
      %v965 = vxor.u32 %v963, 2147483648
      %v966 = vmul.f32 %v964, 1.442695
      %v967 = vpow.pop %v966
      %v968 = vmul.f32 %v965, 1.442695
      %v969 = vpow.pop %v968
      %v970 = vadd.f32 %v967, 1.0
      %v971 = vadd.f32 %v969, 1.0
      %v972 = vrcp.pop %v970
      %v973 = vmul.f32 1.0, %v972
      %v974 = vrcp.pop %v971
      %v975 = vmul.f32 1.0, %v974
      %v976 = vtanh.pop %v962
      %v977 = vtanh.pop %v963
      %v979 = vrot.slane %v716, 1
      %980 = vrot.lane.b32.xlu0 %v716, 32
      %v981 = vpop.permute.xlu0 %980
      %982 = vrot.lane.b32.xlu0 %v979, 32
      %v983 = vpop.permute.xlu0 %982
      %v986 = vmul.f32 %v973, %v981
      %v987 = vmul.f32 %v975, %v983
      %990 = vrot.lane.b32.xlu0 %v976, 64
      %v991 = vpop.permute.xlu0 %990
      %992 = vrot.lane.b32.xlu0 %v977, 64
      %v993 = vpop.permute.xlu0 %992
      %v996 = vmul.f32 %v973, %v991
      %v997 = vmul.f32 %v975, %v993
      %1000 = vrot.lane.b32.xlu0 %v996, 32
      %v1001 = vpop.permute.xlu0 %1000
      %1002 = vrot.lane.b32.xlu0 %v997, 32
      %v1003 = vpop.permute.xlu0 %1002
      %v1006 = vadd.f32 %v986, %v1001
      %v1007 = vadd.f32 %v987, %v1003
      %v1008 = vtanh.pop %v1006
      %v1009 = vtanh.pop %v1007
      %1012 = vrot.lane.b32.xlu0 %v1008, 64
      %v1013 = vpop.permute.xlu0 %1012
      %1014 = vrot.lane.b32.xlu0 %v1009, 64
      %v1015 = vpop.permute.xlu0 %1014
      %v1018 = vmul.f32 %v973, %v1013
      %v1019 = vmul.f32 %v975, %v1015
      %v1020 = vsel %vm878, 1, 0
      %1021 = vset.pattern.permute.xlu0 0
      %1022 = vperm.xlu0 %1021, %v1020
      %v1023 = vpop.permute.xlu0 %1022
      %vm1024 = vcmp.eq.s32.totalorder %v1023, 1
      %v1027 = vrot.slane %v1019, 7
      %v1028 = vsel %vm370, %v1027, %v1018
      %1029 = vrot.lane.b32.xlu0 %v1028, 32
      %v1030 = vpop.permute.xlu0 %1029
      %v1032 = vsel %vm1024, %v1030, %v708
      %v1035 = vrot.slane %v1007, 7
      %v1036 = vsel %vm370, %v1035, %v1006
      %1037 = vrot.lane.b32.xlu0 %v1036, 96
      %v1038 = vpop.permute.xlu0 %1037
      %v1040 = vsel %vm1024, %v1038, %v716
      %1042 = vrot.lane.b32.xlu0 %v834, 64
      %v1043 = vpop.permute.xlu0 %1042
      %v1045 = vsel %vm226, %v1032, %v1043
      %v1046 = vld [vmem:[#allocation15] sm:$0xff]
      %v1047 = vld [vmem:[#allocation15 + $0x8] sm:$0xff]
      %v1048 = vld [vmem:[#allocation15 + $0x10] sm:$0xff]
      %v1049 = vld [vmem:[#allocation15 + $0x18] sm:$0xff]
      %v1050 = vld [vmem:[#allocation15 + $0x20] sm:$0xff]
      %v1051 = vld [vmem:[#allocation15 + $0x28] sm:$0xff]
      %v1052 = vld [vmem:[#allocation15 + $0x30] sm:$0xff]
      %v1053 = vld [vmem:[#allocation15 + $0x38] sm:$0xff]
      %v1054 = vld [vmem:[%s9] sm:$0x1]
      %v1056 = vlaneseq
      %v1057 = vshrl.u32 %v1056, 7
      %v1058 = vsub.s32 0, %v1057
      %v1059 = vrot.slane %v1054, %v1058
      %v1062 = vsel %vm404, %v1045, 0
      %1064 = vmatprep.subr.mxu0 0.0
      %1065 = vmatpush1.msra.mxu0 %v1046
      %1066 = vmatprep.subr.mxu0 0.0
      %1067 = vmatpush1.msra.mxu0 %v1047
      %1068 = vmatprep.subr.mxu0 0.0
      %1069 = vmatpush1.msra.mxu0 %v1048
      %1070 = vmatprep.subr.mxu0 0.0
      %1071 = vmatpush1.msra.mxu0 %v1049
      %1072 = vmatprep.subr.mxu0 0.0
      %1073 = vmatpush1.msra.mxu0 %v1050
      %1074 = vmatprep.subr.mxu0 0.0
      %1075 = vmatpush1.msra.mxu0 %v1051
      %1076 = vmatprep.subr.mxu0 0.0
      %1077 = vmatpush1.msra.mxu0 %v1052
      %1078 = vmatprep.subr.mxu0 0.0
      %1079 = vmatpush1.msra.mxu0 %v1053
      %1080 = vmatprep.subr.mxu0 0.0
      %1081 = vmatpush1.msra.mxu0 0.0
      %1082 = vmatprep.subr.mxu0 0.0
      %1083 = vmatpush1.msra.mxu0 0.0
      %1084 = vmatprep.subr.mxu0 0.0
      %1085 = vmatpush1.msra.mxu0 0.0
      %1086 = vmatprep.subr.mxu0 0.0
      %1087 = vmatpush1.msra.mxu0 0.0
      %1088 = vmatprep.subr.mxu0 0.0
      %1089 = vmatpush1.msra.mxu0 0.0
      %1090 = vmatprep.subr.mxu0 0.0
      %1091 = vmatpush1.msra.mxu0 0.0
      %1092 = vmatprep.subr.mxu0 0.0
      %1093 = vmatpush1.msra.mxu0 0.0
      %1094 = vmatprep.subr.mxu0 0.0
      %1095 = vmatpush1.msra.mxu0 0.0
      %1096 = vmatprep.subr.mxu0 0.0
      %1097 = vmatpush1.msra.mxu0 0.0
      %1098 = vmatprep.subr.mxu0 0.0
      %1099 = vmatpush1.msra.mxu0 0.0
      %1100 = vmatprep.subr.mxu0 0.0
      %1101 = vmatpush1.msra.mxu0 0.0
      %1102 = vmatprep.subr.mxu0 0.0
      %1103 = vmatpush1.msra.mxu0 0.0
      %1104 = vmatprep.subr.mxu0 0.0
      %1105 = vmatpush1.msra.mxu0 0.0
      %1106 = vmatprep.subr.mxu0 0.0
      %1107 = vmatpush1.msra.mxu0 0.0
      %1108 = vmatprep.subr.mxu0 0.0
      %1109 = vmatpush1.msra.mxu0 0.0
      %1110 = vmatprep.subr.mxu0 0.0
      %1111 = vmatpush1.msra.mxu0 0.0
      %1112 = vmatprep.subr.mxu0 0.0
      %1113 = vmatpush1.msra.mxu0 0.0
      %1114 = vmatprep.subr.mxu0 0.0
      %1115 = vmatpush1.msra.mxu0 0.0
      %1116 = vmatprep.subr.mxu0 0.0
      %1117 = vmatpush1.msra.mxu0 0.0
      %1118 = vmatprep.subr.mxu0 0.0
      %1119 = vmatpush1.msra.mxu0 0.0
      %1120 = vmatprep.subr.mxu0 0.0
      %1121 = vmatpush1.msra.mxu0 0.0
      %1122 = vmatprep.subr.mxu0 0.0
      %1123 = vmatpush1.msra.mxu0 0.0
      %1124 = vmatprep.subr.mxu0 0.0
      %1125 = vmatpush1.msra.mxu0 0.0
      %1126 = vmatprep.subr.mxu0 0.0
      %1127 = vmatpush1.msra.mxu0 0.0
      %1128 = vmatprep.mubr.f32.mxu0 0.0
      %1129 = vmatmul.mubr.f32.gmra.mrb[0].mxu0 %v1062
      %v1130 = vpop.f32.mrb[0].mxu0
      %v1131 = vadd.f32 %v1059, %v1130
      %v1132 = vpop.f32.mrb[0].mxu0
      %1133 = vdwg.mxu0
      %v1134 = vxor.u32 %v1131, 2147483648
      %v1135 = vmul.f32 %v1134, 1.442695
      %v1136 = vpow.pop %v1135
      %v1137 = vadd.f32 %v1136, 1.0
      %v1138 = vrcp.pop %v1137
      %v1139 = vmul.f32 1.0, %v1138
      %v1140 = vtanh.pop %v1131
      %v1141 = vmul.f32 %v1139, %v835
      %1143 = vrot.lane.b32.xlu0 %v1140, 64
      %v1144 = vpop.permute.xlu0 %1143
      %v1146 = vmul.f32 %v1139, %v1144
      %1148 = vrot.lane.b32.xlu0 %v1146, 32
      %v1149 = vpop.permute.xlu0 %1148
      %v1151 = vadd.f32 %v1141, %v1149
      %v1152 = vtanh.pop %v1151
      %1154 = vrot.lane.b32.xlu0 %v1152, 64
      %v1155 = vpop.permute.xlu0 %1154
      %v1157 = vmul.f32 %v1139, %v1155
      %v1158 = vsel %vm1024, %v1157, %v834
      %v1159 = vsel %vm1024, %v1151, %v835
      %v1160 = vsel %vm1024, %v1157, -1.0
      %v1163 = vunpack.c.l.s4 1966171168
      %v1164 = vunpack.c.0.s8 %v1163
      %v1165 = vlaneseq
      %v1166 = vshrl.u32 %v1165, 7
      %v1167 = vsub.s32 %v1164, %v1166
      %v1168 = vrot.slane %v1160, %v1167
      %v1169 = vcombine.high %v1168, %v1168
      %v1171 = vunpack.c.l.s4 1966171168
      %v1172 = vunpack.c.0.s8 %v1171
      %v1173 = vlaneseq
      %v1174 = vshrl.u32 %v1173, 7
      %v1175 = vsub.s32 %v1172, %v1174
      %v1176 = vrot.slane %v1168, %v1175
      %v1178 = vunpack.c.l.s4 1966171168
      %v1179 = vunpack.c.0.s8 %v1178
      %v1180 = vlaneseq
      %v1181 = vshrl.u32 %v1180, 7
      %v1182 = vsub.s32 %v1179, %v1181
      %v1183 = vrot.slane %v1169, %v1182
      %v1184 = vlaneseq
      %v1185 = vshrl.u32 %v1184, 7
      %v1186 = vsub.s32 0, %v1185
      %v1187 = vrot.slane %v1176, %v1186
      %v1188 = vlaneseq
      %v1189 = vshrl.u32 %v1188, 7
      %v1190 = vsub.s32 0, %v1189
      %v1191 = vrot.slane %v1183, %v1190
      %1192 = vrot.lane.b32.xlu0 %v1187, 32
      %v1193 = vpop.permute.xlu0 %1192
      %1194 = vrot.lane.b32.xlu0 %v1191, 32
      %v1195 = vpop.permute.xlu0 %1194
      %1198 = vst.msk [vmem:[#allocation17 + $0x2] sm:$0x1] %vm549, %v1193
      %1199 = vst.msk [vmem:[#allocation17 + $0xa] sm:$0x1] %vm549, %v1195
      %s1200 = sadd.s32 %s94, 3
      %v1201 = vstv %s1200
      %vm1202 = vcmp.lt.s32.totalorder %v1201, %v213
      %v1203 = vld [vmem:[#allocation6 + $0x3] sm:$0x1]
      %v1204 = vld [vmem:[#allocation6 + $0xb] sm:$0x1]
      %v1205 = vld [vmem:[#allocation14] sm:$0xff]
      %v1206 = vld [vmem:[#allocation14 + $0x8] sm:$0xff]
      %v1207 = vld [vmem:[#allocation14 + $0x10] sm:$0xff]
      %v1208 = vld [vmem:[#allocation14 + $0x18] sm:$0xff]
      %v1210 = vsel %vm226, %v1032, 0
      %1212 = vmatprep.subr.mxu0 0.0
      %1213 = vmatpush1.msra.mxu0 %v1205
      %1214 = vmatprep.subr.mxu0 0.0
      %1215 = vmatpush1.msra.mxu0 %v1206
      %1216 = vmatprep.subr.mxu0 0.0
      %1217 = vmatpush1.msra.mxu0 %v1207
      %1218 = vmatprep.subr.mxu0 0.0
      %1219 = vmatpush1.msra.mxu0 %v1208
      %1220 = vmatprep.subr.mxu0 0.0
      %1221 = vmatpush1.msra.mxu0 0.0
      %1222 = vmatprep.subr.mxu0 0.0
      %1223 = vmatpush1.msra.mxu0 0.0
      %1224 = vmatprep.subr.mxu0 0.0
      %1225 = vmatpush1.msra.mxu0 0.0
      %1226 = vmatprep.subr.mxu0 0.0
      %1227 = vmatpush1.msra.mxu0 0.0
      %1228 = vmatprep.subr.mxu0 0.0
      %1229 = vmatpush1.msra.mxu0 0.0
      %1230 = vmatprep.subr.mxu0 0.0
      %1231 = vmatpush1.msra.mxu0 0.0
      %1232 = vmatprep.subr.mxu0 0.0
      %1233 = vmatpush1.msra.mxu0 0.0
      %1234 = vmatprep.subr.mxu0 0.0
      %1235 = vmatpush1.msra.mxu0 0.0
      %1236 = vmatprep.subr.mxu0 0.0
      %1237 = vmatpush1.msra.mxu0 0.0
      %1238 = vmatprep.subr.mxu0 0.0
      %1239 = vmatpush1.msra.mxu0 0.0
      %1240 = vmatprep.subr.mxu0 0.0
      %1241 = vmatpush1.msra.mxu0 0.0
      %1242 = vmatprep.subr.mxu0 0.0
      %1243 = vmatpush1.msra.mxu0 0.0
      %1244 = vmatprep.subr.mxu0 0.0
      %1245 = vmatpush1.msra.mxu0 0.0
      %1246 = vmatprep.subr.mxu0 0.0
      %1247 = vmatpush1.msra.mxu0 0.0
      %1248 = vmatprep.subr.mxu0 0.0
      %1249 = vmatpush1.msra.mxu0 0.0
      %1250 = vmatprep.subr.mxu0 0.0
      %1251 = vmatpush1.msra.mxu0 0.0
      %1252 = vmatprep.subr.mxu0 0.0
      %1253 = vmatpush1.msra.mxu0 0.0
      %1254 = vmatprep.subr.mxu0 0.0
      %1255 = vmatpush1.msra.mxu0 0.0
      %1256 = vmatprep.subr.mxu0 0.0
      %1257 = vmatpush1.msra.mxu0 0.0
      %1258 = vmatprep.subr.mxu0 0.0
      %1259 = vmatpush1.msra.mxu0 0.0
      %1260 = vmatprep.subr.mxu0 0.0
      %1261 = vmatpush1.msra.mxu0 0.0
      %1262 = vmatprep.subr.mxu0 0.0
      %1263 = vmatpush1.msra.mxu0 0.0
      %1264 = vmatprep.subr.mxu0 0.0
      %1265 = vmatpush1.msra.mxu0 0.0
      %1266 = vmatprep.subr.mxu0 0.0
      %1267 = vmatpush1.msra.mxu0 0.0
      %1268 = vmatprep.subr.mxu0 0.0
      %1269 = vmatpush1.msra.mxu0 0.0
      %1270 = vmatprep.subr.mxu0 0.0
      %1271 = vmatpush1.msra.mxu0 0.0
      %1272 = vmatprep.subr.mxu0 0.0
      %1273 = vmatpush1.msra.mxu0 0.0
      %1274 = vmatprep.subr.mxu0 0.0
      %1275 = vmatpush1.msra.mxu0 0.0
      %1276 = vmatprep.mubr.f32.mxu0 0.0
      %1277 = vmatmul.mubr.f32.gmra.mrb[0].mxu0 %v1210
      %v1278 = vpop.f32.mrb[0].mxu0
      %v1279 = vadd.f32 0.0, %v1278
      %v1280 = vpop.f32.mrb[0].mxu0
      %1281 = vdwg.mxu0
      %v1283 = vrot.slane %v1279, 1
      %v1286 = vadd.f32 %v1203, %v1279
      %v1287 = vadd.f32 %v1204, %v1283
      %v1288 = vxor.u32 %v1286, 2147483648
      %v1289 = vxor.u32 %v1287, 2147483648
      %v1290 = vmul.f32 %v1288, 1.442695
      %v1291 = vpow.pop %v1290
      %v1292 = vmul.f32 %v1289, 1.442695
      %v1293 = vpow.pop %v1292
      %v1294 = vadd.f32 %v1291, 1.0
      %v1295 = vadd.f32 %v1293, 1.0
      %v1296 = vrcp.pop %v1294
      %v1297 = vmul.f32 1.0, %v1296
      %v1298 = vrcp.pop %v1295
      %v1299 = vmul.f32 1.0, %v1298
      %v1300 = vtanh.pop %v1286
      %v1301 = vtanh.pop %v1287
      %v1303 = vrot.slane %v1040, 1
      %1304 = vrot.lane.b32.xlu0 %v1040, 32
      %v1305 = vpop.permute.xlu0 %1304
      %1306 = vrot.lane.b32.xlu0 %v1303, 32
      %v1307 = vpop.permute.xlu0 %1306
      %v1310 = vmul.f32 %v1297, %v1305
      %v1311 = vmul.f32 %v1299, %v1307
      %1314 = vrot.lane.b32.xlu0 %v1300, 64
      %v1315 = vpop.permute.xlu0 %1314
      %1316 = vrot.lane.b32.xlu0 %v1301, 64
      %v1317 = vpop.permute.xlu0 %1316
      %v1320 = vmul.f32 %v1297, %v1315
      %v1321 = vmul.f32 %v1299, %v1317
      %1324 = vrot.lane.b32.xlu0 %v1320, 32
      %v1325 = vpop.permute.xlu0 %1324
      %1326 = vrot.lane.b32.xlu0 %v1321, 32
      %v1327 = vpop.permute.xlu0 %1326
      %v1330 = vadd.f32 %v1310, %v1325
      %v1331 = vadd.f32 %v1311, %v1327
      %v1332 = vtanh.pop %v1330
      %v1333 = vtanh.pop %v1331
      %1336 = vrot.lane.b32.xlu0 %v1332, 64
      %v1337 = vpop.permute.xlu0 %1336
      %1338 = vrot.lane.b32.xlu0 %v1333, 64
      %v1339 = vpop.permute.xlu0 %1338
      %v1342 = vmul.f32 %v1297, %v1337
      %v1343 = vmul.f32 %v1299, %v1339
      %v1344 = vsel %vm1202, 1, 0
      %1345 = vset.pattern.permute.xlu0 0
      %1346 = vperm.xlu0 %1345, %v1344
      %v1347 = vpop.permute.xlu0 %1346
      %vm1348 = vcmp.eq.s32.totalorder %v1347, 1
      %v1351 = vrot.slane %v1343, 7
      %v1352 = vsel %vm370, %v1351, %v1342
      %1353 = vrot.lane.b32.xlu0 %v1352, 32
      %v1354 = vpop.permute.xlu0 %1353
      %v1356 = vsel %vm1348, %v1354, %v1032
      %v1359 = vrot.slane %v1331, 7
      %v1360 = vsel %vm370, %v1359, %v1330
      %1361 = vrot.lane.b32.xlu0 %v1360, 96
      %v1362 = vpop.permute.xlu0 %1361
      %v1364 = vsel %vm1348, %v1362, %v1040
      %1366 = vrot.lane.b32.xlu0 %v1158, 64
      %v1367 = vpop.permute.xlu0 %1366
      %v1369 = vsel %vm226, %v1356, %v1367
      %v1370 = vld [vmem:[#allocation15] sm:$0xff]
      %v1371 = vld [vmem:[#allocation15 + $0x8] sm:$0xff]
      %v1372 = vld [vmem:[#allocation15 + $0x10] sm:$0xff]
      %v1373 = vld [vmem:[#allocation15 + $0x18] sm:$0xff]
      %v1374 = vld [vmem:[#allocation15 + $0x20] sm:$0xff]
      %v1375 = vld [vmem:[#allocation15 + $0x28] sm:$0xff]
      %v1376 = vld [vmem:[#allocation15 + $0x30] sm:$0xff]
      %v1377 = vld [vmem:[#allocation15 + $0x38] sm:$0xff]
      %v1378 = vld [vmem:[%s9] sm:$0x1]
      %v1380 = vlaneseq
      %v1381 = vshrl.u32 %v1380, 7
      %v1382 = vsub.s32 0, %v1381
      %v1383 = vrot.slane %v1378, %v1382
      %v1386 = vsel %vm404, %v1369, 0
      %1388 = vmatprep.subr.mxu0 0.0
      %1389 = vmatpush1.msra.mxu0 %v1370
      %1390 = vmatprep.subr.mxu0 0.0
      %1391 = vmatpush1.msra.mxu0 %v1371
      %1392 = vmatprep.subr.mxu0 0.0
      %1393 = vmatpush1.msra.mxu0 %v1372
      %1394 = vmatprep.subr.mxu0 0.0
      %1395 = vmatpush1.msra.mxu0 %v1373
      %1396 = vmatprep.subr.mxu0 0.0
      %1397 = vmatpush1.msra.mxu0 %v1374
      %1398 = vmatprep.subr.mxu0 0.0
      %1399 = vmatpush1.msra.mxu0 %v1375
      %1400 = vmatprep.subr.mxu0 0.0
      %1401 = vmatpush1.msra.mxu0 %v1376
      %1402 = vmatprep.subr.mxu0 0.0
      %1403 = vmatpush1.msra.mxu0 %v1377
      %1404 = vmatprep.subr.mxu0 0.0
      %1405 = vmatpush1.msra.mxu0 0.0
      %1406 = vmatprep.subr.mxu0 0.0
      %1407 = vmatpush1.msra.mxu0 0.0
      %1408 = vmatprep.subr.mxu0 0.0
      %1409 = vmatpush1.msra.mxu0 0.0
      %1410 = vmatprep.subr.mxu0 0.0
      %1411 = vmatpush1.msra.mxu0 0.0
      %1412 = vmatprep.subr.mxu0 0.0
      %1413 = vmatpush1.msra.mxu0 0.0
      %1414 = vmatprep.subr.mxu0 0.0
      %1415 = vmatpush1.msra.mxu0 0.0
      %1416 = vmatprep.subr.mxu0 0.0
      %1417 = vmatpush1.msra.mxu0 0.0
      %1418 = vmatprep.subr.mxu0 0.0
      %1419 = vmatpush1.msra.mxu0 0.0
      %1420 = vmatprep.subr.mxu0 0.0
      %1421 = vmatpush1.msra.mxu0 0.0
      %1422 = vmatprep.subr.mxu0 0.0
      %1423 = vmatpush1.msra.mxu0 0.0
      %1424 = vmatprep.subr.mxu0 0.0
      %1425 = vmatpush1.msra.mxu0 0.0
      %1426 = vmatprep.subr.mxu0 0.0
      %1427 = vmatpush1.msra.mxu0 0.0
      %1428 = vmatprep.subr.mxu0 0.0
      %1429 = vmatpush1.msra.mxu0 0.0
      %1430 = vmatprep.subr.mxu0 0.0
      %1431 = vmatpush1.msra.mxu0 0.0
      %1432 = vmatprep.subr.mxu0 0.0
      %1433 = vmatpush1.msra.mxu0 0.0
      %1434 = vmatprep.subr.mxu0 0.0
      %1435 = vmatpush1.msra.mxu0 0.0
      %1436 = vmatprep.subr.mxu0 0.0
      %1437 = vmatpush1.msra.mxu0 0.0
      %1438 = vmatprep.subr.mxu0 0.0
      %1439 = vmatpush1.msra.mxu0 0.0
      %1440 = vmatprep.subr.mxu0 0.0
      %1441 = vmatpush1.msra.mxu0 0.0
      %1442 = vmatprep.subr.mxu0 0.0
      %1443 = vmatpush1.msra.mxu0 0.0
      %1444 = vmatprep.subr.mxu0 0.0
      %1445 = vmatpush1.msra.mxu0 0.0
      %1446 = vmatprep.subr.mxu0 0.0
      %1447 = vmatpush1.msra.mxu0 0.0
      %1448 = vmatprep.subr.mxu0 0.0
      %1449 = vmatpush1.msra.mxu0 0.0
      %1450 = vmatprep.subr.mxu0 0.0
      %1451 = vmatpush1.msra.mxu0 0.0
      %1452 = vmatprep.mubr.f32.mxu0 0.0
      %1453 = vmatmul.mubr.f32.gmra.mrb[0].mxu0 %v1386
      %v1454 = vpop.f32.mrb[0].mxu0
      %v1455 = vadd.f32 %v1383, %v1454
      %v1456 = vpop.f32.mrb[0].mxu0
      %1457 = vdwg.mxu0
      %v1458 = vxor.u32 %v1455, 2147483648
      %v1459 = vmul.f32 %v1458, 1.442695
      %v1460 = vpow.pop %v1459
      %v1461 = vadd.f32 %v1460, 1.0
      %v1462 = vrcp.pop %v1461
      %v1463 = vmul.f32 1.0, %v1462
      %v1464 = vtanh.pop %v1455
      %v1465 = vmul.f32 %v1463, %v1159
      %1467 = vrot.lane.b32.xlu0 %v1464, 64
      %v1468 = vpop.permute.xlu0 %1467
      %v1470 = vmul.f32 %v1463, %v1468
      %1472 = vrot.lane.b32.xlu0 %v1470, 32
      %v1473 = vpop.permute.xlu0 %1472
      %v1475 = vadd.f32 %v1465, %v1473
      %v1476 = vtanh.pop %v1475
      %1478 = vrot.lane.b32.xlu0 %v1476, 64
      %v1479 = vpop.permute.xlu0 %1478
      %v1481 = vmul.f32 %v1463, %v1479
      %v1482 = vsel %vm1348, %v1481, %v1158
      %v1483 = vsel %vm1348, %v1475, %v1159
      %v1484 = vsel %vm1348, %v1481, -1.0
      %v1487 = vunpack.c.l.s4 1966171168
      %v1488 = vunpack.c.0.s8 %v1487
      %v1489 = vlaneseq
      %v1490 = vshrl.u32 %v1489, 7
      %v1491 = vsub.s32 %v1488, %v1490
      %v1492 = vrot.slane %v1484, %v1491
      %v1493 = vcombine.high %v1492, %v1492
      %v1495 = vunpack.c.l.s4 1966171168
      %v1496 = vunpack.c.0.s8 %v1495
      %v1497 = vlaneseq
      %v1498 = vshrl.u32 %v1497, 7
      %v1499 = vsub.s32 %v1496, %v1498
      %v1500 = vrot.slane %v1492, %v1499
      %v1502 = vunpack.c.l.s4 1966171168
      %v1503 = vunpack.c.0.s8 %v1502
      %v1504 = vlaneseq
      %v1505 = vshrl.u32 %v1504, 7
      %v1506 = vsub.s32 %v1503, %v1505
      %v1507 = vrot.slane %v1493, %v1506
      %v1508 = vlaneseq
      %v1509 = vshrl.u32 %v1508, 7
      %v1510 = vsub.s32 0, %v1509
      %v1511 = vrot.slane %v1500, %v1510
      %v1512 = vlaneseq
      %v1513 = vshrl.u32 %v1512, 7
      %v1514 = vsub.s32 0, %v1513
      %v1515 = vrot.slane %v1507, %v1514
      %1516 = vrot.lane.b32.xlu0 %v1511, 32
      %v1517 = vpop.permute.xlu0 %1516
      %1518 = vrot.lane.b32.xlu0 %v1515, 32
      %v1519 = vpop.permute.xlu0 %1518
      %1522 = vst.msk [vmem:[#allocation17 + $0x3] sm:$0x1] %vm549, %v1517
      %1523 = vst.msk [vmem:[#allocation17 + $0xb] sm:$0x1] %vm549, %v1519
      %s1524 = sadd.s32 %s94, 4
      %v1525 = vstv %s1524
      %vm1526 = vcmp.lt.s32.totalorder %v1525, %v213
      %v1527 = vld [vmem:[#allocation6 + $0x4] sm:$0x1]
      %v1528 = vld [vmem:[#allocation6 + $0xc] sm:$0x1]
      %v1529 = vld [vmem:[#allocation14] sm:$0xff]
      %v1530 = vld [vmem:[#allocation14 + $0x8] sm:$0xff]
      %v1531 = vld [vmem:[#allocation14 + $0x10] sm:$0xff]
      %v1532 = vld [vmem:[#allocation14 + $0x18] sm:$0xff]
      %v1534 = vsel %vm226, %v1356, 0
      %1536 = vmatprep.subr.mxu0 0.0
      %1537 = vmatpush1.msra.mxu0 %v1529
      %1538 = vmatprep.subr.mxu0 0.0
      %1539 = vmatpush1.msra.mxu0 %v1530
      %1540 = vmatprep.subr.mxu0 0.0
      %1541 = vmatpush1.msra.mxu0 %v1531
      %1542 = vmatprep.subr.mxu0 0.0
      %1543 = vmatpush1.msra.mxu0 %v1532
      %1544 = vmatprep.subr.mxu0 0.0
      %1545 = vmatpush1.msra.mxu0 0.0
      %1546 = vmatprep.subr.mxu0 0.0
      %1547 = vmatpush1.msra.mxu0 0.0
      %1548 = vmatprep.subr.mxu0 0.0
      %1549 = vmatpush1.msra.mxu0 0.0
      %1550 = vmatprep.subr.mxu0 0.0
      %1551 = vmatpush1.msra.mxu0 0.0
      %1552 = vmatprep.subr.mxu0 0.0
      %1553 = vmatpush1.msra.mxu0 0.0
      %1554 = vmatprep.subr.mxu0 0.0
      %1555 = vmatpush1.msra.mxu0 0.0
      %1556 = vmatprep.subr.mxu0 0.0
      %1557 = vmatpush1.msra.mxu0 0.0
      %1558 = vmatprep.subr.mxu0 0.0
      %1559 = vmatpush1.msra.mxu0 0.0
      %1560 = vmatprep.subr.mxu0 0.0
      %1561 = vmatpush1.msra.mxu0 0.0
      %1562 = vmatprep.subr.mxu0 0.0
      %1563 = vmatpush1.msra.mxu0 0.0
      %1564 = vmatprep.subr.mxu0 0.0
      %1565 = vmatpush1.msra.mxu0 0.0
      %1566 = vmatprep.subr.mxu0 0.0
      %1567 = vmatpush1.msra.mxu0 0.0
      %1568 = vmatprep.subr.mxu0 0.0
      %1569 = vmatpush1.msra.mxu0 0.0
      %1570 = vmatprep.subr.mxu0 0.0
      %1571 = vmatpush1.msra.mxu0 0.0
      %1572 = vmatprep.subr.mxu0 0.0
      %1573 = vmatpush1.msra.mxu0 0.0
      %1574 = vmatprep.subr.mxu0 0.0
      %1575 = vmatpush1.msra.mxu0 0.0
      %1576 = vmatprep.subr.mxu0 0.0
      %1577 = vmatpush1.msra.mxu0 0.0
      %1578 = vmatprep.subr.mxu0 0.0
      %1579 = vmatpush1.msra.mxu0 0.0
      %1580 = vmatprep.subr.mxu0 0.0
      %1581 = vmatpush1.msra.mxu0 0.0
      %1582 = vmatprep.subr.mxu0 0.0
      %1583 = vmatpush1.msra.mxu0 0.0
      %1584 = vmatprep.subr.mxu0 0.0
      %1585 = vmatpush1.msra.mxu0 0.0
      %1586 = vmatprep.subr.mxu0 0.0
      %1587 = vmatpush1.msra.mxu0 0.0
      %1588 = vmatprep.subr.mxu0 0.0
      %1589 = vmatpush1.msra.mxu0 0.0
      %1590 = vmatprep.subr.mxu0 0.0
      %1591 = vmatpush1.msra.mxu0 0.0
      %1592 = vmatprep.subr.mxu0 0.0
      %1593 = vmatpush1.msra.mxu0 0.0
      %1594 = vmatprep.subr.mxu0 0.0
      %1595 = vmatpush1.msra.mxu0 0.0
      %1596 = vmatprep.subr.mxu0 0.0
      %1597 = vmatpush1.msra.mxu0 0.0
      %1598 = vmatprep.subr.mxu0 0.0
      %1599 = vmatpush1.msra.mxu0 0.0
      %1600 = vmatprep.mubr.f32.mxu0 0.0
      %1601 = vmatmul.mubr.f32.gmra.mrb[0].mxu0 %v1534
      %v1602 = vpop.f32.mrb[0].mxu0
      %v1603 = vadd.f32 0.0, %v1602
      %v1604 = vpop.f32.mrb[0].mxu0
      %1605 = vdwg.mxu0
      %v1607 = vrot.slane %v1603, 1
      %v1610 = vadd.f32 %v1527, %v1603
      %v1611 = vadd.f32 %v1528, %v1607
      %v1612 = vxor.u32 %v1610, 2147483648
      %v1613 = vxor.u32 %v1611, 2147483648
      %v1614 = vmul.f32 %v1612, 1.442695
      %v1615 = vpow.pop %v1614
      %v1616 = vmul.f32 %v1613, 1.442695
      %v1617 = vpow.pop %v1616
      %v1618 = vadd.f32 %v1615, 1.0
      %v1619 = vadd.f32 %v1617, 1.0
      %v1620 = vrcp.pop %v1618
      %v1621 = vmul.f32 1.0, %v1620
      %v1622 = vrcp.pop %v1619
      %v1623 = vmul.f32 1.0, %v1622
      %v1624 = vtanh.pop %v1610
      %v1625 = vtanh.pop %v1611
      %v1627 = vrot.slane %v1364, 1
      %1628 = vrot.lane.b32.xlu0 %v1364, 32
      %v1629 = vpop.permute.xlu0 %1628
      %1630 = vrot.lane.b32.xlu0 %v1627, 32
      %v1631 = vpop.permute.xlu0 %1630
      %v1634 = vmul.f32 %v1621, %v1629
      %v1635 = vmul.f32 %v1623, %v1631
      %1638 = vrot.lane.b32.xlu0 %v1624, 64
      %v1639 = vpop.permute.xlu0 %1638
      %1640 = vrot.lane.b32.xlu0 %v1625, 64
      %v1641 = vpop.permute.xlu0 %1640
      %v1644 = vmul.f32 %v1621, %v1639
      %v1645 = vmul.f32 %v1623, %v1641
      %1648 = vrot.lane.b32.xlu0 %v1644, 32
      %v1649 = vpop.permute.xlu0 %1648
      %1650 = vrot.lane.b32.xlu0 %v1645, 32
      %v1651 = vpop.permute.xlu0 %1650
      %v1654 = vadd.f32 %v1634, %v1649
      %v1655 = vadd.f32 %v1635, %v1651
      %v1656 = vtanh.pop %v1654
      %v1657 = vtanh.pop %v1655
      %1660 = vrot.lane.b32.xlu0 %v1656, 64
      %v1661 = vpop.permute.xlu0 %1660
      %1662 = vrot.lane.b32.xlu0 %v1657, 64
      %v1663 = vpop.permute.xlu0 %1662
      %v1666 = vmul.f32 %v1621, %v1661
      %v1667 = vmul.f32 %v1623, %v1663
      %v1668 = vsel %vm1526, 1, 0
      %1669 = vset.pattern.permute.xlu0 0
      %1670 = vperm.xlu0 %1669, %v1668
      %v1671 = vpop.permute.xlu0 %1670
      %vm1672 = vcmp.eq.s32.totalorder %v1671, 1
      %v1675 = vrot.slane %v1667, 7
      %v1676 = vsel %vm370, %v1675, %v1666
      %1677 = vrot.lane.b32.xlu0 %v1676, 32
      %v1678 = vpop.permute.xlu0 %1677
      %v1680 = vsel %vm1672, %v1678, %v1356
      %v1683 = vrot.slane %v1655, 7
      %v1684 = vsel %vm370, %v1683, %v1654
      %1685 = vrot.lane.b32.xlu0 %v1684, 96
      %v1686 = vpop.permute.xlu0 %1685
      %v1688 = vsel %vm1672, %v1686, %v1364
      %1690 = vrot.lane.b32.xlu0 %v1482, 64
      %v1691 = vpop.permute.xlu0 %1690
      %v1693 = vsel %vm226, %v1680, %v1691
      %v1694 = vld [vmem:[#allocation15] sm:$0xff]
      %v1695 = vld [vmem:[#allocation15 + $0x8] sm:$0xff]
      %v1696 = vld [vmem:[#allocation15 + $0x10] sm:$0xff]
      %v1697 = vld [vmem:[#allocation15 + $0x18] sm:$0xff]
      %v1698 = vld [vmem:[#allocation15 + $0x20] sm:$0xff]
      %v1699 = vld [vmem:[#allocation15 + $0x28] sm:$0xff]
      %v1700 = vld [vmem:[#allocation15 + $0x30] sm:$0xff]
      %v1701 = vld [vmem:[#allocation15 + $0x38] sm:$0xff]
      %v1702 = vld [vmem:[%s9] sm:$0x1]
      %v1704 = vlaneseq
      %v1705 = vshrl.u32 %v1704, 7
      %v1706 = vsub.s32 0, %v1705
      %v1707 = vrot.slane %v1702, %v1706
      %v1710 = vsel %vm404, %v1693, 0
      %1712 = vmatprep.subr.mxu0 0.0
      %1713 = vmatpush1.msra.mxu0 %v1694
      %1714 = vmatprep.subr.mxu0 0.0
      %1715 = vmatpush1.msra.mxu0 %v1695
      %1716 = vmatprep.subr.mxu0 0.0
      %1717 = vmatpush1.msra.mxu0 %v1696
      %1718 = vmatprep.subr.mxu0 0.0
      %1719 = vmatpush1.msra.mxu0 %v1697
      %1720 = vmatprep.subr.mxu0 0.0
      %1721 = vmatpush1.msra.mxu0 %v1698
      %1722 = vmatprep.subr.mxu0 0.0
      %1723 = vmatpush1.msra.mxu0 %v1699
      %1724 = vmatprep.subr.mxu0 0.0
      %1725 = vmatpush1.msra.mxu0 %v1700
      %1726 = vmatprep.subr.mxu0 0.0
      %1727 = vmatpush1.msra.mxu0 %v1701
      %1728 = vmatprep.subr.mxu0 0.0
      %1729 = vmatpush1.msra.mxu0 0.0
      %1730 = vmatprep.subr.mxu0 0.0
      %1731 = vmatpush1.msra.mxu0 0.0
      %1732 = vmatprep.subr.mxu0 0.0
      %1733 = vmatpush1.msra.mxu0 0.0
      %1734 = vmatprep.subr.mxu0 0.0
      %1735 = vmatpush1.msra.mxu0 0.0
      %1736 = vmatprep.subr.mxu0 0.0
      %1737 = vmatpush1.msra.mxu0 0.0
      %1738 = vmatprep.subr.mxu0 0.0
      %1739 = vmatpush1.msra.mxu0 0.0
      %1740 = vmatprep.subr.mxu0 0.0
      %1741 = vmatpush1.msra.mxu0 0.0
      %1742 = vmatprep.subr.mxu0 0.0
      %1743 = vmatpush1.msra.mxu0 0.0
      %1744 = vmatprep.subr.mxu0 0.0
      %1745 = vmatpush1.msra.mxu0 0.0
      %1746 = vmatprep.subr.mxu0 0.0
      %1747 = vmatpush1.msra.mxu0 0.0
      %1748 = vmatprep.subr.mxu0 0.0
      %1749 = vmatpush1.msra.mxu0 0.0
      %1750 = vmatprep.subr.mxu0 0.0
      %1751 = vmatpush1.msra.mxu0 0.0
      %1752 = vmatprep.subr.mxu0 0.0
      %1753 = vmatpush1.msra.mxu0 0.0
      %1754 = vmatprep.subr.mxu0 0.0
      %1755 = vmatpush1.msra.mxu0 0.0
      %1756 = vmatprep.subr.mxu0 0.0
      %1757 = vmatpush1.msra.mxu0 0.0
      %1758 = vmatprep.subr.mxu0 0.0
      %1759 = vmatpush1.msra.mxu0 0.0
      %1760 = vmatprep.subr.mxu0 0.0
      %1761 = vmatpush1.msra.mxu0 0.0
      %1762 = vmatprep.subr.mxu0 0.0
      %1763 = vmatpush1.msra.mxu0 0.0
      %1764 = vmatprep.subr.mxu0 0.0
      %1765 = vmatpush1.msra.mxu0 0.0
      %1766 = vmatprep.subr.mxu0 0.0
      %1767 = vmatpush1.msra.mxu0 0.0
      %1768 = vmatprep.subr.mxu0 0.0
      %1769 = vmatpush1.msra.mxu0 0.0
      %1770 = vmatprep.subr.mxu0 0.0
      %1771 = vmatpush1.msra.mxu0 0.0
      %1772 = vmatprep.subr.mxu0 0.0
      %1773 = vmatpush1.msra.mxu0 0.0
      %1774 = vmatprep.subr.mxu0 0.0
      %1775 = vmatpush1.msra.mxu0 0.0
      %1776 = vmatprep.mubr.f32.mxu0 0.0
      %1777 = vmatmul.mubr.f32.gmra.mrb[0].mxu0 %v1710
      %v1778 = vpop.f32.mrb[0].mxu0
      %v1779 = vadd.f32 %v1707, %v1778
      %v1780 = vpop.f32.mrb[0].mxu0
      %1781 = vdwg.mxu0
      %v1782 = vxor.u32 %v1779, 2147483648
      %v1783 = vmul.f32 %v1782, 1.442695
      %v1784 = vpow.pop %v1783
      %v1785 = vadd.f32 %v1784, 1.0
      %v1786 = vrcp.pop %v1785
      %v1787 = vmul.f32 1.0, %v1786
      %v1788 = vtanh.pop %v1779
      %v1789 = vmul.f32 %v1787, %v1483
      %1791 = vrot.lane.b32.xlu0 %v1788, 64
      %v1792 = vpop.permute.xlu0 %1791
      %v1794 = vmul.f32 %v1787, %v1792
      %1796 = vrot.lane.b32.xlu0 %v1794, 32
      %v1797 = vpop.permute.xlu0 %1796
      %v1799 = vadd.f32 %v1789, %v1797
      %v1800 = vtanh.pop %v1799
      %1802 = vrot.lane.b32.xlu0 %v1800, 64
      %v1803 = vpop.permute.xlu0 %1802
      %v1805 = vmul.f32 %v1787, %v1803
      %v1806 = vsel %vm1672, %v1805, %v1482
      %v1807 = vsel %vm1672, %v1799, %v1483
      %v1808 = vsel %vm1672, %v1805, -1.0
      %v1811 = vunpack.c.l.s4 1966171168
      %v1812 = vunpack.c.0.s8 %v1811
      %v1813 = vlaneseq
      %v1814 = vshrl.u32 %v1813, 7
      %v1815 = vsub.s32 %v1812, %v1814
      %v1816 = vrot.slane %v1808, %v1815
      %v1817 = vcombine.high %v1816, %v1816
      %v1819 = vunpack.c.l.s4 1966171168
      %v1820 = vunpack.c.0.s8 %v1819
      %v1821 = vlaneseq
      %v1822 = vshrl.u32 %v1821, 7
      %v1823 = vsub.s32 %v1820, %v1822
      %v1824 = vrot.slane %v1816, %v1823
      %v1826 = vunpack.c.l.s4 1966171168
      %v1827 = vunpack.c.0.s8 %v1826
      %v1828 = vlaneseq
      %v1829 = vshrl.u32 %v1828, 7
      %v1830 = vsub.s32 %v1827, %v1829
      %v1831 = vrot.slane %v1817, %v1830
      %v1832 = vlaneseq
      %v1833 = vshrl.u32 %v1832, 7
      %v1834 = vsub.s32 0, %v1833
      %v1835 = vrot.slane %v1824, %v1834
      %v1836 = vlaneseq
      %v1837 = vshrl.u32 %v1836, 7
      %v1838 = vsub.s32 0, %v1837
      %v1839 = vrot.slane %v1831, %v1838
      %1840 = vrot.lane.b32.xlu0 %v1835, 32
      %v1841 = vpop.permute.xlu0 %1840
      %1842 = vrot.lane.b32.xlu0 %v1839, 32
      %v1843 = vpop.permute.xlu0 %1842
      %1846 = vst.msk [vmem:[#allocation17 + $0x4] sm:$0x1] %vm549, %v1841
      %1847 = vst.msk [vmem:[#allocation17 + $0xc] sm:$0x1] %vm549, %v1843
      %s1848 = sadd.s32 %s94, 5
      %v1849 = vstv %s1848
      %vm1850 = vcmp.lt.s32.totalorder %v1849, %v213
      %v1851 = vld [vmem:[#allocation6 + $0x5] sm:$0x1]
      %v1852 = vld [vmem:[#allocation6 + $0xd] sm:$0x1]
      %v1853 = vld [vmem:[#allocation14] sm:$0xff]
      %v1854 = vld [vmem:[#allocation14 + $0x8] sm:$0xff]
      %v1855 = vld [vmem:[#allocation14 + $0x10] sm:$0xff]
      %v1856 = vld [vmem:[#allocation14 + $0x18] sm:$0xff]
      %v1858 = vsel %vm226, %v1680, 0
      %1860 = vmatprep.subr.mxu0 0.0
      %1861 = vmatpush1.msra.mxu0 %v1853
      %1862 = vmatprep.subr.mxu0 0.0
      %1863 = vmatpush1.msra.mxu0 %v1854
      %1864 = vmatprep.subr.mxu0 0.0
      %1865 = vmatpush1.msra.mxu0 %v1855
      %1866 = vmatprep.subr.mxu0 0.0
      %1867 = vmatpush1.msra.mxu0 %v1856
      %1868 = vmatprep.subr.mxu0 0.0
      %1869 = vmatpush1.msra.mxu0 0.0
      %1870 = vmatprep.subr.mxu0 0.0
      %1871 = vmatpush1.msra.mxu0 0.0
      %1872 = vmatprep.subr.mxu0 0.0
      %1873 = vmatpush1.msra.mxu0 0.0
      %1874 = vmatprep.subr.mxu0 0.0
      %1875 = vmatpush1.msra.mxu0 0.0
      %1876 = vmatprep.subr.mxu0 0.0
      %1877 = vmatpush1.msra.mxu0 0.0
      %1878 = vmatprep.subr.mxu0 0.0
      %1879 = vmatpush1.msra.mxu0 0.0
      %1880 = vmatprep.subr.mxu0 0.0
      %1881 = vmatpush1.msra.mxu0 0.0
      %1882 = vmatprep.subr.mxu0 0.0
      %1883 = vmatpush1.msra.mxu0 0.0
      %1884 = vmatprep.subr.mxu0 0.0
      %1885 = vmatpush1.msra.mxu0 0.0
      %1886 = vmatprep.subr.mxu0 0.0
      %1887 = vmatpush1.msra.mxu0 0.0
      %1888 = vmatprep.subr.mxu0 0.0
      %1889 = vmatpush1.msra.mxu0 0.0
      %1890 = vmatprep.subr.mxu0 0.0
      %1891 = vmatpush1.msra.mxu0 0.0
      %1892 = vmatprep.subr.mxu0 0.0
      %1893 = vmatpush1.msra.mxu0 0.0
      %1894 = vmatprep.subr.mxu0 0.0
      %1895 = vmatpush1.msra.mxu0 0.0
      %1896 = vmatprep.subr.mxu0 0.0
      %1897 = vmatpush1.msra.mxu0 0.0
      %1898 = vmatprep.subr.mxu0 0.0
      %1899 = vmatpush1.msra.mxu0 0.0
      %1900 = vmatprep.subr.mxu0 0.0
      %1901 = vmatpush1.msra.mxu0 0.0
      %1902 = vmatprep.subr.mxu0 0.0
      %1903 = vmatpush1.msra.mxu0 0.0
      %1904 = vmatprep.subr.mxu0 0.0
      %1905 = vmatpush1.msra.mxu0 0.0
      %1906 = vmatprep.subr.mxu0 0.0
      %1907 = vmatpush1.msra.mxu0 0.0
      %1908 = vmatprep.subr.mxu0 0.0
      %1909 = vmatpush1.msra.mxu0 0.0
      %1910 = vmatprep.subr.mxu0 0.0
      %1911 = vmatpush1.msra.mxu0 0.0
      %1912 = vmatprep.subr.mxu0 0.0
      %1913 = vmatpush1.msra.mxu0 0.0
      %1914 = vmatprep.subr.mxu0 0.0
      %1915 = vmatpush1.msra.mxu0 0.0
      %1916 = vmatprep.subr.mxu0 0.0
      %1917 = vmatpush1.msra.mxu0 0.0
      %1918 = vmatprep.subr.mxu0 0.0
      %1919 = vmatpush1.msra.mxu0 0.0
      %1920 = vmatprep.subr.mxu0 0.0
      %1921 = vmatpush1.msra.mxu0 0.0
      %1922 = vmatprep.subr.mxu0 0.0
      %1923 = vmatpush1.msra.mxu0 0.0
      %1924 = vmatprep.mubr.f32.mxu0 0.0
      %1925 = vmatmul.mubr.f32.gmra.mrb[0].mxu0 %v1858
      %v1926 = vpop.f32.mrb[0].mxu0
      %v1927 = vadd.f32 0.0, %v1926
      %v1928 = vpop.f32.mrb[0].mxu0
      %1929 = vdwg.mxu0
      %v1931 = vrot.slane %v1927, 1
      %v1934 = vadd.f32 %v1851, %v1927
      %v1935 = vadd.f32 %v1852, %v1931
      %v1936 = vxor.u32 %v1934, 2147483648
      %v1937 = vxor.u32 %v1935, 2147483648
      %v1938 = vmul.f32 %v1936, 1.442695
      %v1939 = vpow.pop %v1938
      %v1940 = vmul.f32 %v1937, 1.442695
      %v1941 = vpow.pop %v1940
      %v1942 = vadd.f32 %v1939, 1.0
      %v1943 = vadd.f32 %v1941, 1.0
      %v1944 = vrcp.pop %v1942
      %v1945 = vmul.f32 1.0, %v1944
      %v1946 = vrcp.pop %v1943
      %v1947 = vmul.f32 1.0, %v1946
      %v1948 = vtanh.pop %v1934
      %v1949 = vtanh.pop %v1935
      %v1951 = vrot.slane %v1688, 1
      %1952 = vrot.lane.b32.xlu0 %v1688, 32
      %v1953 = vpop.permute.xlu0 %1952
      %1954 = vrot.lane.b32.xlu0 %v1951, 32
      %v1955 = vpop.permute.xlu0 %1954
      %v1958 = vmul.f32 %v1945, %v1953
      %v1959 = vmul.f32 %v1947, %v1955
      %1962 = vrot.lane.b32.xlu0 %v1948, 64
      %v1963 = vpop.permute.xlu0 %1962
      %1964 = vrot.lane.b32.xlu0 %v1949, 64
      %v1965 = vpop.permute.xlu0 %1964
      %v1968 = vmul.f32 %v1945, %v1963
      %v1969 = vmul.f32 %v1947, %v1965
      %1972 = vrot.lane.b32.xlu0 %v1968, 32
      %v1973 = vpop.permute.xlu0 %1972
      %1974 = vrot.lane.b32.xlu0 %v1969, 32
      %v1975 = vpop.permute.xlu0 %1974
      %v1978 = vadd.f32 %v1958, %v1973
      %v1979 = vadd.f32 %v1959, %v1975
      %v1980 = vtanh.pop %v1978
      %v1981 = vtanh.pop %v1979
      %1984 = vrot.lane.b32.xlu0 %v1980, 64
      %v1985 = vpop.permute.xlu0 %1984
      %1986 = vrot.lane.b32.xlu0 %v1981, 64
      %v1987 = vpop.permute.xlu0 %1986
      %v1990 = vmul.f32 %v1945, %v1985
      %v1991 = vmul.f32 %v1947, %v1987
      %v1992 = vsel %vm1850, 1, 0
      %1993 = vset.pattern.permute.xlu0 0
      %1994 = vperm.xlu0 %1993, %v1992
      %v1995 = vpop.permute.xlu0 %1994
      %vm1996 = vcmp.eq.s32.totalorder %v1995, 1
      %v1999 = vrot.slane %v1991, 7
      %v2000 = vsel %vm370, %v1999, %v1990
      %2001 = vrot.lane.b32.xlu0 %v2000, 32
      %v2002 = vpop.permute.xlu0 %2001
      %v2004 = vsel %vm1996, %v2002, %v1680
      %v2007 = vrot.slane %v1979, 7
      %v2008 = vsel %vm370, %v2007, %v1978
      %2009 = vrot.lane.b32.xlu0 %v2008, 96
      %v2010 = vpop.permute.xlu0 %2009
      %v2012 = vsel %vm1996, %v2010, %v1688
      %2014 = vrot.lane.b32.xlu0 %v1806, 64
      %v2015 = vpop.permute.xlu0 %2014
      %v2017 = vsel %vm226, %v2004, %v2015
      %v2018 = vld [vmem:[#allocation15] sm:$0xff]
      %v2019 = vld [vmem:[#allocation15 + $0x8] sm:$0xff]
      %v2020 = vld [vmem:[#allocation15 + $0x10] sm:$0xff]
      %v2021 = vld [vmem:[#allocation15 + $0x18] sm:$0xff]
      %v2022 = vld [vmem:[#allocation15 + $0x20] sm:$0xff]
      %v2023 = vld [vmem:[#allocation15 + $0x28] sm:$0xff]
      %v2024 = vld [vmem:[#allocation15 + $0x30] sm:$0xff]
      %v2025 = vld [vmem:[#allocation15 + $0x38] sm:$0xff]
      %v2026 = vld [vmem:[%s9] sm:$0x1]
      %v2028 = vlaneseq
      %v2029 = vshrl.u32 %v2028, 7
      %v2030 = vsub.s32 0, %v2029
      %v2031 = vrot.slane %v2026, %v2030
      %v2034 = vsel %vm404, %v2017, 0
      %2036 = vmatprep.subr.mxu0 0.0
      %2037 = vmatpush1.msra.mxu0 %v2018
      %2038 = vmatprep.subr.mxu0 0.0
      %2039 = vmatpush1.msra.mxu0 %v2019
      %2040 = vmatprep.subr.mxu0 0.0
      %2041 = vmatpush1.msra.mxu0 %v2020
      %2042 = vmatprep.subr.mxu0 0.0
      %2043 = vmatpush1.msra.mxu0 %v2021
      %2044 = vmatprep.subr.mxu0 0.0
      %2045 = vmatpush1.msra.mxu0 %v2022
      %2046 = vmatprep.subr.mxu0 0.0
      %2047 = vmatpush1.msra.mxu0 %v2023
      %2048 = vmatprep.subr.mxu0 0.0
      %2049 = vmatpush1.msra.mxu0 %v2024
      %2050 = vmatprep.subr.mxu0 0.0
      %2051 = vmatpush1.msra.mxu0 %v2025
      %2052 = vmatprep.subr.mxu0 0.0
      %2053 = vmatpush1.msra.mxu0 0.0
      %2054 = vmatprep.subr.mxu0 0.0
      %2055 = vmatpush1.msra.mxu0 0.0
      %2056 = vmatprep.subr.mxu0 0.0
      %2057 = vmatpush1.msra.mxu0 0.0
      %2058 = vmatprep.subr.mxu0 0.0
      %2059 = vmatpush1.msra.mxu0 0.0
      %2060 = vmatprep.subr.mxu0 0.0
      %2061 = vmatpush1.msra.mxu0 0.0
      %2062 = vmatprep.subr.mxu0 0.0
      %2063 = vmatpush1.msra.mxu0 0.0
      %2064 = vmatprep.subr.mxu0 0.0
      %2065 = vmatpush1.msra.mxu0 0.0
      %2066 = vmatprep.subr.mxu0 0.0
      %2067 = vmatpush1.msra.mxu0 0.0
      %2068 = vmatprep.subr.mxu0 0.0
      %2069 = vmatpush1.msra.mxu0 0.0
      %2070 = vmatprep.subr.mxu0 0.0
      %2071 = vmatpush1.msra.mxu0 0.0
      %2072 = vmatprep.subr.mxu0 0.0
      %2073 = vmatpush1.msra.mxu0 0.0
      %2074 = vmatprep.subr.mxu0 0.0
      %2075 = vmatpush1.msra.mxu0 0.0
      %2076 = vmatprep.subr.mxu0 0.0
      %2077 = vmatpush1.msra.mxu0 0.0
      %2078 = vmatprep.subr.mxu0 0.0
      %2079 = vmatpush1.msra.mxu0 0.0
      %2080 = vmatprep.subr.mxu0 0.0
      %2081 = vmatpush1.msra.mxu0 0.0
      %2082 = vmatprep.subr.mxu0 0.0
      %2083 = vmatpush1.msra.mxu0 0.0
      %2084 = vmatprep.subr.mxu0 0.0
      %2085 = vmatpush1.msra.mxu0 0.0
      %2086 = vmatprep.subr.mxu0 0.0
      %2087 = vmatpush1.msra.mxu0 0.0
      %2088 = vmatprep.subr.mxu0 0.0
      %2089 = vmatpush1.msra.mxu0 0.0
      %2090 = vmatprep.subr.mxu0 0.0
      %2091 = vmatpush1.msra.mxu0 0.0
      %2092 = vmatprep.subr.mxu0 0.0
      %2093 = vmatpush1.msra.mxu0 0.0
      %2094 = vmatprep.subr.mxu0 0.0
      %2095 = vmatpush1.msra.mxu0 0.0
      %2096 = vmatprep.subr.mxu0 0.0
      %2097 = vmatpush1.msra.mxu0 0.0
      %2098 = vmatprep.subr.mxu0 0.0
      %2099 = vmatpush1.msra.mxu0 0.0
      %2100 = vmatprep.mubr.f32.mxu0 0.0
      %2101 = vmatmul.mubr.f32.gmra.mrb[0].mxu0 %v2034
      %v2102 = vpop.f32.mrb[0].mxu0
      %v2103 = vadd.f32 %v2031, %v2102
      %v2104 = vpop.f32.mrb[0].mxu0
      %2105 = vdwg.mxu0
      %v2106 = vxor.u32 %v2103, 2147483648
      %v2107 = vmul.f32 %v2106, 1.442695
      %v2108 = vpow.pop %v2107
      %v2109 = vadd.f32 %v2108, 1.0
      %v2110 = vrcp.pop %v2109
      %v2111 = vmul.f32 1.0, %v2110
      %v2112 = vtanh.pop %v2103
      %v2113 = vmul.f32 %v2111, %v1807
      %2115 = vrot.lane.b32.xlu0 %v2112, 64
      %v2116 = vpop.permute.xlu0 %2115
      %v2118 = vmul.f32 %v2111, %v2116
      %2120 = vrot.lane.b32.xlu0 %v2118, 32
      %v2121 = vpop.permute.xlu0 %2120
      %v2123 = vadd.f32 %v2113, %v2121
      %v2124 = vtanh.pop %v2123
      %2126 = vrot.lane.b32.xlu0 %v2124, 64
      %v2127 = vpop.permute.xlu0 %2126
      %v2129 = vmul.f32 %v2111, %v2127
      %v2130 = vsel %vm1996, %v2129, %v1806
      %v2131 = vsel %vm1996, %v2123, %v1807
      %v2132 = vsel %vm1996, %v2129, -1.0
      %v2135 = vunpack.c.l.s4 1966171168
      %v2136 = vunpack.c.0.s8 %v2135
      %v2137 = vlaneseq
      %v2138 = vshrl.u32 %v2137, 7
      %v2139 = vsub.s32 %v2136, %v2138
      %v2140 = vrot.slane %v2132, %v2139
      %v2141 = vcombine.high %v2140, %v2140
      %v2143 = vunpack.c.l.s4 1966171168
      %v2144 = vunpack.c.0.s8 %v2143
      %v2145 = vlaneseq
      %v2146 = vshrl.u32 %v2145, 7
      %v2147 = vsub.s32 %v2144, %v2146
      %v2148 = vrot.slane %v2140, %v2147
      %v2150 = vunpack.c.l.s4 1966171168
      %v2151 = vunpack.c.0.s8 %v2150
      %v2152 = vlaneseq
      %v2153 = vshrl.u32 %v2152, 7
      %v2154 = vsub.s32 %v2151, %v2153
      %v2155 = vrot.slane %v2141, %v2154
      %v2156 = vlaneseq
      %v2157 = vshrl.u32 %v2156, 7
      %v2158 = vsub.s32 0, %v2157
      %v2159 = vrot.slane %v2148, %v2158
      %v2160 = vlaneseq
      %v2161 = vshrl.u32 %v2160, 7
      %v2162 = vsub.s32 0, %v2161
      %v2163 = vrot.slane %v2155, %v2162
      %2164 = vrot.lane.b32.xlu0 %v2159, 32
      %v2165 = vpop.permute.xlu0 %2164
      %2166 = vrot.lane.b32.xlu0 %v2163, 32
      %v2167 = vpop.permute.xlu0 %2166
      %2170 = vst.msk [vmem:[#allocation17 + $0x5] sm:$0x1] %vm549, %v2165
      %2171 = vst.msk [vmem:[#allocation17 + $0xd] sm:$0x1] %vm549, %v2167
      %s2172 = sadd.s32 %s94, 6
      %v2173 = vstv %s2172
      %vm2174 = vcmp.lt.s32.totalorder %v2173, %v213
      %v2175 = vld [vmem:[#allocation6 + $0x6] sm:$0x1]
      %v2176 = vld [vmem:[#allocation6 + $0xe] sm:$0x1]
      %v2177 = vld [vmem:[#allocation14] sm:$0xff]
      %v2178 = vld [vmem:[#allocation14 + $0x8] sm:$0xff]
      %v2179 = vld [vmem:[#allocation14 + $0x10] sm:$0xff]
      %v2180 = vld [vmem:[#allocation14 + $0x18] sm:$0xff]
      %v2182 = vsel %vm226, %v2004, 0
      %2184 = vmatprep.subr.mxu0 0.0
      %2185 = vmatpush1.msra.mxu0 %v2177
      %2186 = vmatprep.subr.mxu0 0.0
      %2187 = vmatpush1.msra.mxu0 %v2178
      %2188 = vmatprep.subr.mxu0 0.0
      %2189 = vmatpush1.msra.mxu0 %v2179
      %2190 = vmatprep.subr.mxu0 0.0
      %2191 = vmatpush1.msra.mxu0 %v2180
      %2192 = vmatprep.subr.mxu0 0.0
      %2193 = vmatpush1.msra.mxu0 0.0
      %2194 = vmatprep.subr.mxu0 0.0
      %2195 = vmatpush1.msra.mxu0 0.0
      %2196 = vmatprep.subr.mxu0 0.0
      %2197 = vmatpush1.msra.mxu0 0.0
      %2198 = vmatprep.subr.mxu0 0.0
      %2199 = vmatpush1.msra.mxu0 0.0
      %2200 = vmatprep.subr.mxu0 0.0
      %2201 = vmatpush1.msra.mxu0 0.0
      %2202 = vmatprep.subr.mxu0 0.0
      %2203 = vmatpush1.msra.mxu0 0.0
      %2204 = vmatprep.subr.mxu0 0.0
      %2205 = vmatpush1.msra.mxu0 0.0
      %2206 = vmatprep.subr.mxu0 0.0
      %2207 = vmatpush1.msra.mxu0 0.0
      %2208 = vmatprep.subr.mxu0 0.0
      %2209 = vmatpush1.msra.mxu0 0.0
      %2210 = vmatprep.subr.mxu0 0.0
      %2211 = vmatpush1.msra.mxu0 0.0
      %2212 = vmatprep.subr.mxu0 0.0
      %2213 = vmatpush1.msra.mxu0 0.0
      %2214 = vmatprep.subr.mxu0 0.0
      %2215 = vmatpush1.msra.mxu0 0.0
      %2216 = vmatprep.subr.mxu0 0.0
      %2217 = vmatpush1.msra.mxu0 0.0
      %2218 = vmatprep.subr.mxu0 0.0
      %2219 = vmatpush1.msra.mxu0 0.0
      %2220 = vmatprep.subr.mxu0 0.0
      %2221 = vmatpush1.msra.mxu0 0.0
      %2222 = vmatprep.subr.mxu0 0.0
      %2223 = vmatpush1.msra.mxu0 0.0
      %2224 = vmatprep.subr.mxu0 0.0
      %2225 = vmatpush1.msra.mxu0 0.0
      %2226 = vmatprep.subr.mxu0 0.0
      %2227 = vmatpush1.msra.mxu0 0.0
      %2228 = vmatprep.subr.mxu0 0.0
      %2229 = vmatpush1.msra.mxu0 0.0
      %2230 = vmatprep.subr.mxu0 0.0
      %2231 = vmatpush1.msra.mxu0 0.0
      %2232 = vmatprep.subr.mxu0 0.0
      %2233 = vmatpush1.msra.mxu0 0.0
      %2234 = vmatprep.subr.mxu0 0.0
      %2235 = vmatpush1.msra.mxu0 0.0
      %2236 = vmatprep.subr.mxu0 0.0
      %2237 = vmatpush1.msra.mxu0 0.0
      %2238 = vmatprep.subr.mxu0 0.0
      %2239 = vmatpush1.msra.mxu0 0.0
      %2240 = vmatprep.subr.mxu0 0.0
      %2241 = vmatpush1.msra.mxu0 0.0
      %2242 = vmatprep.subr.mxu0 0.0
      %2243 = vmatpush1.msra.mxu0 0.0
      %2244 = vmatprep.subr.mxu0 0.0
      %2245 = vmatpush1.msra.mxu0 0.0
      %2246 = vmatprep.subr.mxu0 0.0
      %2247 = vmatpush1.msra.mxu0 0.0
      %2248 = vmatprep.mubr.f32.mxu0 0.0
      %2249 = vmatmul.mubr.f32.gmra.mrb[0].mxu0 %v2182
      %v2250 = vpop.f32.mrb[0].mxu0
      %v2251 = vadd.f32 0.0, %v2250
      %v2252 = vpop.f32.mrb[0].mxu0
      %2253 = vdwg.mxu0
      %v2255 = vrot.slane %v2251, 1
      %v2258 = vadd.f32 %v2175, %v2251
      %v2259 = vadd.f32 %v2176, %v2255
      %v2260 = vxor.u32 %v2258, 2147483648
      %v2261 = vxor.u32 %v2259, 2147483648
      %v2262 = vmul.f32 %v2260, 1.442695
      %v2263 = vpow.pop %v2262
      %v2264 = vmul.f32 %v2261, 1.442695
      %v2265 = vpow.pop %v2264
      %v2266 = vadd.f32 %v2263, 1.0
      %v2267 = vadd.f32 %v2265, 1.0
      %v2268 = vrcp.pop %v2266
      %v2269 = vmul.f32 1.0, %v2268
      %v2270 = vrcp.pop %v2267
      %v2271 = vmul.f32 1.0, %v2270
      %v2272 = vtanh.pop %v2258
      %v2273 = vtanh.pop %v2259
      %v2275 = vrot.slane %v2012, 1
      %2276 = vrot.lane.b32.xlu0 %v2012, 32
      %v2277 = vpop.permute.xlu0 %2276
      %2278 = vrot.lane.b32.xlu0 %v2275, 32
      %v2279 = vpop.permute.xlu0 %2278
      %v2282 = vmul.f32 %v2269, %v2277
      %v2283 = vmul.f32 %v2271, %v2279
      %2286 = vrot.lane.b32.xlu0 %v2272, 64
      %v2287 = vpop.permute.xlu0 %2286
      %2288 = vrot.lane.b32.xlu0 %v2273, 64
      %v2289 = vpop.permute.xlu0 %2288
      %v2292 = vmul.f32 %v2269, %v2287
      %v2293 = vmul.f32 %v2271, %v2289
      %2296 = vrot.lane.b32.xlu0 %v2292, 32
      %v2297 = vpop.permute.xlu0 %2296
      %2298 = vrot.lane.b32.xlu0 %v2293, 32
      %v2299 = vpop.permute.xlu0 %2298
      %v2302 = vadd.f32 %v2282, %v2297
      %v2303 = vadd.f32 %v2283, %v2299
      %v2304 = vtanh.pop %v2302
      %v2305 = vtanh.pop %v2303
      %2308 = vrot.lane.b32.xlu0 %v2304, 64
      %v2309 = vpop.permute.xlu0 %2308
      %2310 = vrot.lane.b32.xlu0 %v2305, 64
      %v2311 = vpop.permute.xlu0 %2310
      %v2314 = vmul.f32 %v2269, %v2309
      %v2315 = vmul.f32 %v2271, %v2311
      %v2316 = vsel %vm2174, 1, 0
      %2317 = vset.pattern.permute.xlu0 0
      %2318 = vperm.xlu0 %2317, %v2316
      %v2319 = vpop.permute.xlu0 %2318
      %vm2320 = vcmp.eq.s32.totalorder %v2319, 1
      %v2323 = vrot.slane %v2315, 7
      %v2324 = vsel %vm370, %v2323, %v2314
      %2325 = vrot.lane.b32.xlu0 %v2324, 32
      %v2326 = vpop.permute.xlu0 %2325
      %v2328 = vsel %vm2320, %v2326, %v2004
      %v2331 = vrot.slane %v2303, 7
      %v2332 = vsel %vm370, %v2331, %v2302
      %2333 = vrot.lane.b32.xlu0 %v2332, 96
      %v2334 = vpop.permute.xlu0 %2333
      %v2336 = vsel %vm2320, %v2334, %v2012
      %2338 = vrot.lane.b32.xlu0 %v2130, 64
      %v2339 = vpop.permute.xlu0 %2338
      %v2341 = vsel %vm226, %v2328, %v2339
      %v2342 = vld [vmem:[#allocation15] sm:$0xff]
      %v2343 = vld [vmem:[#allocation15 + $0x8] sm:$0xff]
      %v2344 = vld [vmem:[#allocation15 + $0x10] sm:$0xff]
      %v2345 = vld [vmem:[#allocation15 + $0x18] sm:$0xff]
      %v2346 = vld [vmem:[#allocation15 + $0x20] sm:$0xff]
      %v2347 = vld [vmem:[#allocation15 + $0x28] sm:$0xff]
      %v2348 = vld [vmem:[#allocation15 + $0x30] sm:$0xff]
      %v2349 = vld [vmem:[#allocation15 + $0x38] sm:$0xff]
      %v2350 = vld [vmem:[%s9] sm:$0x1]
      %v2352 = vlaneseq
      %v2353 = vshrl.u32 %v2352, 7
      %v2354 = vsub.s32 0, %v2353
      %v2355 = vrot.slane %v2350, %v2354
      %v2358 = vsel %vm404, %v2341, 0
      %2360 = vmatprep.subr.mxu0 0.0
      %2361 = vmatpush1.msra.mxu0 %v2342
      %2362 = vmatprep.subr.mxu0 0.0
      %2363 = vmatpush1.msra.mxu0 %v2343
      %2364 = vmatprep.subr.mxu0 0.0
      %2365 = vmatpush1.msra.mxu0 %v2344
      %2366 = vmatprep.subr.mxu0 0.0
      %2367 = vmatpush1.msra.mxu0 %v2345
      %2368 = vmatprep.subr.mxu0 0.0
      %2369 = vmatpush1.msra.mxu0 %v2346
      %2370 = vmatprep.subr.mxu0 0.0
      %2371 = vmatpush1.msra.mxu0 %v2347
      %2372 = vmatprep.subr.mxu0 0.0
      %2373 = vmatpush1.msra.mxu0 %v2348
      %2374 = vmatprep.subr.mxu0 0.0
      %2375 = vmatpush1.msra.mxu0 %v2349
      %2376 = vmatprep.subr.mxu0 0.0
      %2377 = vmatpush1.msra.mxu0 0.0
      %2378 = vmatprep.subr.mxu0 0.0
      %2379 = vmatpush1.msra.mxu0 0.0
      %2380 = vmatprep.subr.mxu0 0.0
      %2381 = vmatpush1.msra.mxu0 0.0
      %2382 = vmatprep.subr.mxu0 0.0
      %2383 = vmatpush1.msra.mxu0 0.0
      %2384 = vmatprep.subr.mxu0 0.0
      %2385 = vmatpush1.msra.mxu0 0.0
      %2386 = vmatprep.subr.mxu0 0.0
      %2387 = vmatpush1.msra.mxu0 0.0
      %2388 = vmatprep.subr.mxu0 0.0
      %2389 = vmatpush1.msra.mxu0 0.0
      %2390 = vmatprep.subr.mxu0 0.0
      %2391 = vmatpush1.msra.mxu0 0.0
      %2392 = vmatprep.subr.mxu0 0.0
      %2393 = vmatpush1.msra.mxu0 0.0
      %2394 = vmatprep.subr.mxu0 0.0
      %2395 = vmatpush1.msra.mxu0 0.0
      %2396 = vmatprep.subr.mxu0 0.0
      %2397 = vmatpush1.msra.mxu0 0.0
      %2398 = vmatprep.subr.mxu0 0.0
      %2399 = vmatpush1.msra.mxu0 0.0
      %2400 = vmatprep.subr.mxu0 0.0
      %2401 = vmatpush1.msra.mxu0 0.0
      %2402 = vmatprep.subr.mxu0 0.0
      %2403 = vmatpush1.msra.mxu0 0.0
      %2404 = vmatprep.subr.mxu0 0.0
      %2405 = vmatpush1.msra.mxu0 0.0
      %2406 = vmatprep.subr.mxu0 0.0
      %2407 = vmatpush1.msra.mxu0 0.0
      %2408 = vmatprep.subr.mxu0 0.0
      %2409 = vmatpush1.msra.mxu0 0.0
      %2410 = vmatprep.subr.mxu0 0.0
      %2411 = vmatpush1.msra.mxu0 0.0
      %2412 = vmatprep.subr.mxu0 0.0
      %2413 = vmatpush1.msra.mxu0 0.0
      %2414 = vmatprep.subr.mxu0 0.0
      %2415 = vmatpush1.msra.mxu0 0.0
      %2416 = vmatprep.subr.mxu0 0.0
      %2417 = vmatpush1.msra.mxu0 0.0
      %2418 = vmatprep.subr.mxu0 0.0
      %2419 = vmatpush1.msra.mxu0 0.0
      %2420 = vmatprep.subr.mxu0 0.0
      %2421 = vmatpush1.msra.mxu0 0.0
      %2422 = vmatprep.subr.mxu0 0.0
      %2423 = vmatpush1.msra.mxu0 0.0
      %2424 = vmatprep.mubr.f32.mxu0 0.0
      %2425 = vmatmul.mubr.f32.gmra.mrb[0].mxu0 %v2358
      %v2426 = vpop.f32.mrb[0].mxu0
      %v2427 = vadd.f32 %v2355, %v2426
      %v2428 = vpop.f32.mrb[0].mxu0
      %2429 = vdwg.mxu0
      %v2430 = vxor.u32 %v2427, 2147483648
      %v2431 = vmul.f32 %v2430, 1.442695
      %v2432 = vpow.pop %v2431
      %v2433 = vadd.f32 %v2432, 1.0
      %v2434 = vrcp.pop %v2433
      %v2435 = vmul.f32 1.0, %v2434
      %v2436 = vtanh.pop %v2427
      %v2437 = vmul.f32 %v2435, %v2131
      %2439 = vrot.lane.b32.xlu0 %v2436, 64
      %v2440 = vpop.permute.xlu0 %2439
      %v2442 = vmul.f32 %v2435, %v2440
      %2444 = vrot.lane.b32.xlu0 %v2442, 32
      %v2445 = vpop.permute.xlu0 %2444
      %v2447 = vadd.f32 %v2437, %v2445
      %v2448 = vtanh.pop %v2447
      %2450 = vrot.lane.b32.xlu0 %v2448, 64
      %v2451 = vpop.permute.xlu0 %2450
      %v2453 = vmul.f32 %v2435, %v2451
      %v2454 = vsel %vm2320, %v2453, %v2130
      %v2455 = vsel %vm2320, %v2447, %v2131
      %v2456 = vsel %vm2320, %v2453, -1.0
      %v2459 = vunpack.c.l.s4 1966171168
      %v2460 = vunpack.c.0.s8 %v2459
      %v2461 = vlaneseq
      %v2462 = vshrl.u32 %v2461, 7
      %v2463 = vsub.s32 %v2460, %v2462
      %v2464 = vrot.slane %v2456, %v2463
      %v2465 = vcombine.high %v2464, %v2464
      %v2467 = vunpack.c.l.s4 1966171168
      %v2468 = vunpack.c.0.s8 %v2467
      %v2469 = vlaneseq
      %v2470 = vshrl.u32 %v2469, 7
      %v2471 = vsub.s32 %v2468, %v2470
      %v2472 = vrot.slane %v2464, %v2471
      %v2474 = vunpack.c.l.s4 1966171168
      %v2475 = vunpack.c.0.s8 %v2474
      %v2476 = vlaneseq
      %v2477 = vshrl.u32 %v2476, 7
      %v2478 = vsub.s32 %v2475, %v2477
      %v2479 = vrot.slane %v2465, %v2478
      %v2480 = vlaneseq
      %v2481 = vshrl.u32 %v2480, 7
      %v2482 = vsub.s32 0, %v2481
      %v2483 = vrot.slane %v2472, %v2482
      %v2484 = vlaneseq
      %v2485 = vshrl.u32 %v2484, 7
      %v2486 = vsub.s32 0, %v2485
      %v2487 = vrot.slane %v2479, %v2486
      %2488 = vrot.lane.b32.xlu0 %v2483, 32
      %v2489 = vpop.permute.xlu0 %2488
      %2490 = vrot.lane.b32.xlu0 %v2487, 32
      %v2491 = vpop.permute.xlu0 %2490
      %2494 = vst.msk [vmem:[#allocation17 + $0x6] sm:$0x1] %vm549, %v2489
      %2495 = vst.msk [vmem:[#allocation17 + $0xe] sm:$0x1] %vm549, %v2491
      %s2496 = sadd.s32 %s94, 7
      %v2497 = vstv %s2496
      %vm2498 = vcmp.lt.s32.totalorder %v2497, %v213
      %v2499 = vld [vmem:[#allocation6 + $0x7] sm:$0x1]
      %v2500 = vld [vmem:[#allocation6 + $0xf] sm:$0x1]
      %v2501 = vld [vmem:[#allocation14] sm:$0xff]
      %v2502 = vld [vmem:[#allocation14 + $0x8] sm:$0xff]
      %v2503 = vld [vmem:[#allocation14 + $0x10] sm:$0xff]
      %v2504 = vld [vmem:[#allocation14 + $0x18] sm:$0xff]
      %v2506 = vsel %vm226, %v2328, 0
      %2508 = vmatprep.subr.mxu0 0.0
      %2509 = vmatpush1.msra.mxu0 %v2501
      %2510 = vmatprep.subr.mxu0 0.0
      %2511 = vmatpush1.msra.mxu0 %v2502
      %2512 = vmatprep.subr.mxu0 0.0
      %2513 = vmatpush1.msra.mxu0 %v2503
      %2514 = vmatprep.subr.mxu0 0.0
      %2515 = vmatpush1.msra.mxu0 %v2504
      %2516 = vmatprep.subr.mxu0 0.0
      %2517 = vmatpush1.msra.mxu0 0.0
      %2518 = vmatprep.subr.mxu0 0.0
      %2519 = vmatpush1.msra.mxu0 0.0
      %2520 = vmatprep.subr.mxu0 0.0
      %2521 = vmatpush1.msra.mxu0 0.0
      %2522 = vmatprep.subr.mxu0 0.0
      %2523 = vmatpush1.msra.mxu0 0.0
      %2524 = vmatprep.subr.mxu0 0.0
      %2525 = vmatpush1.msra.mxu0 0.0
      %2526 = vmatprep.subr.mxu0 0.0
      %2527 = vmatpush1.msra.mxu0 0.0
      %2528 = vmatprep.subr.mxu0 0.0
      %2529 = vmatpush1.msra.mxu0 0.0
      %2530 = vmatprep.subr.mxu0 0.0
      %2531 = vmatpush1.msra.mxu0 0.0
      %2532 = vmatprep.subr.mxu0 0.0
      %2533 = vmatpush1.msra.mxu0 0.0
      %2534 = vmatprep.subr.mxu0 0.0
      %2535 = vmatpush1.msra.mxu0 0.0
      %2536 = vmatprep.subr.mxu0 0.0
      %2537 = vmatpush1.msra.mxu0 0.0
      %2538 = vmatprep.subr.mxu0 0.0
      %2539 = vmatpush1.msra.mxu0 0.0
      %2540 = vmatprep.subr.mxu0 0.0
      %2541 = vmatpush1.msra.mxu0 0.0
      %2542 = vmatprep.subr.mxu0 0.0
      %2543 = vmatpush1.msra.mxu0 0.0
      %2544 = vmatprep.subr.mxu0 0.0
      %2545 = vmatpush1.msra.mxu0 0.0
      %2546 = vmatprep.subr.mxu0 0.0
      %2547 = vmatpush1.msra.mxu0 0.0
      %2548 = vmatprep.subr.mxu0 0.0
      %2549 = vmatpush1.msra.mxu0 0.0
      %2550 = vmatprep.subr.mxu0 0.0
      %2551 = vmatpush1.msra.mxu0 0.0
      %2552 = vmatprep.subr.mxu0 0.0
      %2553 = vmatpush1.msra.mxu0 0.0
      %2554 = vmatprep.subr.mxu0 0.0
      %2555 = vmatpush1.msra.mxu0 0.0
      %2556 = vmatprep.subr.mxu0 0.0
      %2557 = vmatpush1.msra.mxu0 0.0
      %2558 = vmatprep.subr.mxu0 0.0
      %2559 = vmatpush1.msra.mxu0 0.0
      %2560 = vmatprep.subr.mxu0 0.0
      %2561 = vmatpush1.msra.mxu0 0.0
      %2562 = vmatprep.subr.mxu0 0.0
      %2563 = vmatpush1.msra.mxu0 0.0
      %2564 = vmatprep.subr.mxu0 0.0
      %2565 = vmatpush1.msra.mxu0 0.0
      %2566 = vmatprep.subr.mxu0 0.0
      %2567 = vmatpush1.msra.mxu0 0.0
      %2568 = vmatprep.subr.mxu0 0.0
      %2569 = vmatpush1.msra.mxu0 0.0
      %2570 = vmatprep.subr.mxu0 0.0
      %2571 = vmatpush1.msra.mxu0 0.0
      %2572 = vmatprep.mubr.f32.mxu0 0.0
      %2573 = vmatmul.mubr.f32.gmra.mrb[0].mxu0 %v2506
      %v2574 = vpop.f32.mrb[0].mxu0
      %v2575 = vadd.f32 0.0, %v2574
      %v2576 = vpop.f32.mrb[0].mxu0
      %2577 = vdwg.mxu0
      %v2579 = vrot.slane %v2575, 1
      %v2582 = vadd.f32 %v2499, %v2575
      %v2583 = vadd.f32 %v2500, %v2579
      %v2584 = vxor.u32 %v2582, 2147483648
      %v2585 = vxor.u32 %v2583, 2147483648
      %v2586 = vmul.f32 %v2584, 1.442695
      %v2587 = vpow.pop %v2586
      %v2588 = vmul.f32 %v2585, 1.442695
      %v2589 = vpow.pop %v2588
      %v2590 = vadd.f32 %v2587, 1.0
      %v2591 = vadd.f32 %v2589, 1.0
      %v2592 = vrcp.pop %v2590
      %v2593 = vmul.f32 1.0, %v2592
      %v2594 = vrcp.pop %v2591
      %v2595 = vmul.f32 1.0, %v2594
      %v2596 = vtanh.pop %v2582
      %v2597 = vtanh.pop %v2583
      %v2599 = vrot.slane %v2336, 1
      %2600 = vrot.lane.b32.xlu0 %v2336, 32
      %v2601 = vpop.permute.xlu0 %2600
      %2602 = vrot.lane.b32.xlu0 %v2599, 32
      %v2603 = vpop.permute.xlu0 %2602
      %v2606 = vmul.f32 %v2593, %v2601
      %v2607 = vmul.f32 %v2595, %v2603
      %2610 = vrot.lane.b32.xlu0 %v2596, 64
      %v2611 = vpop.permute.xlu0 %2610
      %2612 = vrot.lane.b32.xlu0 %v2597, 64
      %v2613 = vpop.permute.xlu0 %2612
      %v2616 = vmul.f32 %v2593, %v2611
      %v2617 = vmul.f32 %v2595, %v2613
      %2620 = vrot.lane.b32.xlu0 %v2616, 32
      %v2621 = vpop.permute.xlu0 %2620
      %2622 = vrot.lane.b32.xlu0 %v2617, 32
      %v2623 = vpop.permute.xlu0 %2622
      %v2626 = vadd.f32 %v2606, %v2621
      %v2627 = vadd.f32 %v2607, %v2623
      %v2628 = vtanh.pop %v2626
      %v2629 = vtanh.pop %v2627
      %2632 = vrot.lane.b32.xlu0 %v2628, 64
      %v2633 = vpop.permute.xlu0 %2632
      %2634 = vrot.lane.b32.xlu0 %v2629, 64
      %v2635 = vpop.permute.xlu0 %2634
      %v2638 = vmul.f32 %v2593, %v2633
      %v2639 = vmul.f32 %v2595, %v2635
      %v2640 = vsel %vm2498, 1, 0
      %2641 = vset.pattern.permute.xlu0 0
      %2642 = vperm.xlu0 %2641, %v2640
      %v2643 = vpop.permute.xlu0 %2642
      %vm2644 = vcmp.eq.s32.totalorder %v2643, 1
      %v2647 = vrot.slane %v2639, 7
      %v2648 = vsel %vm370, %v2647, %v2638
      %2649 = vrot.lane.b32.xlu0 %v2648, 32
      %v2650 = vpop.permute.xlu0 %2649
      %v2652 = vsel %vm2644, %v2650, %v2328
      %v2655 = vrot.slane %v2627, 7
      %v2656 = vsel %vm370, %v2655, %v2626
      %2657 = vrot.lane.b32.xlu0 %v2656, 96
      %v2658 = vpop.permute.xlu0 %2657
      %v2660 = vsel %vm2644, %v2658, %v2336
      %2662 = vrot.lane.b32.xlu0 %v2454, 64
      %v2663 = vpop.permute.xlu0 %2662
      %v2665 = vsel %vm226, %v2652, %v2663
      %v2666 = vld [vmem:[#allocation15] sm:$0xff]
      %v2667 = vld [vmem:[#allocation15 + $0x8] sm:$0xff]
      %v2668 = vld [vmem:[#allocation15 + $0x10] sm:$0xff]
      %v2669 = vld [vmem:[#allocation15 + $0x18] sm:$0xff]
      %v2670 = vld [vmem:[#allocation15 + $0x20] sm:$0xff]
      %v2671 = vld [vmem:[#allocation15 + $0x28] sm:$0xff]
      %v2672 = vld [vmem:[#allocation15 + $0x30] sm:$0xff]
      %v2673 = vld [vmem:[#allocation15 + $0x38] sm:$0xff]
      %v2674 = vld [vmem:[%s9] sm:$0x1]
      %v2676 = vlaneseq
      %v2677 = vshrl.u32 %v2676, 7
      %v2678 = vsub.s32 0, %v2677
      %v2679 = vrot.slane %v2674, %v2678
      %v2682 = vsel %vm404, %v2665, 0
      %2684 = vmatprep.subr.mxu0 0.0
      %2685 = vmatpush1.msra.mxu0 %v2666
      %2686 = vmatprep.subr.mxu0 0.0
      %2687 = vmatpush1.msra.mxu0 %v2667
      %2688 = vmatprep.subr.mxu0 0.0
      %2689 = vmatpush1.msra.mxu0 %v2668
      %2690 = vmatprep.subr.mxu0 0.0
      %2691 = vmatpush1.msra.mxu0 %v2669
      %2692 = vmatprep.subr.mxu0 0.0
      %2693 = vmatpush1.msra.mxu0 %v2670
      %2694 = vmatprep.subr.mxu0 0.0
      %2695 = vmatpush1.msra.mxu0 %v2671
      %2696 = vmatprep.subr.mxu0 0.0
      %2697 = vmatpush1.msra.mxu0 %v2672
      %2698 = vmatprep.subr.mxu0 0.0
      %2699 = vmatpush1.msra.mxu0 %v2673
      %2700 = vmatprep.subr.mxu0 0.0
      %2701 = vmatpush1.msra.mxu0 0.0
      %2702 = vmatprep.subr.mxu0 0.0
      %2703 = vmatpush1.msra.mxu0 0.0
      %2704 = vmatprep.subr.mxu0 0.0
      %2705 = vmatpush1.msra.mxu0 0.0
      %2706 = vmatprep.subr.mxu0 0.0
      %2707 = vmatpush1.msra.mxu0 0.0
      %2708 = vmatprep.subr.mxu0 0.0
      %2709 = vmatpush1.msra.mxu0 0.0
      %2710 = vmatprep.subr.mxu0 0.0
      %2711 = vmatpush1.msra.mxu0 0.0
      %2712 = vmatprep.subr.mxu0 0.0
      %2713 = vmatpush1.msra.mxu0 0.0
      %2714 = vmatprep.subr.mxu0 0.0
      %2715 = vmatpush1.msra.mxu0 0.0
      %2716 = vmatprep.subr.mxu0 0.0
      %2717 = vmatpush1.msra.mxu0 0.0
      %2718 = vmatprep.subr.mxu0 0.0
      %2719 = vmatpush1.msra.mxu0 0.0
      %2720 = vmatprep.subr.mxu0 0.0
      %2721 = vmatpush1.msra.mxu0 0.0
      %2722 = vmatprep.subr.mxu0 0.0
      %2723 = vmatpush1.msra.mxu0 0.0
      %2724 = vmatprep.subr.mxu0 0.0
      %2725 = vmatpush1.msra.mxu0 0.0
      %2726 = vmatprep.subr.mxu0 0.0
      %2727 = vmatpush1.msra.mxu0 0.0
      %2728 = vmatprep.subr.mxu0 0.0
      %2729 = vmatpush1.msra.mxu0 0.0
      %2730 = vmatprep.subr.mxu0 0.0
      %2731 = vmatpush1.msra.mxu0 0.0
      %2732 = vmatprep.subr.mxu0 0.0
      %2733 = vmatpush1.msra.mxu0 0.0
      %2734 = vmatprep.subr.mxu0 0.0
      %2735 = vmatpush1.msra.mxu0 0.0
      %2736 = vmatprep.subr.mxu0 0.0
      %2737 = vmatpush1.msra.mxu0 0.0
      %2738 = vmatprep.subr.mxu0 0.0
      %2739 = vmatpush1.msra.mxu0 0.0
      %2740 = vmatprep.subr.mxu0 0.0
      %2741 = vmatpush1.msra.mxu0 0.0
      %2742 = vmatprep.subr.mxu0 0.0
      %2743 = vmatpush1.msra.mxu0 0.0
      %2744 = vmatprep.subr.mxu0 0.0
      %2745 = vmatpush1.msra.mxu0 0.0
      %2746 = vmatprep.subr.mxu0 0.0
      %2747 = vmatpush1.msra.mxu0 0.0
      %2748 = vmatprep.mubr.f32.mxu0 0.0
      %2749 = vmatmul.mubr.f32.gmra.mrb[0].mxu0 %v2682
      %v2750 = vpop.f32.mrb[0].mxu0
      %v2751 = vadd.f32 %v2679, %v2750
      %v2752 = vpop.f32.mrb[0].mxu0
      %2753 = vdwg.mxu0
      %v2754 = vxor.u32 %v2751, 2147483648
      %v2755 = vmul.f32 %v2754, 1.442695
      %v2756 = vpow.pop %v2755
      %v2757 = vadd.f32 %v2756, 1.0
      %v2758 = vrcp.pop %v2757
      %v2759 = vmul.f32 1.0, %v2758
      %v2760 = vtanh.pop %v2751
      %v2761 = vmul.f32 %v2759, %v2455
      %2763 = vrot.lane.b32.xlu0 %v2760, 64
      %v2764 = vpop.permute.xlu0 %2763
      %v2766 = vmul.f32 %v2759, %v2764
      %2768 = vrot.lane.b32.xlu0 %v2766, 32
      %v2769 = vpop.permute.xlu0 %2768
      %v2771 = vadd.f32 %v2761, %v2769
      %v2772 = vtanh.pop %v2771
      %2774 = vrot.lane.b32.xlu0 %v2772, 64
      %v2775 = vpop.permute.xlu0 %2774
      %v2777 = vmul.f32 %v2759, %v2775
      %v2778 = vsel %vm2644, %v2777, %v2454
      %v2779 = vsel %vm2644, %v2771, %v2455
      %v2780 = vsel %vm2644, %v2777, -1.0
      %v2783 = vunpack.c.l.s4 1966171168
      %v2784 = vunpack.c.0.s8 %v2783
      %v2785 = vlaneseq
      %v2786 = vshrl.u32 %v2785, 7
      %v2787 = vsub.s32 %v2784, %v2786
      %v2788 = vrot.slane %v2780, %v2787
      %v2789 = vcombine.high %v2788, %v2788
      %v2791 = vunpack.c.l.s4 1966171168
      %v2792 = vunpack.c.0.s8 %v2791
      %v2793 = vlaneseq
      %v2794 = vshrl.u32 %v2793, 7
      %v2795 = vsub.s32 %v2792, %v2794
      %v2796 = vrot.slane %v2788, %v2795
      %v2798 = vunpack.c.l.s4 1966171168
      %v2799 = vunpack.c.0.s8 %v2798
      %v2800 = vlaneseq
      %v2801 = vshrl.u32 %v2800, 7
      %v2802 = vsub.s32 %v2799, %v2801
      %v2803 = vrot.slane %v2789, %v2802
      %v2804 = vlaneseq
      %v2805 = vshrl.u32 %v2804, 7
      %v2806 = vsub.s32 0, %v2805
      %v2807 = vrot.slane %v2796, %v2806
      %v2808 = vlaneseq
      %v2809 = vshrl.u32 %v2808, 7
      %v2810 = vsub.s32 0, %v2809
      %v2811 = vrot.slane %v2803, %v2810
      %2812 = vrot.lane.b32.xlu0 %v2807, 32
      %v2813 = vpop.permute.xlu0 %2812
      %2814 = vrot.lane.b32.xlu0 %v2811, 32
      %v2815 = vpop.permute.xlu0 %2814
      %2818 = vst.msk [vmem:[#allocation17 + $0x7] sm:$0x1] %vm549, %v2813
      %2819 = vst.msk [vmem:[#allocation17 + $0xf] sm:$0x1] %vm549, %v2815
      %vm2820 = vcmask 254976
      %2821 = vst.msk [vmem:[#allocation2] sm:$0x3] %vm2820, %v2652
      %2822 = vst.msk [vmem:[#allocation3] sm:$0x3] %vm2820, %v2660
      %2824 = vrot.lane.b32.xlu0 %v2778, 32
      %v2825 = vpop.permute.xlu0 %2824
      %2827 = vst.msk [vmem:[#allocation4] sm:$0x3] %vm2820, %v2825
      %2829 = vrot.lane.b32.xlu0 %v2779, 96
      %v2830 = vpop.permute.xlu0 %2829
      %2832 = vst.msk [vmem:[#allocation5] sm:$0x3] %vm2820, %v2830
    $region61: #{tpu_custom_call.1} parent=1 // pred_fallthru
      _
    %p2833 = scmp.ge.s32.totalorder %s94, %s110
    // Predicated region
    $region62: #{tpu_custom_call.1} parent=1 // pred_check
      %p2834 = pneg %p2833
    $region63: #{tpu_custom_call.1} parent=1 // pred_check_branch
      %2836 = sbr.rel (%p2834) target = $region65
    $region64: #{tpu_custom_call.1} parent=1 // pred_region
      %vm2837 = vcmask 261120
      %2838 = vst.msk [vmem:[#allocation17] sm:$0xff] %vm2837, -1.0
      %2839 = vst.msk [vmem:[#allocation17 + $0x8] sm:$0xff] %vm2837, -1.0
    $region65: #{tpu_custom_call.1} parent=1 // pred_fallthru
      _
    // Predicated region
    $region66: #{tpu_custom_call.1} parent=1 // pred_check
      %p2840 = pneg %p95
    $region67: #{tpu_custom_call.1} parent=1 // pred_check_branch
      %2842 = sbr.rel (%p2840) target = $region69
    $region68: #{tpu_custom_call.1} parent=1 // pred_region
      %v2843 = vld [vmem:[#allocation2] sm:$0x3]
      %vm2844 = vcmask 254976
      %2845 = vst.msk [vmem:[#allocation18] sm:$0x3] %vm2844, %v2843
      %v2846 = vld [vmem:[#allocation4] sm:$0x3]
      %s2847 = scalar_lea.vmem [#allocation18], 2
      %2848 = vst.msk [vmem:[%s2847] sm:$0x3] %vm2844, %v2846
      %v2849 = vld [vmem:[#allocation3] sm:$0x3]
      %2850 = vst.msk [vmem:[#allocation20] sm:$0x3] %vm2844, %v2849
      %v2851 = vld [vmem:[#allocation5] sm:$0x3]
      %s2852 = scalar_lea.vmem [#allocation20], 2
      %2853 = vst.msk [vmem:[%s2852] sm:$0x3] %vm2844, %v2851
    $region69: #{tpu_custom_call.1} parent=1 // pred_fallthru
      _
    // Predicated region
    $region70: #{tpu_custom_call.1} parent=1 // pred_check
      _
    $region71: #{tpu_custom_call.1} parent=1 // pred_check_branch
      %2855 = sbr.rel (0) target = $region73
    $region72: #{tpu_custom_call.1} parent=1 // pred_region
      %s2857 = ssub.s32 256, 256
      %2858 = vsyncadd [#allocation11], %s2857
      %s2859 = sshll.u32 [#allocation17], 4
      %s2860 = int_to_ptr.vmem [resolvable:$true] %s2859
      %2865 = dma.vmem_to_hbm [thread:$0]  %s2860, 256, %s10, [#allocation11], 128, 128, 8
    $region73: #{tpu_custom_call.1} parent=1 // pred_fallthru
      _
    // Predicated region
    $region74: #{tpu_custom_call.1} parent=1 // pred_check
      _
    $region75: #{tpu_custom_call.1} parent=1 // pred_check_branch
      %2867 = sbr.rel (0) target = $region77
    $region76: #{tpu_custom_call.1} parent=1 // pred_region
      %s2869 = ssub.s32 64, 64
      %2870 = vsyncadd [#allocation19], %s2869
      %s2871 = sshll.u32 [#allocation18], 4
      %s2872 = int_to_ptr.vmem [resolvable:$true] %s2871
      %2877 = dma.vmem_to_hbm [thread:$0]  %s2872, 64, %s11, [#allocation19], 32, 32, 2
    $region77: #{tpu_custom_call.1} parent=1 // pred_fallthru
      _
    // Predicated region
    $region78: #{tpu_custom_call.1} parent=1 // pred_check
      _
    $region79: #{tpu_custom_call.1} parent=1 // pred_check_branch
      %2879 = sbr.rel (0) target = $region81
    $region80: #{tpu_custom_call.1} parent=1 // pred_region
      %s2881 = ssub.s32 64, 64
      %2882 = vsyncadd [#allocation19], %s2881
      %s2883 = sshll.u32 [#allocation20], 4
      %s2884 = int_to_ptr.vmem [resolvable:$true] %s2883
      %2889 = dma.vmem_to_hbm [thread:$0]  %s2884, 64, %s12, [#allocation19], 32, 32, 2
    $region81: #{tpu_custom_call.1} parent=1 // pred_fallthru
      _
    // Predicated region
    $region82: #{tpu_custom_call.1} parent=1 // pred_check
      _
    $region83: #{tpu_custom_call.1} parent=1 // pred_check_branch
      %2891 = sbr.rel (0) target = $region85
    $region84: #{tpu_custom_call.1} parent=1 // pred_region
      %2892 = dma.done [#allocation11], 256
    $region85: #{tpu_custom_call.1} parent=1 // pred_fallthru
      _
    // Predicated region
    $region86: #{tpu_custom_call.1} parent=1 // pred_check
      _
    $region87: #{tpu_custom_call.1} parent=1 // pred_check_branch
      %2894 = sbr.rel (0) target = $region89
    $region88: #{tpu_custom_call.1} parent=1 // pred_region
      %2895 = dma.done [#allocation19], 64
    $region89: #{tpu_custom_call.1} parent=1 // pred_fallthru
      _
    // Predicated region
    $region90: #{tpu_custom_call.1} parent=1 // pred_check
      _
    $region91: #{tpu_custom_call.1} parent=1 // pred_check_branch
      %2897 = sbr.rel (0) target = $region93
    $region92: #{tpu_custom_call.1} parent=1 // pred_region
      %2898 = dma.done [#allocation19], 64
    $region93: #{tpu_custom_call.1} parent=1 // pred_fallthru
      _
    %2899 = vsyncpa [#allocation10], 1
    %2900 = vsyncpa [#allocation13], 1
    %2901 = vsyncpa [#allocation16], 1
    %2902 = vsyncpa [#allocation11], 1
    %2903 = vsyncpa [#allocation19], 1

</llo_original>
